<compile_context>
chip_gen: v5e
topology: v5e:2x2
jax: 0.10.0
libtpu: 0.0.40
codegen_flags: <defaults>
</compile_context>

<pallas_src>
import math

import jax
import jax.numpy as jnp
from jax.experimental import pallas as pl
from jax.experimental.pallas import tpu as pltpu


def _attention_kernel(B, L, C, num_heads):
    nh = num_heads
    dh = C // nh
    bf16 = jnp.bfloat16

    def kernel(x_ref, wqkv_ref, bqkv_ref, w2_ref, b2_ref, o_ref):
        # x: (B*L, C) f32 -> bf16 MXU operand (accumulation stays f32).
        x = x_ref[...].astype(bf16)

        # Fused QKV projection: a single wide matmul and a single bias add.
        # Column layout of the 3C output features: k*C + h*dh + c, with the
        # 1/sqrt(dh) scale already folded into the Q columns / bias.
        qkv = jnp.dot(x, wqkv_ref[...],
                      preferred_element_type=jnp.float32) + bqkv_ref[...]   # (B*L, 3C) f32

        # Head/batch-batched views (B*nh, L, dh) via static slices (no
        # broadcast of x, no per-head weight matmuls).
        def split(base):
            return jnp.stack(
                [qkv[b * L:(b + 1) * L, base + h * dh: base + (h + 1) * dh]
                 for b in range(B) for h in range(nh)])
        q = split(0)
        k = split(C)
        v = split(2 * C)

        # Scores: contraction over the last dims of both operands (no .T).
        s = jnp.einsum('hqd,hkd->hqk', q.astype(bf16), k.astype(bf16),
                       preferred_element_type=jnp.float32)           # (B*nh, L, L)

        # Softmax with deferred normalization (scale a, not p); f32 math.
        m = jnp.max(s, axis=-1, keepdims=True)
        p = jnp.exp(s - m)                                            # unnormalized
        l = jnp.sum(p, axis=-1, keepdims=True)                        # (B*nh, L, 1)
        a = jnp.einsum('hqk,hkd->hqd', p.astype(bf16), v.astype(bf16),
                       preferred_element_type=jnp.float32)            # (B*nh, L, dh)
        a = a * pl.reciprocal(l, approx=False)                        # exact, tiny count

        # Re-pack heads to (B*L, C) in h-major feature order (h*dh + c);
        # w2 was column-permuted at prepare time to match this order.
        a_flat = jnp.concatenate(
            [jnp.concatenate([a[b * nh + h] for h in range(nh)], axis=-1)
             for b in range(B)], axis=0)                              # (B*L, C)

        # Fused output projection: one K=C matmul + one bias add.
        out = jnp.dot(a_flat.astype(bf16), w2_ref[...],
                      preferred_element_type=jnp.float32) + b2_ref[...]
        o_ref[...] = out.astype(o_ref.dtype)

    return kernel


def prepare_attention_params(w1, b1, w2, b2, num_heads, mxu_dtype=jnp.bfloat16):
    """One-time parameter glue (call at weight-load time, not per forward).

    w1: (3C, C), b1: (3C,), w2: (C, C), b2: (C,) in PyTorch Linear layout.
    Returns fused, input-major, scale-folded, bf16 weights for the kernel.
    """
    three_c, C = w1.shape
    nh = num_heads
    dh = C // nh
    scale = 1.0 / math.sqrt(dh)

    c_idx = jnp.arange(dh)
    h_idx = jnp.arange(nh)
    k_idx = jnp.arange(3)

    # PyTorch rearrange 'b L (C H K) -> K b H L C': proj1 output feature
    # index f = c*nh*3 + h*3 + k.
    rows = (c_idx[None, None, :] * nh * 3
            + h_idx[None, :, None] * 3
            + k_idx[:, None, None])                                   # (3, nh, dh)
    w_sel = w1[rows]                                                  # (3, nh, dh, C)
    b_sel = b1[rows]                                                  # (3, nh, dh)

    # Fold the 1/sqrt(dh) attention scale into the Q component.
    scale_vec = jnp.array([scale, 1.0, 1.0], dtype=w1.dtype)[:, None, None]
    w_sel = w_sel * scale_vec[..., None]
    b_sel = b_sel * scale_vec

    # Fused, input-major QKV weight: column index = k*C + h*dh + c.
    w_qkv = jnp.transpose(w_sel, (3, 0, 1, 2)).reshape(C, 3 * C)      # (C, 3C)
    b_qkv = b_sel.reshape(1, 3 * C)                                   # (1, 3C)

    # proj2 consumes reference features g = c*nh + h ('(C H)' order); permute
    # its columns so the kernel's h-major (h*dh + c) activations multiply
    # correctly, and pre-transpose to input-major (C_in, C_out).
    g = c_idx[None, :] * nh + h_idx[:, None]                          # (nh, dh)
    w2_p = jnp.transpose(w2[:, g], (1, 2, 0)).reshape(C, C)           # (C_in, C_out)
    b2_p = b2[None, :]                                                # (1, C)

    return (w_qkv.astype(mxu_dtype), b_qkv.astype(jnp.float32),
            w2_p.astype(mxu_dtype), b2_p.astype(jnp.float32))


def attention_forward(x_nchw, params, num_heads):
    """x_nchw: (B, C, H, W); params from prepare_attention_params."""
    w_qkv, b_qkv, w2_p, b2_p = params
    B, C, H, W = x_nchw.shape
    L = H * W

    # (B, C, H, W) -> (B*L, C): batch folded into the matmul M dimension.
    x2d = jnp.transpose(x_nchw.reshape(B, C, L), (0, 2, 1)).reshape(B * L, C)

    def full(shape):
        return pl.BlockSpec(shape, lambda i: (0,) * len(shape))

    out2d = pl.pallas_call(
        _attention_kernel(B, L, C, num_heads),
        out_shape=jax.ShapeDtypeStruct((B * L, C), x2d.dtype),
        grid_spec=pltpu.PrefetchScalarGridSpec(
            num_scalar_prefetch=0,
            grid=(1,),
            in_specs=[
                full((B * L, C)),      # x
                full((C, 3 * C)),      # fused QKV weight (bf16, scale folded)
                full((1, 3 * C)),      # fused QKV bias (f32, scale folded)
                full((C, C)),          # permuted proj2 weight (bf16)
                full((1, C)),          # proj2 bias (f32)
            ],
            out_specs=full((B * L, C)),
        ),
    )(x2d, w_qkv, b_qkv, w2_p, b2_p)

    # (B*L, C) -> (B, H, W, C) -> (B, C, H, W)
    return jnp.transpose(out2d.reshape(B, H, W, C), (0, 3, 1, 2))


def reference_forward(x_nchw, w1, b1, w2, b2, num_heads):
    """Pure-JAX f32 replica of the PyTorch forward (eval mode, no dropout)."""
    B, C, H, W = x_nchw.shape
    L = H * W
    dh = C // num_heads
    xl = jnp.transpose(x_nchw.reshape(B, C, L), (0, 2, 1))        # (B, L, C)
    y = xl @ w1.T + b1                                            # (B, L, 3C)
    y = y.reshape(B, L, dh, num_heads, 3)                         # (c, h, k)
    q = jnp.transpose(y[..., 0], (0, 3, 1, 2))                    # (B, H, L, dh)
    k = jnp.transpose(y[..., 1], (0, 3, 1, 2))
    v = jnp.transpose(y[..., 2], (0, 3, 1, 2))
    s = jnp.einsum('bhld,bhmd->bhlm', q, k) / math.sqrt(dh)
    p = jax.nn.softmax(s, axis=-1)
    a = jnp.einsum('bhlm,bhmd->bhld', p, v)                       # (B, H, L, dh)
    a = jnp.transpose(a, (0, 2, 3, 1)).reshape(B, L, C)           # feat = c*H + h
    out = a @ w2.T + b2
    return jnp.transpose(out.reshape(B, H, W, C), (0, 3, 1, 2))


if __name__ == "__main__":
    # Small shapes: B=2, C=32, num_heads=4, spatial 8x8 -> L=64, B*L=128.
    B, C, Hs, Ws = 2, 32, 8, 8
    num_heads = 4
    dropout_prob = 0.0  # eval-mode noop (see TODO at top)

    key = jax.random.PRNGKey(0)
    kx, k1, k2, k3, k4 = jax.random.split(key, 5)

    x = jax.random.normal(kx, (B, C, Hs, Ws), dtype=jnp.float32)

    # Deterministic PyTorch-style Linear init: U(-1/sqrt(fan_in), 1/sqrt(fan_in)).
    bound1 = 1.0 / math.sqrt(C)
    w1 = jax.random.uniform(k1, (3 * C, C), jnp.float32, -bound1, bound1)
    b1 = jax.random.uniform(k2, (3 * C,), jnp.float32, -bound1, bound1)
    w2 = jax.random.uniform(k3, (C, C), jnp.float32, -bound1, bound1)
    b2 = jax.random.uniform(k4, (C,), jnp.float32, -bound1, bound1)

    # One-time parameter preparation (hoisted out of the per-call path).
    params = jax.tree_util.tree_map(
        jax.block_until_ready,
        prepare_attention_params(w1, b1, w2, b2, num_heads))

    out = attention_forward(x, params, num_heads)
    out = jax.block_until_ready(out)

    ref = reference_forward(x, w1, b1, w2, b2, num_heads)
    assert out.shape == (B, C, Hs, Ws)
    # Tolerance relaxed vs exact f32 because all four matmuls use bf16 MXU
    # operands (f32 accumulation); softmax math stays f32, reciprocal exact.
    err = jnp.max(jnp.abs(out - ref))
    assert jnp.allclose(out, ref, atol=2e-2, rtol=2e-2), f"mismatch vs reference (max abs err {err})"

    print("KERNEL_OK")
</pallas_src>

<mosaic_0001>
module attributes {stable_mosaic.version = 11 : i64} {
  func.func @kernel(%arg0: i32, %arg1: memref<128x32xf32, #tpu.memory_space<vmem>>, %arg2: memref<32x96xbf16, #tpu.memory_space<vmem>>, %arg3: memref<1x96xf32, #tpu.memory_space<vmem>>, %arg4: memref<32x32xbf16, #tpu.memory_space<vmem>>, %arg5: memref<1x32xf32, #tpu.memory_space<vmem>>, %arg6: memref<128x32xf32, #tpu.memory_space<vmem>>) attributes {dimension_semantics = [#tpu.dimension_semantics<arbitrary>], iteration_bounds = array<i64: 1>, scalar_prefetch = 0 : i64, scratch_operands = 0 : i64, tpu.core_type = #tpu.core_type<tc>, window_params = [{pipeline_mode = #tpu.pipeline_mode<synchronous>, transform_indices = @transform_0, window_bounds = array<i64: 128, 32>}, {pipeline_mode = #tpu.pipeline_mode<synchronous>, transform_indices = @transform_1, window_bounds = array<i64: 32, 96>}, {pipeline_mode = #tpu.pipeline_mode<synchronous>, transform_indices = @transform_2, window_bounds = array<i64: 1, 96>}, {pipeline_mode = #tpu.pipeline_mode<synchronous>, transform_indices = @transform_3, window_bounds = array<i64: 32, 32>}, {pipeline_mode = #tpu.pipeline_mode<synchronous>, transform_indices = @transform_4, window_bounds = array<i64: 1, 32>}, {pipeline_mode = #tpu.pipeline_mode<synchronous>, transform_indices = @transform_5, window_bounds = array<i64: 128, 32>}]} {
    %c0 = arith.constant 0 : index
    %c0_0 = arith.constant 0 : index
    %0 = vector.load %arg1[%c0, %c0_0] : memref<128x32xf32, #tpu.memory_space<vmem>>, vector<128x32xf32>
    %1 = arith.truncf %0 : vector<128x32xf32> to vector<128x32xbf16>
    %c0_1 = arith.constant 0 : index
    %c0_2 = arith.constant 0 : index
    %2 = vector.load %arg2[%c0_1, %c0_2] : memref<32x96xbf16, #tpu.memory_space<vmem>>, vector<32x96xbf16>
    %cst = arith.constant dense<0.000000e+00> : vector<128x96xf32>
    %3 = tpu.matmul %1, %2, %cst {dimension_numbers = #tpu.dot_dimension_numbers<[1], [0], [0], [1], [0, 0, 1, 1], [], []>} : vector<128x32xbf16>, vector<32x96xbf16>, vector<128x96xf32> -> vector<128x96xf32>
    %c0_3 = arith.constant 0 : index
    %c0_4 = arith.constant 0 : index
    %4 = vector.load %arg3[%c0_3, %c0_4] : memref<1x96xf32, #tpu.memory_space<vmem>>, vector<1x96xf32>
    %5 = vector.broadcast %4 : vector<1x96xf32> to vector<128x96xf32>
    %6 = arith.addf %3, %5 : vector<128x96xf32>
    %7 = vector.extract_strided_slice %6 {offsets = [0, 0], sizes = [64, 8], strides = [1, 1]} : vector<128x96xf32> to vector<64x8xf32>
    %8 = vector.extract_strided_slice %6 {offsets = [0, 8], sizes = [64, 8], strides = [1, 1]} : vector<128x96xf32> to vector<64x8xf32>
    %9 = vector.extract_strided_slice %6 {offsets = [0, 16], sizes = [64, 8], strides = [1, 1]} : vector<128x96xf32> to vector<64x8xf32>
    %10 = vector.extract_strided_slice %6 {offsets = [0, 24], sizes = [64, 8], strides = [1, 1]} : vector<128x96xf32> to vector<64x8xf32>
    %11 = vector.extract_strided_slice %6 {offsets = [64, 0], sizes = [64, 8], strides = [1, 1]} : vector<128x96xf32> to vector<64x8xf32>
    %12 = vector.extract_strided_slice %6 {offsets = [64, 8], sizes = [64, 8], strides = [1, 1]} : vector<128x96xf32> to vector<64x8xf32>
    %13 = vector.extract_strided_slice %6 {offsets = [64, 16], sizes = [64, 8], strides = [1, 1]} : vector<128x96xf32> to vector<64x8xf32>
    %14 = vector.extract_strided_slice %6 {offsets = [64, 24], sizes = [64, 8], strides = [1, 1]} : vector<128x96xf32> to vector<64x8xf32>
    %15 = vector.shape_cast %7 : vector<64x8xf32> to vector<1x64x8xf32>
    %16 = vector.shape_cast %8 : vector<64x8xf32> to vector<1x64x8xf32>
    %17 = vector.shape_cast %9 : vector<64x8xf32> to vector<1x64x8xf32>
    %18 = vector.shape_cast %10 : vector<64x8xf32> to vector<1x64x8xf32>
    %19 = vector.shape_cast %11 : vector<64x8xf32> to vector<1x64x8xf32>
    %20 = vector.shape_cast %12 : vector<64x8xf32> to vector<1x64x8xf32>
    %21 = vector.shape_cast %13 : vector<64x8xf32> to vector<1x64x8xf32>
    %22 = vector.shape_cast %14 : vector<64x8xf32> to vector<1x64x8xf32>
    %23 = tpu.concatenate %15, %16, %17, %18, %19, %20, %21, %22 in 0 : vector<1x64x8xf32>, vector<1x64x8xf32>, vector<1x64x8xf32>, vector<1x64x8xf32>, vector<1x64x8xf32>, vector<1x64x8xf32>, vector<1x64x8xf32>, vector<1x64x8xf32> -> vector<8x64x8xf32>
    %24 = vector.extract_strided_slice %6 {offsets = [0, 32], sizes = [64, 8], strides = [1, 1]} : vector<128x96xf32> to vector<64x8xf32>
    %25 = vector.extract_strided_slice %6 {offsets = [0, 40], sizes = [64, 8], strides = [1, 1]} : vector<128x96xf32> to vector<64x8xf32>
    %26 = vector.extract_strided_slice %6 {offsets = [0, 48], sizes = [64, 8], strides = [1, 1]} : vector<128x96xf32> to vector<64x8xf32>
    %27 = vector.extract_strided_slice %6 {offsets = [0, 56], sizes = [64, 8], strides = [1, 1]} : vector<128x96xf32> to vector<64x8xf32>
    %28 = vector.extract_strided_slice %6 {offsets = [64, 32], sizes = [64, 8], strides = [1, 1]} : vector<128x96xf32> to vector<64x8xf32>
    %29 = vector.extract_strided_slice %6 {offsets = [64, 40], sizes = [64, 8], strides = [1, 1]} : vector<128x96xf32> to vector<64x8xf32>
    %30 = vector.extract_strided_slice %6 {offsets = [64, 48], sizes = [64, 8], strides = [1, 1]} : vector<128x96xf32> to vector<64x8xf32>
    %31 = vector.extract_strided_slice %6 {offsets = [64, 56], sizes = [64, 8], strides = [1, 1]} : vector<128x96xf32> to vector<64x8xf32>
    %32 = vector.shape_cast %24 : vector<64x8xf32> to vector<1x64x8xf32>
    %33 = vector.shape_cast %25 : vector<64x8xf32> to vector<1x64x8xf32>
    %34 = vector.shape_cast %26 : vector<64x8xf32> to vector<1x64x8xf32>
    %35 = vector.shape_cast %27 : vector<64x8xf32> to vector<1x64x8xf32>
    %36 = vector.shape_cast %28 : vector<64x8xf32> to vector<1x64x8xf32>
    %37 = vector.shape_cast %29 : vector<64x8xf32> to vector<1x64x8xf32>
    %38 = vector.shape_cast %30 : vector<64x8xf32> to vector<1x64x8xf32>
    %39 = vector.shape_cast %31 : vector<64x8xf32> to vector<1x64x8xf32>
    %40 = tpu.concatenate %32, %33, %34, %35, %36, %37, %38, %39 in 0 : vector<1x64x8xf32>, vector<1x64x8xf32>, vector<1x64x8xf32>, vector<1x64x8xf32>, vector<1x64x8xf32>, vector<1x64x8xf32>, vector<1x64x8xf32>, vector<1x64x8xf32> -> vector<8x64x8xf32>
    %41 = vector.extract_strided_slice %6 {offsets = [0, 64], sizes = [64, 8], strides = [1, 1]} : vector<128x96xf32> to vector<64x8xf32>
    %42 = vector.extract_strided_slice %6 {offsets = [0, 72], sizes = [64, 8], strides = [1, 1]} : vector<128x96xf32> to vector<64x8xf32>
    %43 = vector.extract_strided_slice %6 {offsets = [0, 80], sizes = [64, 8], strides = [1, 1]} : vector<128x96xf32> to vector<64x8xf32>
    %44 = vector.extract_strided_slice %6 {offsets = [0, 88], sizes = [64, 8], strides = [1, 1]} : vector<128x96xf32> to vector<64x8xf32>
    %45 = vector.extract_strided_slice %6 {offsets = [64, 64], sizes = [64, 8], strides = [1, 1]} : vector<128x96xf32> to vector<64x8xf32>
    %46 = vector.extract_strided_slice %6 {offsets = [64, 72], sizes = [64, 8], strides = [1, 1]} : vector<128x96xf32> to vector<64x8xf32>
    %47 = vector.extract_strided_slice %6 {offsets = [64, 80], sizes = [64, 8], strides = [1, 1]} : vector<128x96xf32> to vector<64x8xf32>
    %48 = vector.extract_strided_slice %6 {offsets = [64, 88], sizes = [64, 8], strides = [1, 1]} : vector<128x96xf32> to vector<64x8xf32>
    %49 = vector.shape_cast %41 : vector<64x8xf32> to vector<1x64x8xf32>
    %50 = vector.shape_cast %42 : vector<64x8xf32> to vector<1x64x8xf32>
    %51 = vector.shape_cast %43 : vector<64x8xf32> to vector<1x64x8xf32>
    %52 = vector.shape_cast %44 : vector<64x8xf32> to vector<1x64x8xf32>
    %53 = vector.shape_cast %45 : vector<64x8xf32> to vector<1x64x8xf32>
    %54 = vector.shape_cast %46 : vector<64x8xf32> to vector<1x64x8xf32>
    %55 = vector.shape_cast %47 : vector<64x8xf32> to vector<1x64x8xf32>
    %56 = vector.shape_cast %48 : vector<64x8xf32> to vector<1x64x8xf32>
    %57 = tpu.concatenate %49, %50, %51, %52, %53, %54, %55, %56 in 0 : vector<1x64x8xf32>, vector<1x64x8xf32>, vector<1x64x8xf32>, vector<1x64x8xf32>, vector<1x64x8xf32>, vector<1x64x8xf32>, vector<1x64x8xf32>, vector<1x64x8xf32> -> vector<8x64x8xf32>
    %58 = arith.truncf %23 : vector<8x64x8xf32> to vector<8x64x8xbf16>
    %59 = arith.truncf %40 : vector<8x64x8xf32> to vector<8x64x8xbf16>
    "tpu.trace_start"() <{level = 10 : i32, message = "hqd,hkd->hqk"}> : () -> ()
    %cst_5 = arith.constant dense<0.000000e+00> : vector<8x64x64xf32>
    %60 = tpu.matmul %58, %59, %cst_5 {dimension_numbers = #tpu.dot_dimension_numbers<[2], [2], [1], [1], [0, 0, 0, 1, 1, 1], [0], [0]>} : vector<8x64x8xbf16>, vector<8x64x8xbf16>, vector<8x64x64xf32> -> vector<8x64x64xf32>
    "tpu.trace_stop"() : () -> ()
    %cst_6 = arith.constant dense<0xFF800000> : vector<8x64xf32>
    %61 = vector.multi_reduction <maximumf>, %60, %cst_6 [2] : vector<8x64x64xf32> to vector<8x64xf32>
    %62 = vector.shape_cast %61 : vector<8x64xf32> to vector<8x64x1xf32>
    %63 = vector.broadcast %62 : vector<8x64x1xf32> to vector<8x64x64xf32>
    %64 = arith.subf %60, %63 : vector<8x64x64xf32>
    %65 = math.exp %64 : vector<8x64x64xf32>
    %cst_7 = arith.constant dense<0.000000e+00> : vector<8x64xf32>
    %66 = vector.multi_reduction <add>, %65, %cst_7 [2] : vector<8x64x64xf32> to vector<8x64xf32>
    %67 = vector.shape_cast %66 : vector<8x64xf32> to vector<8x64x1xf32>
    %68 = arith.truncf %65 : vector<8x64x64xf32> to vector<8x64x64xbf16>
    %69 = arith.truncf %57 : vector<8x64x8xf32> to vector<8x64x8xbf16>
    "tpu.trace_start"() <{level = 10 : i32, message = "hqk,hkd->hqd"}> : () -> ()
    %cst_8 = arith.constant dense<0.000000e+00> : vector<8x64x8xf32>
    %70 = tpu.matmul %68, %69, %cst_8 {dimension_numbers = #tpu.dot_dimension_numbers<[2], [1], [1], [2], [0, 0, 0, 1, 1, 2], [0], [0]>} : vector<8x64x64xbf16>, vector<8x64x8xbf16>, vector<8x64x8xf32> -> vector<8x64x8xf32>
    "tpu.trace_stop"() : () -> ()
    %71 = tpu.reciprocal %67 : vector<8x64x1xf32> -> vector<8x64x1xf32>
    %72 = vector.broadcast %71 : vector<8x64x1xf32> to vector<8x64x8xf32>
    %73 = arith.mulf %70, %72 : vector<8x64x8xf32>
    %74 = vector.extract_strided_slice %73 {offsets = [0, 0, 0], sizes = [1, 64, 8], strides = [1, 1, 1]} : vector<8x64x8xf32> to vector<1x64x8xf32>
    %75 = vector.shape_cast %74 : vector<1x64x8xf32> to vector<64x8xf32>
    %76 = vector.extract_strided_slice %73 {offsets = [1, 0, 0], sizes = [1, 64, 8], strides = [1, 1, 1]} : vector<8x64x8xf32> to vector<1x64x8xf32>
    %77 = vector.shape_cast %76 : vector<1x64x8xf32> to vector<64x8xf32>
    %78 = vector.extract_strided_slice %73 {offsets = [2, 0, 0], sizes = [1, 64, 8], strides = [1, 1, 1]} : vector<8x64x8xf32> to vector<1x64x8xf32>
    %79 = vector.shape_cast %78 : vector<1x64x8xf32> to vector<64x8xf32>
    %80 = vector.extract_strided_slice %73 {offsets = [3, 0, 0], sizes = [1, 64, 8], strides = [1, 1, 1]} : vector<8x64x8xf32> to vector<1x64x8xf32>
    %81 = vector.shape_cast %80 : vector<1x64x8xf32> to vector<64x8xf32>
    %82 = tpu.concatenate %75, %77, %79, %81 in 1 : vector<64x8xf32>, vector<64x8xf32>, vector<64x8xf32>, vector<64x8xf32> -> vector<64x32xf32>
    %83 = vector.extract_strided_slice %73 {offsets = [4, 0, 0], sizes = [1, 64, 8], strides = [1, 1, 1]} : vector<8x64x8xf32> to vector<1x64x8xf32>
    %84 = vector.shape_cast %83 : vector<1x64x8xf32> to vector<64x8xf32>
    %85 = vector.extract_strided_slice %73 {offsets = [5, 0, 0], sizes = [1, 64, 8], strides = [1, 1, 1]} : vector<8x64x8xf32> to vector<1x64x8xf32>
    %86 = vector.shape_cast %85 : vector<1x64x8xf32> to vector<64x8xf32>
    %87 = vector.extract_strided_slice %73 {offsets = [6, 0, 0], sizes = [1, 64, 8], strides = [1, 1, 1]} : vector<8x64x8xf32> to vector<1x64x8xf32>
    %88 = vector.shape_cast %87 : vector<1x64x8xf32> to vector<64x8xf32>
    %89 = vector.extract_strided_slice %73 {offsets = [7, 0, 0], sizes = [1, 64, 8], strides = [1, 1, 1]} : vector<8x64x8xf32> to vector<1x64x8xf32>
    %90 = vector.shape_cast %89 : vector<1x64x8xf32> to vector<64x8xf32>
    %91 = tpu.concatenate %84, %86, %88, %90 in 1 : vector<64x8xf32>, vector<64x8xf32>, vector<64x8xf32>, vector<64x8xf32> -> vector<64x32xf32>
    %92 = tpu.concatenate %82, %91 in 0 : vector<64x32xf32>, vector<64x32xf32> -> vector<128x32xf32>
    %93 = arith.truncf %92 : vector<128x32xf32> to vector<128x32xbf16>
    %c0_9 = arith.constant 0 : index
    %c0_10 = arith.constant 0 : index
    %94 = vector.load %arg4[%c0_9, %c0_10] : memref<32x32xbf16, #tpu.memory_space<vmem>>, vector<32x32xbf16>
    %cst_11 = arith.constant dense<0.000000e+00> : vector<128x32xf32>
    %95 = tpu.matmul %93, %94, %cst_11 {dimension_numbers = #tpu.dot_dimension_numbers<[1], [0], [0], [1], [0, 0, 1, 1], [], []>} : vector<128x32xbf16>, vector<32x32xbf16>, vector<128x32xf32> -> vector<128x32xf32>
    %c0_12 = arith.constant 0 : index
    %c0_13 = arith.constant 0 : index
    %96 = vector.load %arg5[%c0_12, %c0_13] : memref<1x32xf32, #tpu.memory_space<vmem>>, vector<1x32xf32>
    %97 = vector.broadcast %96 : vector<1x32xf32> to vector<128x32xf32>
    %98 = arith.addf %95, %97 : vector<128x32xf32>
    %c0_14 = arith.constant 0 : index
    %c0_15 = arith.constant 0 : index
    %99 = vector.load %arg6[%c0_14, %c0_15] : memref<128x32xf32, #tpu.memory_space<vmem>>, vector<128x32xf32>
    tpu.vector_store %arg6[%c0_14, %c0_15], %98 {strides = array<i32>} : memref<128x32xf32, #tpu.memory_space<vmem>>, vector<128x32xf32>,
    return
  }
  func.func @transform_0(%arg0: i32) -> (i32, i32) {
    %c0_i32 = arith.constant 0 : i32
    %c0_i32_0 = arith.constant 0 : i32
    %c0_i32_1 = arith.constant 0 : i32
    return %c0_i32, %c0_i32_0 : i32, i32
  }
  func.func @transform_1(%arg0: i32) -> (i32, i32) {
    %c0_i32 = arith.constant 0 : i32
    %c0_i32_0 = arith.constant 0 : i32
    %c0_i32_1 = arith.constant 0 : i32
    return %c0_i32, %c0_i32_0 : i32, i32
  }
  func.func @transform_2(%arg0: i32) -> (i32, i32) {
    %c0_i32 = arith.constant 0 : i32
    %c0_i32_0 = arith.constant 0 : i32
    %c0_i32_1 = arith.constant 0 : i32
    return %c0_i32, %c0_i32_0 : i32, i32
  }
  func.func @transform_3(%arg0: i32) -> (i32, i32) {
    %c0_i32 = arith.constant 0 : i32
    %c0_i32_0 = arith.constant 0 : i32
    %c0_i32_1 = arith.constant 0 : i32
    return %c0_i32, %c0_i32_0 : i32, i32
  }
  func.func @transform_4(%arg0: i32) -> (i32, i32) {
    %c0_i32 = arith.constant 0 : i32
    %c0_i32_0 = arith.constant 0 : i32
    %c0_i32_1 = arith.constant 0 : i32
    return %c0_i32, %c0_i32_0 : i32, i32
  }
  func.func @transform_5(%arg0: i32) -> (i32, i32) {
    %c0_i32 = arith.constant 0 : i32
    %c0_i32_0 = arith.constant 0 : i32
    %c0_i32_1 = arith.constant 0 : i32
    return %c0_i32, %c0_i32_0 : i32, i32
  }
}

</mosaic_0001>

<llo_original>
// kernel: tpu_custom_call.1
$region0: #{tpu_custom_call.1}
  #allocation0 [shape = 'u32[]', space=smem, size = 0x4, offset = 0x4, fixed_abs, tag = 'smem constant byte address 0x4 - core index']
  #allocation1 [shape = 'u32[72,128]{1,0:T(1,128)}', space=vmem, size = 0x9000, scoped, tag = 'internal scratch']
  %s0 = inlined_call_operand.vmem [shape: f32[128,32], index: 0, kind: input, shape index: {}]
  %s1 = inlined_call_operand.vmem [shape: bf16[32,96], index: 1, kind: input, shape index: {}]
  %s2 = inlined_call_operand.vmem [shape: f32[1,96], index: 2, kind: input, shape index: {}]
  %s3 = inlined_call_operand.vmem [shape: bf16[32,32], index: 3, kind: input, shape index: {}]
  %s4 = inlined_call_operand.vmem [shape: f32[1,32], index: 4, kind: input, shape index: {}]
  %s5 = inlined_call_operand.vmem [shape: f32[128,32], index: 5, kind: output, shape index: {}]
  %s6 = sld [smem:[#allocation0]]
  $region30: #{tpu_custom_call.1} parent=0
    _
  %s8 = ssub.s32 1, %s6
  %s9 = scalar_select 0, %s8, %s6
  // Predicated region
  $region2: #{tpu_custom_call.1} parent=0 // pred_check
    _
  $region3: #{tpu_custom_call.1} parent=0 // pred_check_branch
    %11 = sbr.rel (0) target = $region5
  $region4: #{tpu_custom_call.1} parent=0 // pred_region
    _
  $region5: #{tpu_custom_call.1} parent=0 // pred_fallthru
    _
  // Predicated region
  $region6: #{tpu_custom_call.1} parent=0 // pred_check
    _
  $region7: #{tpu_custom_call.1} parent=0 // pred_check_branch
    %13 = sbr.rel (0) target = $region9
  $region8: #{tpu_custom_call.1} parent=0 // pred_region
    _
  $region9: #{tpu_custom_call.1} parent=0 // pred_fallthru
    _
  // Predicated region
  $region10: #{tpu_custom_call.1} parent=0 // pred_check
    _
  $region11: #{tpu_custom_call.1} parent=0 // pred_check_branch
    %15 = sbr.rel (0) target = $region13
  $region12: #{tpu_custom_call.1} parent=0 // pred_region
    _
  $region13: #{tpu_custom_call.1} parent=0 // pred_fallthru
    _
  // Predicated region
  $region14: #{tpu_custom_call.1} parent=0 // pred_check
    _
  $region15: #{tpu_custom_call.1} parent=0 // pred_check_branch
    %17 = sbr.rel (0) target = $region17
  $region16: #{tpu_custom_call.1} parent=0 // pred_region
    _
  $region17: #{tpu_custom_call.1} parent=0 // pred_fallthru
    _
  // Predicated region
  $region18: #{tpu_custom_call.1} parent=0 // pred_check
    _
  $region19: #{tpu_custom_call.1} parent=0 // pred_check_branch
    %19 = sbr.rel (0) target = $region21
  $region20: #{tpu_custom_call.1} parent=0 // pred_region
    _
  $region21: #{tpu_custom_call.1} parent=0 // pred_fallthru
    _
  %v21 = vld [vmem:[%s0] sm:$0xff]
  %v22 = vld [vmem:[%s0 + $0x8] sm:$0xff]
  %v23 = vld [vmem:[%s0 + $0x10] sm:$0xff]
  %v24 = vld [vmem:[%s0 + $0x18] sm:$0xff]
  %v25 = vld [vmem:[%s0 + $0x20] sm:$0xff]
  %v26 = vld [vmem:[%s0 + $0x28] sm:$0xff]
  %v27 = vld [vmem:[%s0 + $0x30] sm:$0xff]
  %v28 = vld [vmem:[%s0 + $0x38] sm:$0xff]
  %v29 = vld [vmem:[%s0 + $0x40] sm:$0xff]
  %v30 = vld [vmem:[%s0 + $0x48] sm:$0xff]
  %v31 = vld [vmem:[%s0 + $0x50] sm:$0xff]
  %v32 = vld [vmem:[%s0 + $0x58] sm:$0xff]
  %v33 = vld [vmem:[%s0 + $0x60] sm:$0xff]
  %v34 = vld [vmem:[%s0 + $0x68] sm:$0xff]
  %v35 = vld [vmem:[%s0 + $0x70] sm:$0xff]
  %v36 = vld [vmem:[%s0 + $0x78] sm:$0xff]
  %v37 = vpack.c.bf16 %v22, %v21
  %v38 = vpack.c.bf16 %v24, %v23
  %v39 = vpack.c.bf16 %v26, %v25
  %v40 = vpack.c.bf16 %v28, %v27
  %v41 = vpack.c.bf16 %v30, %v29
  %v42 = vpack.c.bf16 %v32, %v31
  %v43 = vpack.c.bf16 %v34, %v33
  %v44 = vpack.c.bf16 %v36, %v35
  %v45 = vld [vmem:[%s1] sm:$0xf]
  %v46 = vld [vmem:[%s1 + $0x4] sm:$0xf]
  %v47 = vld [vmem:[%s1 + $0x8] sm:$0xf]
  %v48 = vld [vmem:[%s1 + $0xc] sm:$0xf]
  %v49 = vld [vmem:[%s2] sm:$0x1]
  %v51 = vperm.slane %v49, 0
  %v57 = vunpack.c.l.b16 %v45
  %v58 = vunpack.c.l.b16 %v46
  %v59 = vunpack.c.l.b16 %v47
  %v60 = vunpack.c.l.b16 %v48
  %v61 = vpack.c.b16 %v58, %v57
  %v62 = vpack.c.b16 %v60, %v59
  %vm65 = vcmask 261120
  %v67 = vsel %vm65, %v37, 0
  %v70 = vsel %vm65, %v38, 0
  %v73 = vsel %vm65, %v39, 0
  %v76 = vsel %vm65, %v40, 0
  %v79 = vsel %vm65, %v41, 0
  %v82 = vsel %vm65, %v42, 0
  %v85 = vsel %vm65, %v43, 0
  %v88 = vsel %vm65, %v44, 0
  %90 = vmatpush.bf16.msra.mxu0 0
  %91 = vmatpush.bf16.msra.mxu0 0
  %92 = vmatpush.bf16.msra.mxu0 0
  %93 = vmatpush.bf16.msra.mxu0 0
  %94 = vmatpush.bf16.msra.mxu0 0
  %95 = vmatpush.bf16.msra.mxu0 0
  %96 = vmatpush.bf16.msra.mxu0 %v62
  %97 = vmatpush.bf16.msra.mxu0 %v61
  %98 = vmatmul.bf16.gmra.mxu0 %v67
  %v99 = vpop.f32.mrf.mxu0
  %v100 = vadd.f32 %v51, %v99
  %v101 = vpop.f32.mrf.mxu0
  %v102 = vadd.f32 %v51, %v101
  %103 = vmatmul.bf16.gmra.mxu0 %v70
  %v104 = vpop.f32.mrf.mxu0
  %v105 = vadd.f32 %v51, %v104
  %v106 = vpop.f32.mrf.mxu0
  %v107 = vadd.f32 %v51, %v106
  %108 = vmatmul.bf16.gmra.mxu0 %v73
  %v109 = vpop.f32.mrf.mxu0
  %v110 = vadd.f32 %v51, %v109
  %v111 = vpop.f32.mrf.mxu0
  %v112 = vadd.f32 %v51, %v111
  %113 = vmatmul.bf16.gmra.mxu0 %v76
  %v114 = vpop.f32.mrf.mxu0
  %v115 = vadd.f32 %v51, %v114
  %v116 = vpop.f32.mrf.mxu0
  %v117 = vadd.f32 %v51, %v116
  %118 = vmatmul.bf16.gmra.mxu0 %v79
  %v119 = vpop.f32.mrf.mxu0
  %v120 = vadd.f32 %v51, %v119
  %v121 = vpop.f32.mrf.mxu0
  %v122 = vadd.f32 %v51, %v121
  %123 = vmatmul.bf16.gmra.mxu0 %v82
  %v124 = vpop.f32.mrf.mxu0
  %v125 = vadd.f32 %v51, %v124
  %v126 = vpop.f32.mrf.mxu0
  %v127 = vadd.f32 %v51, %v126
  %128 = vmatmul.bf16.gmra.mxu0 %v85
  %v129 = vpop.f32.mrf.mxu0
  %v130 = vadd.f32 %v51, %v129
  %v131 = vpop.f32.mrf.mxu0
  %v132 = vadd.f32 %v51, %v131
  %133 = vmatmul.bf16.gmra.mxu0 %v88
  %v134 = vpop.f32.mrf.mxu0
  %v135 = vadd.f32 %v51, %v134
  %v136 = vpop.f32.mrf.mxu0
  %v137 = vadd.f32 %v51, %v136
  %138 = vdwg.mxu0
  %147 = vrot.lane.b32.xlu0 %v100, 120
  %v148 = vpop.permute.xlu0 %147
  %149 = vrot.lane.b32.xlu0 %v102, 120
  %v150 = vpop.permute.xlu0 %149
  %151 = vrot.lane.b32.xlu0 %v105, 120
  %v152 = vpop.permute.xlu0 %151
  %153 = vrot.lane.b32.xlu0 %v107, 120
  %v154 = vpop.permute.xlu0 %153
  %155 = vrot.lane.b32.xlu0 %v110, 120
  %v156 = vpop.permute.xlu0 %155
  %157 = vrot.lane.b32.xlu0 %v112, 120
  %v158 = vpop.permute.xlu0 %157
  %159 = vrot.lane.b32.xlu0 %v115, 120
  %v160 = vpop.permute.xlu0 %159
  %161 = vrot.lane.b32.xlu0 %v117, 120
  %v162 = vpop.permute.xlu0 %161
  %171 = vrot.lane.b32.xlu0 %v100, 112
  %v172 = vpop.permute.xlu0 %171
  %173 = vrot.lane.b32.xlu0 %v102, 112
  %v174 = vpop.permute.xlu0 %173
  %175 = vrot.lane.b32.xlu0 %v105, 112
  %v176 = vpop.permute.xlu0 %175
  %177 = vrot.lane.b32.xlu0 %v107, 112
  %v178 = vpop.permute.xlu0 %177
  %179 = vrot.lane.b32.xlu0 %v110, 112
  %v180 = vpop.permute.xlu0 %179
  %181 = vrot.lane.b32.xlu0 %v112, 112
  %v182 = vpop.permute.xlu0 %181
  %183 = vrot.lane.b32.xlu0 %v115, 112
  %v184 = vpop.permute.xlu0 %183
  %185 = vrot.lane.b32.xlu0 %v117, 112
  %v186 = vpop.permute.xlu0 %185
  %195 = vrot.lane.b32.xlu0 %v100, 104
  %v196 = vpop.permute.xlu0 %195
  %197 = vrot.lane.b32.xlu0 %v102, 104
  %v198 = vpop.permute.xlu0 %197
  %199 = vrot.lane.b32.xlu0 %v105, 104
  %v200 = vpop.permute.xlu0 %199
  %201 = vrot.lane.b32.xlu0 %v107, 104
  %v202 = vpop.permute.xlu0 %201
  %203 = vrot.lane.b32.xlu0 %v110, 104
  %v204 = vpop.permute.xlu0 %203
  %205 = vrot.lane.b32.xlu0 %v112, 104
  %v206 = vpop.permute.xlu0 %205
  %207 = vrot.lane.b32.xlu0 %v115, 104
  %v208 = vpop.permute.xlu0 %207
  %209 = vrot.lane.b32.xlu0 %v117, 104
  %v210 = vpop.permute.xlu0 %209
  %227 = vrot.lane.b32.xlu0 %v120, 120
  %v228 = vpop.permute.xlu0 %227
  %229 = vrot.lane.b32.xlu0 %v122, 120
  %v230 = vpop.permute.xlu0 %229
  %231 = vrot.lane.b32.xlu0 %v125, 120
  %v232 = vpop.permute.xlu0 %231
  %233 = vrot.lane.b32.xlu0 %v127, 120
  %v234 = vpop.permute.xlu0 %233
  %235 = vrot.lane.b32.xlu0 %v130, 120
  %v236 = vpop.permute.xlu0 %235
  %237 = vrot.lane.b32.xlu0 %v132, 120
  %v238 = vpop.permute.xlu0 %237
  %239 = vrot.lane.b32.xlu0 %v135, 120
  %v240 = vpop.permute.xlu0 %239
  %241 = vrot.lane.b32.xlu0 %v137, 120
  %v242 = vpop.permute.xlu0 %241
  %251 = vrot.lane.b32.xlu0 %v120, 112
  %v252 = vpop.permute.xlu0 %251
  %253 = vrot.lane.b32.xlu0 %v122, 112
  %v254 = vpop.permute.xlu0 %253
  %255 = vrot.lane.b32.xlu0 %v125, 112
  %v256 = vpop.permute.xlu0 %255
  %257 = vrot.lane.b32.xlu0 %v127, 112
  %v258 = vpop.permute.xlu0 %257
  %259 = vrot.lane.b32.xlu0 %v130, 112
  %v260 = vpop.permute.xlu0 %259
  %261 = vrot.lane.b32.xlu0 %v132, 112
  %v262 = vpop.permute.xlu0 %261
  %263 = vrot.lane.b32.xlu0 %v135, 112
  %v264 = vpop.permute.xlu0 %263
  %265 = vrot.lane.b32.xlu0 %v137, 112
  %v266 = vpop.permute.xlu0 %265
  %275 = vrot.lane.b32.xlu0 %v120, 104
  %v276 = vpop.permute.xlu0 %275
  %277 = vrot.lane.b32.xlu0 %v122, 104
  %v278 = vpop.permute.xlu0 %277
  %279 = vrot.lane.b32.xlu0 %v125, 104
  %v280 = vpop.permute.xlu0 %279
  %281 = vrot.lane.b32.xlu0 %v127, 104
  %v282 = vpop.permute.xlu0 %281
  %283 = vrot.lane.b32.xlu0 %v130, 104
  %v284 = vpop.permute.xlu0 %283
  %285 = vrot.lane.b32.xlu0 %v132, 104
  %v286 = vpop.permute.xlu0 %285
  %287 = vrot.lane.b32.xlu0 %v135, 104
  %v288 = vpop.permute.xlu0 %287
  %289 = vrot.lane.b32.xlu0 %v137, 104
  %v290 = vpop.permute.xlu0 %289
  %v299 = vpack.c.bf16 %v100, %v100
  %v300 = vpack.c.bf16 %v102, %v102
  %v301 = vpack.c.bf16 %v105, %v105
  %v302 = vpack.c.bf16 %v107, %v107
  %v303 = vpack.c.bf16 %v110, %v110
  %v304 = vpack.c.bf16 %v112, %v112
  %v305 = vpack.c.bf16 %v115, %v115
  %v306 = vpack.c.bf16 %v117, %v117
  %v307 = vpack.c.bf16 %v148, %v148
  %v308 = vpack.c.bf16 %v150, %v150
  %v309 = vpack.c.bf16 %v152, %v152
  %v310 = vpack.c.bf16 %v154, %v154
  %v311 = vpack.c.bf16 %v156, %v156
  %v312 = vpack.c.bf16 %v158, %v158
  %v313 = vpack.c.bf16 %v160, %v160
  %v314 = vpack.c.bf16 %v162, %v162
  %v315 = vpack.c.bf16 %v172, %v172
  %v316 = vpack.c.bf16 %v174, %v174
  %v317 = vpack.c.bf16 %v176, %v176
  %v318 = vpack.c.bf16 %v178, %v178
  %v319 = vpack.c.bf16 %v180, %v180
  %v320 = vpack.c.bf16 %v182, %v182
  %v321 = vpack.c.bf16 %v184, %v184
  %v322 = vpack.c.bf16 %v186, %v186
  %v323 = vpack.c.bf16 %v196, %v196
  %v324 = vpack.c.bf16 %v198, %v198
  %v325 = vpack.c.bf16 %v200, %v200
  %v326 = vpack.c.bf16 %v202, %v202
  %v327 = vpack.c.bf16 %v204, %v204
  %v328 = vpack.c.bf16 %v206, %v206
  %v329 = vpack.c.bf16 %v208, %v208
  %v330 = vpack.c.bf16 %v210, %v210
  %v331 = vpack.c.bf16 %v120, %v120
  %v332 = vpack.c.bf16 %v122, %v122
  %v333 = vpack.c.bf16 %v125, %v125
  %v334 = vpack.c.bf16 %v127, %v127
  %v335 = vpack.c.bf16 %v130, %v130
  %v336 = vpack.c.bf16 %v132, %v132
  %v337 = vpack.c.bf16 %v135, %v135
  %v338 = vpack.c.bf16 %v137, %v137
  %v339 = vpack.c.bf16 %v228, %v228
  %v340 = vpack.c.bf16 %v230, %v230
  %v341 = vpack.c.bf16 %v232, %v232
  %v342 = vpack.c.bf16 %v234, %v234
  %v343 = vpack.c.bf16 %v236, %v236
  %v344 = vpack.c.bf16 %v238, %v238
  %v345 = vpack.c.bf16 %v240, %v240
  %v346 = vpack.c.bf16 %v242, %v242
  %v347 = vpack.c.bf16 %v252, %v252
  %v348 = vpack.c.bf16 %v254, %v254
  %v349 = vpack.c.bf16 %v256, %v256
  %v350 = vpack.c.bf16 %v258, %v258
  %v351 = vpack.c.bf16 %v260, %v260
  %v352 = vpack.c.bf16 %v262, %v262
  %v353 = vpack.c.bf16 %v264, %v264
  %v354 = vpack.c.bf16 %v266, %v266
  %v355 = vpack.c.bf16 %v276, %v276
  %v356 = vpack.c.bf16 %v278, %v278
  %v357 = vpack.c.bf16 %v280, %v280
  %v358 = vpack.c.bf16 %v282, %v282
  %v359 = vpack.c.bf16 %v284, %v284
  %v360 = vpack.c.bf16 %v286, %v286
  %v361 = vpack.c.bf16 %v288, %v288
  %v362 = vpack.c.bf16 %v290, %v290
  %v371 = vunpack.c.l.b16 %v299
  %v372 = vunpack.c.l.b16 %v300
  %v373 = vunpack.c.l.b16 %v301
  %v374 = vunpack.c.l.b16 %v302
  %v375 = vunpack.c.l.b16 %v303
  %v376 = vunpack.c.l.b16 %v304
  %v377 = vunpack.c.l.b16 %v305
  %v378 = vunpack.c.l.b16 %v306
  %v379 = vpack.c.b16 %v372, %v371
  %v380 = vpack.c.b16 %v374, %v373
  %v381 = vpack.c.b16 %v376, %v375
  %v382 = vpack.c.b16 %v378, %v377
  %383 = vrot.lane.b32.xlu0 %v379, 96
  %v384 = vpop.permute.xlu0 %383
  %385 = vrot.lane.b32.xlu0 %v380, 96
  %v386 = vpop.permute.xlu0 %385
  %387 = vrot.lane.b32.xlu0 %v381, 96
  %v388 = vpop.permute.xlu0 %387
  %389 = vrot.lane.b32.xlu0 %v382, 96
  %v390 = vpop.permute.xlu0 %389
  %vm391 = vcmask 64512
  %v393 = vsel %vm391, %v379, 0
  %v396 = vsel %vm391, %v380, 0
  %v399 = vsel %vm391, %v381, 0
  %v402 = vsel %vm391, %v382, 0
  %v405 = vsel %vm391, %v384, 0
  %v408 = vsel %vm391, %v386, 0
  %v411 = vsel %vm391, %v388, 0
  %v414 = vsel %vm391, %v390, 0
  %416 = vmatpush.bf16.xpose.msra.mxu0 0
  %417 = vmatpush.bf16.xpose.msra.mxu0 0
  %418 = vmatpush.bf16.xpose.msra.mxu0 0
  %419 = vmatpush.bf16.xpose.msra.mxu0 0
  %420 = vmatpush.bf16.xpose.msra.mxu0 %v414
  %421 = vmatpush.bf16.xpose.msra.mxu0 %v411
  %422 = vmatpush.bf16.xpose.msra.mxu0 %v408
  %423 = vmatpush.bf16.xpose.msra.mxu0 %v405
  %424 = vmatmul.bf16.gmra.mxu0 %v393
  %v425 = vpop.f32.mrf.mxu0
  %v426 = vadd.f32 0.0, %v425
  %v427 = vpop.f32.mrf.mxu0
  %v428 = vadd.f32 0.0, %v427
  %429 = vmatmul.bf16.gmra.mxu0 %v396
  %v430 = vpop.f32.mrf.mxu0
  %v431 = vadd.f32 0.0, %v430
  %v432 = vpop.f32.mrf.mxu0
  %v433 = vadd.f32 0.0, %v432
  %434 = vmatmul.bf16.gmra.mxu0 %v399
  %v435 = vpop.f32.mrf.mxu0
  %v436 = vadd.f32 0.0, %v435
  %v437 = vpop.f32.mrf.mxu0
  %v438 = vadd.f32 0.0, %v437
  %439 = vmatmul.bf16.gmra.mxu0 %v402
  %v440 = vpop.f32.mrf.mxu0
  %v441 = vadd.f32 0.0, %v440
  %v442 = vpop.f32.mrf.mxu0
  %v443 = vadd.f32 0.0, %v442
  %444 = vdwg.mxu0
  %v453 = vunpack.c.l.b16 %v307
  %v454 = vunpack.c.l.b16 %v308
  %v455 = vunpack.c.l.b16 %v309
  %v456 = vunpack.c.l.b16 %v310
  %v457 = vunpack.c.l.b16 %v311
  %v458 = vunpack.c.l.b16 %v312
  %v459 = vunpack.c.l.b16 %v313
  %v460 = vunpack.c.l.b16 %v314
  %v461 = vpack.c.b16 %v454, %v453
  %v462 = vpack.c.b16 %v456, %v455
  %v463 = vpack.c.b16 %v458, %v457
  %v464 = vpack.c.b16 %v460, %v459
  %465 = vrot.lane.b32.xlu0 %v461, 96
  %v466 = vpop.permute.xlu0 %465
  %467 = vrot.lane.b32.xlu0 %v462, 96
  %v468 = vpop.permute.xlu0 %467
  %469 = vrot.lane.b32.xlu0 %v463, 96
  %v470 = vpop.permute.xlu0 %469
  %471 = vrot.lane.b32.xlu0 %v464, 96
  %v472 = vpop.permute.xlu0 %471
  %v474 = vsel %vm391, %v461, 0
  %v477 = vsel %vm391, %v462, 0
  %v480 = vsel %vm391, %v463, 0
  %v483 = vsel %vm391, %v464, 0
  %v486 = vsel %vm391, %v466, 0
  %v489 = vsel %vm391, %v468, 0
  %v492 = vsel %vm391, %v470, 0
  %v495 = vsel %vm391, %v472, 0
  %497 = vmatpush.bf16.xpose.msra.mxu0 0
  %498 = vmatpush.bf16.xpose.msra.mxu0 0
  %499 = vmatpush.bf16.xpose.msra.mxu0 0
  %500 = vmatpush.bf16.xpose.msra.mxu0 0
  %501 = vmatpush.bf16.xpose.msra.mxu0 %v495
  %502 = vmatpush.bf16.xpose.msra.mxu0 %v492
  %503 = vmatpush.bf16.xpose.msra.mxu0 %v489
  %504 = vmatpush.bf16.xpose.msra.mxu0 %v486
  %505 = vmatmul.bf16.gmra.mxu0 %v474
  %v506 = vpop.f32.mrf.mxu0
  %v507 = vadd.f32 0.0, %v506
  %v508 = vpop.f32.mrf.mxu0
  %v509 = vadd.f32 0.0, %v508
  %510 = vmatmul.bf16.gmra.mxu0 %v477
  %v511 = vpop.f32.mrf.mxu0
  %v512 = vadd.f32 0.0, %v511
  %v513 = vpop.f32.mrf.mxu0
  %v514 = vadd.f32 0.0, %v513
  %515 = vmatmul.bf16.gmra.mxu0 %v480
  %v516 = vpop.f32.mrf.mxu0
  %v517 = vadd.f32 0.0, %v516
  %v518 = vpop.f32.mrf.mxu0
  %v519 = vadd.f32 0.0, %v518
  %520 = vmatmul.bf16.gmra.mxu0 %v483
  %v521 = vpop.f32.mrf.mxu0
  %v522 = vadd.f32 0.0, %v521
  %v523 = vpop.f32.mrf.mxu0
  %v524 = vadd.f32 0.0, %v523
  %525 = vdwg.mxu0
  %v534 = vunpack.c.l.b16 %v315
  %v535 = vunpack.c.l.b16 %v316
  %v536 = vunpack.c.l.b16 %v317
  %v537 = vunpack.c.l.b16 %v318
  %v538 = vunpack.c.l.b16 %v319
  %v539 = vunpack.c.l.b16 %v320
  %v540 = vunpack.c.l.b16 %v321
  %v541 = vunpack.c.l.b16 %v322
  %v542 = vpack.c.b16 %v535, %v534
  %v543 = vpack.c.b16 %v537, %v536
  %v544 = vpack.c.b16 %v539, %v538
  %v545 = vpack.c.b16 %v541, %v540
  %546 = vrot.lane.b32.xlu0 %v542, 96
  %v547 = vpop.permute.xlu0 %546
  %548 = vrot.lane.b32.xlu0 %v543, 96
  %v549 = vpop.permute.xlu0 %548
  %550 = vrot.lane.b32.xlu0 %v544, 96
  %v551 = vpop.permute.xlu0 %550
  %552 = vrot.lane.b32.xlu0 %v545, 96
  %v553 = vpop.permute.xlu0 %552
  %v555 = vsel %vm391, %v542, 0
  %v558 = vsel %vm391, %v543, 0
  %v561 = vsel %vm391, %v544, 0
  %v564 = vsel %vm391, %v545, 0
  %v567 = vsel %vm391, %v547, 0
  %v570 = vsel %vm391, %v549, 0
  %v573 = vsel %vm391, %v551, 0
  %v576 = vsel %vm391, %v553, 0
  %578 = vmatpush.bf16.xpose.msra.mxu0 0
  %579 = vmatpush.bf16.xpose.msra.mxu0 0
  %580 = vmatpush.bf16.xpose.msra.mxu0 0
  %581 = vmatpush.bf16.xpose.msra.mxu0 0
  %582 = vmatpush.bf16.xpose.msra.mxu0 %v576
  %583 = vmatpush.bf16.xpose.msra.mxu0 %v573
  %584 = vmatpush.bf16.xpose.msra.mxu0 %v570
  %585 = vmatpush.bf16.xpose.msra.mxu0 %v567
  %586 = vmatmul.bf16.gmra.mxu0 %v555
  %v587 = vpop.f32.mrf.mxu0
  %v588 = vadd.f32 0.0, %v587
  %v589 = vpop.f32.mrf.mxu0
  %v590 = vadd.f32 0.0, %v589
  %591 = vmatmul.bf16.gmra.mxu0 %v558
  %v592 = vpop.f32.mrf.mxu0
  %v593 = vadd.f32 0.0, %v592
  %v594 = vpop.f32.mrf.mxu0
  %v595 = vadd.f32 0.0, %v594
  %596 = vmatmul.bf16.gmra.mxu0 %v561
  %v597 = vpop.f32.mrf.mxu0
  %v598 = vadd.f32 0.0, %v597
  %v599 = vpop.f32.mrf.mxu0
  %v600 = vadd.f32 0.0, %v599
  %601 = vmatmul.bf16.gmra.mxu0 %v564
  %v602 = vpop.f32.mrf.mxu0
  %v603 = vadd.f32 0.0, %v602
  %v604 = vpop.f32.mrf.mxu0
  %v605 = vadd.f32 0.0, %v604
  %606 = vdwg.mxu0
  %v615 = vunpack.c.l.b16 %v323
  %v616 = vunpack.c.l.b16 %v324
  %v617 = vunpack.c.l.b16 %v325
  %v618 = vunpack.c.l.b16 %v326
  %v619 = vunpack.c.l.b16 %v327
  %v620 = vunpack.c.l.b16 %v328
  %v621 = vunpack.c.l.b16 %v329
  %v622 = vunpack.c.l.b16 %v330
  %v623 = vpack.c.b16 %v616, %v615
  %v624 = vpack.c.b16 %v618, %v617
  %v625 = vpack.c.b16 %v620, %v619
  %v626 = vpack.c.b16 %v622, %v621
  %627 = vrot.lane.b32.xlu0 %v623, 96
  %v628 = vpop.permute.xlu0 %627
  %629 = vrot.lane.b32.xlu0 %v624, 96
  %v630 = vpop.permute.xlu0 %629
  %631 = vrot.lane.b32.xlu0 %v625, 96
  %v632 = vpop.permute.xlu0 %631
  %633 = vrot.lane.b32.xlu0 %v626, 96
  %v634 = vpop.permute.xlu0 %633
  %v636 = vsel %vm391, %v623, 0
  %v639 = vsel %vm391, %v624, 0
  %v642 = vsel %vm391, %v625, 0
  %v645 = vsel %vm391, %v626, 0
  %v648 = vsel %vm391, %v628, 0
  %v651 = vsel %vm391, %v630, 0
  %v654 = vsel %vm391, %v632, 0
  %v657 = vsel %vm391, %v634, 0
  %659 = vmatpush.bf16.xpose.msra.mxu0 0
  %660 = vmatpush.bf16.xpose.msra.mxu0 0
  %661 = vmatpush.bf16.xpose.msra.mxu0 0
  %662 = vmatpush.bf16.xpose.msra.mxu0 0
  %663 = vmatpush.bf16.xpose.msra.mxu0 %v657
  %664 = vmatpush.bf16.xpose.msra.mxu0 %v654
  %665 = vmatpush.bf16.xpose.msra.mxu0 %v651
  %666 = vmatpush.bf16.xpose.msra.mxu0 %v648
  %667 = vmatmul.bf16.gmra.mxu0 %v636
  %v668 = vpop.f32.mrf.mxu0
  %v669 = vadd.f32 0.0, %v668
  %v670 = vpop.f32.mrf.mxu0
  %v671 = vadd.f32 0.0, %v670
  %672 = vmatmul.bf16.gmra.mxu0 %v639
  %v673 = vpop.f32.mrf.mxu0
  %v674 = vadd.f32 0.0, %v673
  %v675 = vpop.f32.mrf.mxu0
  %v676 = vadd.f32 0.0, %v675
  %677 = vmatmul.bf16.gmra.mxu0 %v642
  %v678 = vpop.f32.mrf.mxu0
  %v679 = vadd.f32 0.0, %v678
  %v680 = vpop.f32.mrf.mxu0
  %v681 = vadd.f32 0.0, %v680
  %682 = vmatmul.bf16.gmra.mxu0 %v645
  %v683 = vpop.f32.mrf.mxu0
  %v684 = vadd.f32 0.0, %v683
  %v685 = vpop.f32.mrf.mxu0
  %v686 = vadd.f32 0.0, %v685
  %687 = vdwg.mxu0
  %v696 = vunpack.c.l.b16 %v331
  %v697 = vunpack.c.l.b16 %v332
  %v698 = vunpack.c.l.b16 %v333
  %v699 = vunpack.c.l.b16 %v334
  %v700 = vunpack.c.l.b16 %v335
  %v701 = vunpack.c.l.b16 %v336
  %v702 = vunpack.c.l.b16 %v337
  %v703 = vunpack.c.l.b16 %v338
  %v704 = vpack.c.b16 %v697, %v696
  %v705 = vpack.c.b16 %v699, %v698
  %v706 = vpack.c.b16 %v701, %v700
  %v707 = vpack.c.b16 %v703, %v702
  %708 = vrot.lane.b32.xlu0 %v704, 96
  %v709 = vpop.permute.xlu0 %708
  %710 = vrot.lane.b32.xlu0 %v705, 96
  %v711 = vpop.permute.xlu0 %710
  %712 = vrot.lane.b32.xlu0 %v706, 96
  %v713 = vpop.permute.xlu0 %712
  %714 = vrot.lane.b32.xlu0 %v707, 96
  %v715 = vpop.permute.xlu0 %714
  %v717 = vsel %vm391, %v704, 0
  %v720 = vsel %vm391, %v705, 0
  %v723 = vsel %vm391, %v706, 0
  %v726 = vsel %vm391, %v707, 0
  %v729 = vsel %vm391, %v709, 0
  %v732 = vsel %vm391, %v711, 0
  %v735 = vsel %vm391, %v713, 0
  %v738 = vsel %vm391, %v715, 0
  %740 = vmatpush.bf16.xpose.msra.mxu0 0
  %741 = vmatpush.bf16.xpose.msra.mxu0 0
  %742 = vmatpush.bf16.xpose.msra.mxu0 0
  %743 = vmatpush.bf16.xpose.msra.mxu0 0
  %744 = vmatpush.bf16.xpose.msra.mxu0 %v738
  %745 = vmatpush.bf16.xpose.msra.mxu0 %v735
  %746 = vmatpush.bf16.xpose.msra.mxu0 %v732
  %747 = vmatpush.bf16.xpose.msra.mxu0 %v729
  %748 = vmatmul.bf16.gmra.mxu0 %v717
  %v749 = vpop.f32.mrf.mxu0
  %v750 = vadd.f32 0.0, %v749
  %v751 = vpop.f32.mrf.mxu0
  %v752 = vadd.f32 0.0, %v751
  %753 = vmatmul.bf16.gmra.mxu0 %v720
  %v754 = vpop.f32.mrf.mxu0
  %v755 = vadd.f32 0.0, %v754
  %v756 = vpop.f32.mrf.mxu0
  %v757 = vadd.f32 0.0, %v756
  %758 = vmatmul.bf16.gmra.mxu0 %v723
  %v759 = vpop.f32.mrf.mxu0
  %v760 = vadd.f32 0.0, %v759
  %v761 = vpop.f32.mrf.mxu0
  %v762 = vadd.f32 0.0, %v761
  %763 = vmatmul.bf16.gmra.mxu0 %v726
  %v764 = vpop.f32.mrf.mxu0
  %v765 = vadd.f32 0.0, %v764
  %v766 = vpop.f32.mrf.mxu0
  %v767 = vadd.f32 0.0, %v766
  %768 = vdwg.mxu0
  %v777 = vunpack.c.l.b16 %v339
  %v778 = vunpack.c.l.b16 %v340
  %v779 = vunpack.c.l.b16 %v341
  %v780 = vunpack.c.l.b16 %v342
  %v781 = vunpack.c.l.b16 %v343
  %v782 = vunpack.c.l.b16 %v344
  %v783 = vunpack.c.l.b16 %v345
  %v784 = vunpack.c.l.b16 %v346
  %v785 = vpack.c.b16 %v778, %v777
  %v786 = vpack.c.b16 %v780, %v779
  %v787 = vpack.c.b16 %v782, %v781
  %v788 = vpack.c.b16 %v784, %v783
  %789 = vrot.lane.b32.xlu0 %v785, 96
  %v790 = vpop.permute.xlu0 %789
  %791 = vrot.lane.b32.xlu0 %v786, 96
  %v792 = vpop.permute.xlu0 %791
  %793 = vrot.lane.b32.xlu0 %v787, 96
  %v794 = vpop.permute.xlu0 %793
  %795 = vrot.lane.b32.xlu0 %v788, 96
  %v796 = vpop.permute.xlu0 %795
  %v798 = vsel %vm391, %v785, 0
  %v801 = vsel %vm391, %v786, 0
  %v804 = vsel %vm391, %v787, 0
  %v807 = vsel %vm391, %v788, 0
  %v810 = vsel %vm391, %v790, 0
  %v813 = vsel %vm391, %v792, 0
  %v816 = vsel %vm391, %v794, 0
  %v819 = vsel %vm391, %v796, 0
  %821 = vmatpush.bf16.xpose.msra.mxu0 0
  %822 = vmatpush.bf16.xpose.msra.mxu0 0
  %823 = vmatpush.bf16.xpose.msra.mxu0 0
  %824 = vmatpush.bf16.xpose.msra.mxu0 0
  %825 = vmatpush.bf16.xpose.msra.mxu0 %v819
  %826 = vmatpush.bf16.xpose.msra.mxu0 %v816
  %827 = vmatpush.bf16.xpose.msra.mxu0 %v813
  %828 = vmatpush.bf16.xpose.msra.mxu0 %v810
  %829 = vmatmul.bf16.gmra.mxu0 %v798
  %v830 = vpop.f32.mrf.mxu0
  %v831 = vadd.f32 0.0, %v830
  %v832 = vpop.f32.mrf.mxu0
  %v833 = vadd.f32 0.0, %v832
  %834 = vmatmul.bf16.gmra.mxu0 %v801
  %v835 = vpop.f32.mrf.mxu0
  %v836 = vadd.f32 0.0, %v835
  %v837 = vpop.f32.mrf.mxu0
  %v838 = vadd.f32 0.0, %v837
  %839 = vmatmul.bf16.gmra.mxu0 %v804
  %v840 = vpop.f32.mrf.mxu0
  %v841 = vadd.f32 0.0, %v840
  %v842 = vpop.f32.mrf.mxu0
  %v843 = vadd.f32 0.0, %v842
  %844 = vmatmul.bf16.gmra.mxu0 %v807
  %v845 = vpop.f32.mrf.mxu0
  %v846 = vadd.f32 0.0, %v845
  %v847 = vpop.f32.mrf.mxu0
  %v848 = vadd.f32 0.0, %v847
  %849 = vdwg.mxu0
  %v858 = vunpack.c.l.b16 %v347
  %v859 = vunpack.c.l.b16 %v348
  %v860 = vunpack.c.l.b16 %v349
  %v861 = vunpack.c.l.b16 %v350
  %v862 = vunpack.c.l.b16 %v351
  %v863 = vunpack.c.l.b16 %v352
  %v864 = vunpack.c.l.b16 %v353
  %v865 = vunpack.c.l.b16 %v354
  %v866 = vpack.c.b16 %v859, %v858
  %v867 = vpack.c.b16 %v861, %v860
  %v868 = vpack.c.b16 %v863, %v862
  %v869 = vpack.c.b16 %v865, %v864
  %870 = vrot.lane.b32.xlu0 %v866, 96
  %v871 = vpop.permute.xlu0 %870
  %872 = vrot.lane.b32.xlu0 %v867, 96
  %v873 = vpop.permute.xlu0 %872
  %874 = vrot.lane.b32.xlu0 %v868, 96
  %v875 = vpop.permute.xlu0 %874
  %876 = vrot.lane.b32.xlu0 %v869, 96
  %v877 = vpop.permute.xlu0 %876
  %v879 = vsel %vm391, %v866, 0
  %v882 = vsel %vm391, %v867, 0
  %v885 = vsel %vm391, %v868, 0
  %v888 = vsel %vm391, %v869, 0
  %v891 = vsel %vm391, %v871, 0
  %v894 = vsel %vm391, %v873, 0
  %v897 = vsel %vm391, %v875, 0
  %v900 = vsel %vm391, %v877, 0
  %902 = vmatpush.bf16.xpose.msra.mxu0 0
  %903 = vmatpush.bf16.xpose.msra.mxu0 0
  %904 = vmatpush.bf16.xpose.msra.mxu0 0
  %905 = vmatpush.bf16.xpose.msra.mxu0 0
  %906 = vmatpush.bf16.xpose.msra.mxu0 %v900
  %907 = vmatpush.bf16.xpose.msra.mxu0 %v897
  %908 = vmatpush.bf16.xpose.msra.mxu0 %v894
  %909 = vmatpush.bf16.xpose.msra.mxu0 %v891
  %910 = vmatmul.bf16.gmra.mxu0 %v879
  %v911 = vpop.f32.mrf.mxu0
  %v912 = vadd.f32 0.0, %v911
  %v913 = vpop.f32.mrf.mxu0
  %v914 = vadd.f32 0.0, %v913
  %915 = vmatmul.bf16.gmra.mxu0 %v882
  %v916 = vpop.f32.mrf.mxu0
  %v917 = vadd.f32 0.0, %v916
  %v918 = vpop.f32.mrf.mxu0
  %v919 = vadd.f32 0.0, %v918
  %920 = vmatmul.bf16.gmra.mxu0 %v885
  %v921 = vpop.f32.mrf.mxu0
  %v922 = vadd.f32 0.0, %v921
  %v923 = vpop.f32.mrf.mxu0
  %v924 = vadd.f32 0.0, %v923
  %925 = vmatmul.bf16.gmra.mxu0 %v888
  %v926 = vpop.f32.mrf.mxu0
  %v927 = vadd.f32 0.0, %v926
  %v928 = vpop.f32.mrf.mxu0
  %v929 = vadd.f32 0.0, %v928
  %930 = vdwg.mxu0
  %v939 = vunpack.c.l.b16 %v355
  %v940 = vunpack.c.l.b16 %v356
  %v941 = vunpack.c.l.b16 %v357
  %v942 = vunpack.c.l.b16 %v358
  %v943 = vunpack.c.l.b16 %v359
  %v944 = vunpack.c.l.b16 %v360
  %v945 = vunpack.c.l.b16 %v361
  %v946 = vunpack.c.l.b16 %v362
  %v947 = vpack.c.b16 %v940, %v939
  %v948 = vpack.c.b16 %v942, %v941
  %v949 = vpack.c.b16 %v944, %v943
  %v950 = vpack.c.b16 %v946, %v945
  %951 = vrot.lane.b32.xlu0 %v947, 96
  %v952 = vpop.permute.xlu0 %951
  %953 = vrot.lane.b32.xlu0 %v948, 96
  %v954 = vpop.permute.xlu0 %953
  %955 = vrot.lane.b32.xlu0 %v949, 96
  %v956 = vpop.permute.xlu0 %955
  %957 = vrot.lane.b32.xlu0 %v950, 96
  %v958 = vpop.permute.xlu0 %957
  %v960 = vsel %vm391, %v947, 0
  %v963 = vsel %vm391, %v948, 0
  %v966 = vsel %vm391, %v949, 0
  %v969 = vsel %vm391, %v950, 0
  %v972 = vsel %vm391, %v952, 0
  %v975 = vsel %vm391, %v954, 0
  %v978 = vsel %vm391, %v956, 0
  %v981 = vsel %vm391, %v958, 0
  %983 = vmatpush.bf16.xpose.msra.mxu0 0
  %984 = vmatpush.bf16.xpose.msra.mxu0 0
  %985 = vmatpush.bf16.xpose.msra.mxu0 0
  %986 = vmatpush.bf16.xpose.msra.mxu0 0
  %987 = vmatpush.bf16.xpose.msra.mxu0 %v981
  %988 = vmatpush.bf16.xpose.msra.mxu0 %v978
  %989 = vmatpush.bf16.xpose.msra.mxu0 %v975
  %990 = vmatpush.bf16.xpose.msra.mxu0 %v972
  %991 = vmatmul.bf16.gmra.mxu0 %v960
  %v992 = vpop.f32.mrf.mxu0
  %v993 = vadd.f32 0.0, %v992
  %v994 = vpop.f32.mrf.mxu0
  %v995 = vadd.f32 0.0, %v994
  %996 = vmatmul.bf16.gmra.mxu0 %v963
  %v997 = vpop.f32.mrf.mxu0
  %v998 = vadd.f32 0.0, %v997
  %v999 = vpop.f32.mrf.mxu0
  %v1000 = vadd.f32 0.0, %v999
  %1001 = vmatmul.bf16.gmra.mxu0 %v966
  %v1002 = vpop.f32.mrf.mxu0
  %v1003 = vadd.f32 0.0, %v1002
  %v1004 = vpop.f32.mrf.mxu0
  %v1005 = vadd.f32 0.0, %v1004
  %1006 = vmatmul.bf16.gmra.mxu0 %v969
  %v1007 = vpop.f32.mrf.mxu0
  %v1008 = vadd.f32 0.0, %v1007
  %v1009 = vpop.f32.mrf.mxu0
  %v1010 = vadd.f32 0.0, %v1009
  %1011 = vdwg.mxu0
  %vm1012 = vcmask 523264
  %v1013 = vsel %vm1012, %v426, -inf
  %1014 = vmax.xlane.f32.xlu0 %v1013
  %v1015 = vpop.xlane.xlu0 %1014
  %v1016 = vsel %vm1012, %v428, -inf
  %1017 = vmax.xlane.f32.xlu0 %v1016
  %v1018 = vpop.xlane.xlu0 %1017
  %v1019 = vsel %vm1012, %v431, -inf
  %1020 = vmax.xlane.f32.xlu0 %v1019
  %v1021 = vpop.xlane.xlu0 %1020
  %v1022 = vsel %vm1012, %v433, -inf
  %1023 = vmax.xlane.f32.xlu0 %v1022
  %v1024 = vpop.xlane.xlu0 %1023
  %v1025 = vsel %vm1012, %v436, -inf
  %1026 = vmax.xlane.f32.xlu0 %v1025
  %v1027 = vpop.xlane.xlu0 %1026
  %v1028 = vsel %vm1012, %v438, -inf
  %1029 = vmax.xlane.f32.xlu0 %v1028
  %v1030 = vpop.xlane.xlu0 %1029
  %v1031 = vsel %vm1012, %v441, -inf
  %1032 = vmax.xlane.f32.xlu0 %v1031
  %v1033 = vpop.xlane.xlu0 %1032
  %v1034 = vsel %vm1012, %v443, -inf
  %1035 = vmax.xlane.f32.xlu0 %v1034
  %v1036 = vpop.xlane.xlu0 %1035
  %v1037 = vsel %vm1012, %v507, -inf
  %1038 = vmax.xlane.f32.xlu0 %v1037
  %v1039 = vpop.xlane.xlu0 %1038
  %v1040 = vsel %vm1012, %v509, -inf
  %1041 = vmax.xlane.f32.xlu0 %v1040
  %v1042 = vpop.xlane.xlu0 %1041
  %v1043 = vsel %vm1012, %v512, -inf
  %1044 = vmax.xlane.f32.xlu0 %v1043
  %v1045 = vpop.xlane.xlu0 %1044
  %v1046 = vsel %vm1012, %v514, -inf
  %1047 = vmax.xlane.f32.xlu0 %v1046
  %v1048 = vpop.xlane.xlu0 %1047
  %v1049 = vsel %vm1012, %v517, -inf
  %1050 = vmax.xlane.f32.xlu0 %v1049
  %v1051 = vpop.xlane.xlu0 %1050
  %v1052 = vsel %vm1012, %v519, -inf
  %1053 = vmax.xlane.f32.xlu0 %v1052
  %v1054 = vpop.xlane.xlu0 %1053
  %v1055 = vsel %vm1012, %v522, -inf
  %1056 = vmax.xlane.f32.xlu0 %v1055
  %v1057 = vpop.xlane.xlu0 %1056
  %v1058 = vsel %vm1012, %v524, -inf
  %1059 = vmax.xlane.f32.xlu0 %v1058
  %v1060 = vpop.xlane.xlu0 %1059
  %v1061 = vsel %vm1012, %v588, -inf
  %1062 = vmax.xlane.f32.xlu0 %v1061
  %v1063 = vpop.xlane.xlu0 %1062
  %v1064 = vsel %vm1012, %v590, -inf
  %1065 = vmax.xlane.f32.xlu0 %v1064
  %v1066 = vpop.xlane.xlu0 %1065
  %v1067 = vsel %vm1012, %v593, -inf
  %1068 = vmax.xlane.f32.xlu0 %v1067
  %v1069 = vpop.xlane.xlu0 %1068
  %v1070 = vsel %vm1012, %v595, -inf
  %1071 = vmax.xlane.f32.xlu0 %v1070
  %v1072 = vpop.xlane.xlu0 %1071
  %v1073 = vsel %vm1012, %v598, -inf
  %1074 = vmax.xlane.f32.xlu0 %v1073
  %v1075 = vpop.xlane.xlu0 %1074
  %v1076 = vsel %vm1012, %v600, -inf
  %1077 = vmax.xlane.f32.xlu0 %v1076
  %v1078 = vpop.xlane.xlu0 %1077
  %v1079 = vsel %vm1012, %v603, -inf
  %1080 = vmax.xlane.f32.xlu0 %v1079
  %v1081 = vpop.xlane.xlu0 %1080
  %v1082 = vsel %vm1012, %v605, -inf
  %1083 = vmax.xlane.f32.xlu0 %v1082
  %v1084 = vpop.xlane.xlu0 %1083
  %v1085 = vsel %vm1012, %v669, -inf
  %1086 = vmax.xlane.f32.xlu0 %v1085
  %v1087 = vpop.xlane.xlu0 %1086
  %v1088 = vsel %vm1012, %v671, -inf
  %1089 = vmax.xlane.f32.xlu0 %v1088
  %v1090 = vpop.xlane.xlu0 %1089
  %v1091 = vsel %vm1012, %v674, -inf
  %1092 = vmax.xlane.f32.xlu0 %v1091
  %v1093 = vpop.xlane.xlu0 %1092
  %v1094 = vsel %vm1012, %v676, -inf
  %1095 = vmax.xlane.f32.xlu0 %v1094
  %v1096 = vpop.xlane.xlu0 %1095
  %v1097 = vsel %vm1012, %v679, -inf
  %1098 = vmax.xlane.f32.xlu0 %v1097
  %v1099 = vpop.xlane.xlu0 %1098
  %v1100 = vsel %vm1012, %v681, -inf
  %1101 = vmax.xlane.f32.xlu0 %v1100
  %v1102 = vpop.xlane.xlu0 %1101
  %v1103 = vsel %vm1012, %v684, -inf
  %1104 = vmax.xlane.f32.xlu0 %v1103
  %v1105 = vpop.xlane.xlu0 %1104
  %v1106 = vsel %vm1012, %v686, -inf
  %1107 = vmax.xlane.f32.xlu0 %v1106
  %v1108 = vpop.xlane.xlu0 %1107
  %v1109 = vsel %vm1012, %v750, -inf
  %1110 = vmax.xlane.f32.xlu0 %v1109
  %v1111 = vpop.xlane.xlu0 %1110
  %v1112 = vsel %vm1012, %v752, -inf
  %1113 = vmax.xlane.f32.xlu0 %v1112
  %v1114 = vpop.xlane.xlu0 %1113
  %v1115 = vsel %vm1012, %v755, -inf
  %1116 = vmax.xlane.f32.xlu0 %v1115
  %v1117 = vpop.xlane.xlu0 %1116
  %v1118 = vsel %vm1012, %v757, -inf
  %1119 = vmax.xlane.f32.xlu0 %v1118
  %v1120 = vpop.xlane.xlu0 %1119
  %v1121 = vsel %vm1012, %v760, -inf
  %1122 = vmax.xlane.f32.xlu0 %v1121
  %v1123 = vpop.xlane.xlu0 %1122
  %v1124 = vsel %vm1012, %v762, -inf
  %1125 = vmax.xlane.f32.xlu0 %v1124
  %v1126 = vpop.xlane.xlu0 %1125
  %v1127 = vsel %vm1012, %v765, -inf
  %1128 = vmax.xlane.f32.xlu0 %v1127
  %v1129 = vpop.xlane.xlu0 %1128
  %v1130 = vsel %vm1012, %v767, -inf
  %1131 = vmax.xlane.f32.xlu0 %v1130
  %v1132 = vpop.xlane.xlu0 %1131
  %v1133 = vsel %vm1012, %v831, -inf
  %1134 = vmax.xlane.f32.xlu0 %v1133
  %v1135 = vpop.xlane.xlu0 %1134
  %v1136 = vsel %vm1012, %v833, -inf
  %1137 = vmax.xlane.f32.xlu0 %v1136
  %v1138 = vpop.xlane.xlu0 %1137
  %v1139 = vsel %vm1012, %v836, -inf
  %1140 = vmax.xlane.f32.xlu0 %v1139
  %v1141 = vpop.xlane.xlu0 %1140
  %v1142 = vsel %vm1012, %v838, -inf
  %1143 = vmax.xlane.f32.xlu0 %v1142
  %v1144 = vpop.xlane.xlu0 %1143
  %v1145 = vsel %vm1012, %v841, -inf
  %1146 = vmax.xlane.f32.xlu0 %v1145
  %v1147 = vpop.xlane.xlu0 %1146
  %v1148 = vsel %vm1012, %v843, -inf
  %1149 = vmax.xlane.f32.xlu0 %v1148
  %v1150 = vpop.xlane.xlu0 %1149
  %v1151 = vsel %vm1012, %v846, -inf
  %1152 = vmax.xlane.f32.xlu0 %v1151
  %v1153 = vpop.xlane.xlu0 %1152
  %v1154 = vsel %vm1012, %v848, -inf
  %1155 = vmax.xlane.f32.xlu0 %v1154
  %v1156 = vpop.xlane.xlu0 %1155
  %v1157 = vsel %vm1012, %v912, -inf
  %1158 = vmax.xlane.f32.xlu0 %v1157
  %v1159 = vpop.xlane.xlu0 %1158
  %v1160 = vsel %vm1012, %v914, -inf
  %1161 = vmax.xlane.f32.xlu0 %v1160
  %v1162 = vpop.xlane.xlu0 %1161
  %v1163 = vsel %vm1012, %v917, -inf
  %1164 = vmax.xlane.f32.xlu0 %v1163
  %v1165 = vpop.xlane.xlu0 %1164
  %v1166 = vsel %vm1012, %v919, -inf
  %1167 = vmax.xlane.f32.xlu0 %v1166
  %v1168 = vpop.xlane.xlu0 %1167
  %v1169 = vsel %vm1012, %v922, -inf
  %1170 = vmax.xlane.f32.xlu0 %v1169
  %v1171 = vpop.xlane.xlu0 %1170
  %v1172 = vsel %vm1012, %v924, -inf
  %1173 = vmax.xlane.f32.xlu0 %v1172
  %v1174 = vpop.xlane.xlu0 %1173
  %v1175 = vsel %vm1012, %v927, -inf
  %1176 = vmax.xlane.f32.xlu0 %v1175
  %v1177 = vpop.xlane.xlu0 %1176
  %v1178 = vsel %vm1012, %v929, -inf
  %1179 = vmax.xlane.f32.xlu0 %v1178
  %v1180 = vpop.xlane.xlu0 %1179
  %v1181 = vsel %vm1012, %v993, -inf
  %1182 = vmax.xlane.f32.xlu0 %v1181
  %v1183 = vpop.xlane.xlu0 %1182
  %v1184 = vsel %vm1012, %v995, -inf
  %1185 = vmax.xlane.f32.xlu0 %v1184
  %v1186 = vpop.xlane.xlu0 %1185
  %v1187 = vsel %vm1012, %v998, -inf
  %1188 = vmax.xlane.f32.xlu0 %v1187
  %v1189 = vpop.xlane.xlu0 %1188
  %v1190 = vsel %vm1012, %v1000, -inf
  %1191 = vmax.xlane.f32.xlu0 %v1190
  %v1192 = vpop.xlane.xlu0 %1191
  %v1193 = vsel %vm1012, %v1003, -inf
  %1194 = vmax.xlane.f32.xlu0 %v1193
  %v1195 = vpop.xlane.xlu0 %1194
  %v1196 = vsel %vm1012, %v1005, -inf
  %1197 = vmax.xlane.f32.xlu0 %v1196
  %v1198 = vpop.xlane.xlu0 %1197
  %v1199 = vsel %vm1012, %v1008, -inf
  %1200 = vmax.xlane.f32.xlu0 %v1199
  %v1201 = vpop.xlane.xlu0 %1200
  %v1202 = vsel %vm1012, %v1010, -inf
  %1203 = vmax.xlane.f32.xlu0 %v1202
  %v1204 = vpop.xlane.xlu0 %1203
  %v1205 = vsub.f32 %v426, %v1015
  %v1206 = vsub.f32 %v428, %v1018
  %v1207 = vsub.f32 %v431, %v1021
  %v1208 = vsub.f32 %v433, %v1024
  %v1209 = vsub.f32 %v436, %v1027
  %v1210 = vsub.f32 %v438, %v1030
  %v1211 = vsub.f32 %v441, %v1033
  %v1212 = vsub.f32 %v443, %v1036
  %v1213 = vsub.f32 %v507, %v1039
  %v1214 = vsub.f32 %v509, %v1042
  %v1215 = vsub.f32 %v512, %v1045
  %v1216 = vsub.f32 %v514, %v1048
  %v1217 = vsub.f32 %v517, %v1051
  %v1218 = vsub.f32 %v519, %v1054
  %v1219 = vsub.f32 %v522, %v1057
  %v1220 = vsub.f32 %v524, %v1060
  %v1221 = vsub.f32 %v588, %v1063
  %v1222 = vsub.f32 %v590, %v1066
  %v1223 = vsub.f32 %v593, %v1069
  %v1224 = vsub.f32 %v595, %v1072
  %v1225 = vsub.f32 %v598, %v1075
  %v1226 = vsub.f32 %v600, %v1078
  %v1227 = vsub.f32 %v603, %v1081
  %v1228 = vsub.f32 %v605, %v1084
  %v1229 = vsub.f32 %v669, %v1087
  %v1230 = vsub.f32 %v671, %v1090
  %v1231 = vsub.f32 %v674, %v1093
  %v1232 = vsub.f32 %v676, %v1096
  %v1233 = vsub.f32 %v679, %v1099
  %v1234 = vsub.f32 %v681, %v1102
  %v1235 = vsub.f32 %v684, %v1105
  %v1236 = vsub.f32 %v686, %v1108
  %v1237 = vsub.f32 %v750, %v1111
  %v1238 = vsub.f32 %v752, %v1114
  %v1239 = vsub.f32 %v755, %v1117
  %v1240 = vsub.f32 %v757, %v1120
  %v1241 = vsub.f32 %v760, %v1123
  %v1242 = vsub.f32 %v762, %v1126
  %v1243 = vsub.f32 %v765, %v1129
  %v1244 = vsub.f32 %v767, %v1132
  %v1245 = vsub.f32 %v831, %v1135
  %v1246 = vsub.f32 %v833, %v1138
  %v1247 = vsub.f32 %v836, %v1141
  %v1248 = vsub.f32 %v838, %v1144
  %v1249 = vsub.f32 %v841, %v1147
  %v1250 = vsub.f32 %v843, %v1150
  %v1251 = vsub.f32 %v846, %v1153
  %v1252 = vsub.f32 %v848, %v1156
  %v1253 = vsub.f32 %v912, %v1159
  %v1254 = vsub.f32 %v914, %v1162
  %v1255 = vsub.f32 %v917, %v1165
  %v1256 = vsub.f32 %v919, %v1168
  %v1257 = vsub.f32 %v922, %v1171
  %v1258 = vsub.f32 %v924, %v1174
  %v1259 = vsub.f32 %v927, %v1177
  %v1260 = vsub.f32 %v929, %v1180
  %v1261 = vsub.f32 %v993, %v1183
  %v1262 = vsub.f32 %v995, %v1186
  %v1263 = vsub.f32 %v998, %v1189
  %v1264 = vsub.f32 %v1000, %v1192
  %v1265 = vsub.f32 %v1003, %v1195
  %v1266 = vsub.f32 %v1005, %v1198
  %v1267 = vsub.f32 %v1008, %v1201
  %v1268 = vsub.f32 %v1010, %v1204
  %v1269 = vmul.f32 %v1205, 1.442695
  %v1270 = vpow.pop %v1269
  %v1271 = vmul.f32 %v1206, 1.442695
  %v1272 = vpow.pop %v1271
  %v1273 = vmul.f32 %v1207, 1.442695
  %v1274 = vpow.pop %v1273
  %v1275 = vmul.f32 %v1208, 1.442695
  %v1276 = vpow.pop %v1275
  %v1277 = vmul.f32 %v1209, 1.442695
  %v1278 = vpow.pop %v1277
  %v1279 = vmul.f32 %v1210, 1.442695
  %v1280 = vpow.pop %v1279
  %v1281 = vmul.f32 %v1211, 1.442695
  %v1282 = vpow.pop %v1281
  %v1283 = vmul.f32 %v1212, 1.442695
  %v1284 = vpow.pop %v1283
  %v1285 = vmul.f32 %v1213, 1.442695
  %v1286 = vpow.pop %v1285
  %v1287 = vmul.f32 %v1214, 1.442695
  %v1288 = vpow.pop %v1287
  %v1289 = vmul.f32 %v1215, 1.442695
  %v1290 = vpow.pop %v1289
  %v1291 = vmul.f32 %v1216, 1.442695
  %v1292 = vpow.pop %v1291
  %v1293 = vmul.f32 %v1217, 1.442695
  %v1294 = vpow.pop %v1293
  %v1295 = vmul.f32 %v1218, 1.442695
  %v1296 = vpow.pop %v1295
  %v1297 = vmul.f32 %v1219, 1.442695
  %v1298 = vpow.pop %v1297
  %v1299 = vmul.f32 %v1220, 1.442695
  %v1300 = vpow.pop %v1299
  %v1301 = vmul.f32 %v1221, 1.442695
  %v1302 = vpow.pop %v1301
  %v1303 = vmul.f32 %v1222, 1.442695
  %v1304 = vpow.pop %v1303
  %v1305 = vmul.f32 %v1223, 1.442695
  %v1306 = vpow.pop %v1305
  %v1307 = vmul.f32 %v1224, 1.442695
  %v1308 = vpow.pop %v1307
  %v1309 = vmul.f32 %v1225, 1.442695
  %v1310 = vpow.pop %v1309
  %v1311 = vmul.f32 %v1226, 1.442695
  %v1312 = vpow.pop %v1311
  %v1313 = vmul.f32 %v1227, 1.442695
  %v1314 = vpow.pop %v1313
  %v1315 = vmul.f32 %v1228, 1.442695
  %v1316 = vpow.pop %v1315
  %v1317 = vmul.f32 %v1229, 1.442695
  %v1318 = vpow.pop %v1317
  %v1319 = vmul.f32 %v1230, 1.442695
  %v1320 = vpow.pop %v1319
  %v1321 = vmul.f32 %v1231, 1.442695
  %v1322 = vpow.pop %v1321
  %v1323 = vmul.f32 %v1232, 1.442695
  %v1324 = vpow.pop %v1323
  %v1325 = vmul.f32 %v1233, 1.442695
  %v1326 = vpow.pop %v1325
  %v1327 = vmul.f32 %v1234, 1.442695
  %v1328 = vpow.pop %v1327
  %v1329 = vmul.f32 %v1235, 1.442695
  %v1330 = vpow.pop %v1329
  %v1331 = vmul.f32 %v1236, 1.442695
  %v1332 = vpow.pop %v1331
  %v1333 = vmul.f32 %v1237, 1.442695
  %v1334 = vpow.pop %v1333
  %v1335 = vmul.f32 %v1238, 1.442695
  %v1336 = vpow.pop %v1335
  %v1337 = vmul.f32 %v1239, 1.442695
  %v1338 = vpow.pop %v1337
  %v1339 = vmul.f32 %v1240, 1.442695
  %v1340 = vpow.pop %v1339
  %v1341 = vmul.f32 %v1241, 1.442695
  %v1342 = vpow.pop %v1341
  %v1343 = vmul.f32 %v1242, 1.442695
  %v1344 = vpow.pop %v1343
  %v1345 = vmul.f32 %v1243, 1.442695
  %v1346 = vpow.pop %v1345
  %v1347 = vmul.f32 %v1244, 1.442695
  %v1348 = vpow.pop %v1347
  %v1349 = vmul.f32 %v1245, 1.442695
  %v1350 = vpow.pop %v1349
  %v1351 = vmul.f32 %v1246, 1.442695
  %v1352 = vpow.pop %v1351
  %v1353 = vmul.f32 %v1247, 1.442695
  %v1354 = vpow.pop %v1353
  %v1355 = vmul.f32 %v1248, 1.442695
  %v1356 = vpow.pop %v1355
  %v1357 = vmul.f32 %v1249, 1.442695
  %v1358 = vpow.pop %v1357
  %v1359 = vmul.f32 %v1250, 1.442695
  %v1360 = vpow.pop %v1359
  %v1361 = vmul.f32 %v1251, 1.442695
  %v1362 = vpow.pop %v1361
  %v1363 = vmul.f32 %v1252, 1.442695
  %v1364 = vpow.pop %v1363
  %v1365 = vmul.f32 %v1253, 1.442695
  %v1366 = vpow.pop %v1365
  %v1367 = vmul.f32 %v1254, 1.442695
  %v1368 = vpow.pop %v1367
  %v1369 = vmul.f32 %v1255, 1.442695
  %v1370 = vpow.pop %v1369
  %v1371 = vmul.f32 %v1256, 1.442695
  %v1372 = vpow.pop %v1371
  %v1373 = vmul.f32 %v1257, 1.442695
  %v1374 = vpow.pop %v1373
  %v1375 = vmul.f32 %v1258, 1.442695
  %v1376 = vpow.pop %v1375
  %v1377 = vmul.f32 %v1259, 1.442695
  %v1378 = vpow.pop %v1377
  %v1379 = vmul.f32 %v1260, 1.442695
  %v1380 = vpow.pop %v1379
  %v1381 = vmul.f32 %v1261, 1.442695
  %v1382 = vpow.pop %v1381
  %v1383 = vmul.f32 %v1262, 1.442695
  %v1384 = vpow.pop %v1383
  %v1385 = vmul.f32 %v1263, 1.442695
  %v1386 = vpow.pop %v1385
  %v1387 = vmul.f32 %v1264, 1.442695
  %v1388 = vpow.pop %v1387
  %v1389 = vmul.f32 %v1265, 1.442695
  %v1390 = vpow.pop %v1389
  %v1391 = vmul.f32 %v1266, 1.442695
  %v1392 = vpow.pop %v1391
  %v1393 = vmul.f32 %v1267, 1.442695
  %v1394 = vpow.pop %v1393
  %v1395 = vmul.f32 %v1268, 1.442695
  %v1396 = vpow.pop %v1395
  %v1397 = vsel %vm1012, %v1270, 0.0
  %1398 = vadd.xlane.f32.xlu0 %v1397
  %v1399 = vpop.xlane.xlu0 %1398
  %v1400 = vsel %vm1012, %v1272, 0.0
  %1401 = vadd.xlane.f32.xlu0 %v1400
  %v1402 = vpop.xlane.xlu0 %1401
  %v1403 = vsel %vm1012, %v1274, 0.0
  %1404 = vadd.xlane.f32.xlu0 %v1403
  %v1405 = vpop.xlane.xlu0 %1404
  %v1406 = vsel %vm1012, %v1276, 0.0
  %1407 = vadd.xlane.f32.xlu0 %v1406
  %v1408 = vpop.xlane.xlu0 %1407
  %v1409 = vsel %vm1012, %v1278, 0.0
  %1410 = vadd.xlane.f32.xlu0 %v1409
  %v1411 = vpop.xlane.xlu0 %1410
  %v1412 = vsel %vm1012, %v1280, 0.0
  %1413 = vadd.xlane.f32.xlu0 %v1412
  %v1414 = vpop.xlane.xlu0 %1413
  %v1415 = vsel %vm1012, %v1282, 0.0
  %1416 = vadd.xlane.f32.xlu0 %v1415
  %v1417 = vpop.xlane.xlu0 %1416
  %v1418 = vsel %vm1012, %v1284, 0.0
  %1419 = vadd.xlane.f32.xlu0 %v1418
  %v1420 = vpop.xlane.xlu0 %1419
  %v1421 = vsel %vm1012, %v1286, 0.0
  %1422 = vadd.xlane.f32.xlu0 %v1421
  %v1423 = vpop.xlane.xlu0 %1422
  %v1424 = vsel %vm1012, %v1288, 0.0
  %1425 = vadd.xlane.f32.xlu0 %v1424
  %v1426 = vpop.xlane.xlu0 %1425
  %v1427 = vsel %vm1012, %v1290, 0.0
  %1428 = vadd.xlane.f32.xlu0 %v1427
  %v1429 = vpop.xlane.xlu0 %1428
  %v1430 = vsel %vm1012, %v1292, 0.0
  %1431 = vadd.xlane.f32.xlu0 %v1430
  %v1432 = vpop.xlane.xlu0 %1431
  %v1433 = vsel %vm1012, %v1294, 0.0
  %1434 = vadd.xlane.f32.xlu0 %v1433
  %v1435 = vpop.xlane.xlu0 %1434
  %v1436 = vsel %vm1012, %v1296, 0.0
  %1437 = vadd.xlane.f32.xlu0 %v1436
  %v1438 = vpop.xlane.xlu0 %1437
  %v1439 = vsel %vm1012, %v1298, 0.0
  %1440 = vadd.xlane.f32.xlu0 %v1439
  %v1441 = vpop.xlane.xlu0 %1440
  %v1442 = vsel %vm1012, %v1300, 0.0
  %1443 = vadd.xlane.f32.xlu0 %v1442
  %v1444 = vpop.xlane.xlu0 %1443
  %v1445 = vsel %vm1012, %v1302, 0.0
  %1446 = vadd.xlane.f32.xlu0 %v1445
  %v1447 = vpop.xlane.xlu0 %1446
  %v1448 = vsel %vm1012, %v1304, 0.0
  %1449 = vadd.xlane.f32.xlu0 %v1448
  %v1450 = vpop.xlane.xlu0 %1449
  %v1451 = vsel %vm1012, %v1306, 0.0
  %1452 = vadd.xlane.f32.xlu0 %v1451
  %v1453 = vpop.xlane.xlu0 %1452
  %v1454 = vsel %vm1012, %v1308, 0.0
  %1455 = vadd.xlane.f32.xlu0 %v1454
  %v1456 = vpop.xlane.xlu0 %1455
  %v1457 = vsel %vm1012, %v1310, 0.0
  %1458 = vadd.xlane.f32.xlu0 %v1457
  %v1459 = vpop.xlane.xlu0 %1458
  %v1460 = vsel %vm1012, %v1312, 0.0
  %1461 = vadd.xlane.f32.xlu0 %v1460
  %v1462 = vpop.xlane.xlu0 %1461
  %v1463 = vsel %vm1012, %v1314, 0.0
  %1464 = vadd.xlane.f32.xlu0 %v1463
  %v1465 = vpop.xlane.xlu0 %1464
  %v1466 = vsel %vm1012, %v1316, 0.0
  %1467 = vadd.xlane.f32.xlu0 %v1466
  %v1468 = vpop.xlane.xlu0 %1467
  %v1469 = vsel %vm1012, %v1318, 0.0
  %1470 = vadd.xlane.f32.xlu0 %v1469
  %v1471 = vpop.xlane.xlu0 %1470
  %v1472 = vsel %vm1012, %v1320, 0.0
  %1473 = vadd.xlane.f32.xlu0 %v1472
  %v1474 = vpop.xlane.xlu0 %1473
  %v1475 = vsel %vm1012, %v1322, 0.0
  %1476 = vadd.xlane.f32.xlu0 %v1475
  %v1477 = vpop.xlane.xlu0 %1476
  %v1478 = vsel %vm1012, %v1324, 0.0
  %1479 = vadd.xlane.f32.xlu0 %v1478
  %v1480 = vpop.xlane.xlu0 %1479
  %v1481 = vsel %vm1012, %v1326, 0.0
  %1482 = vadd.xlane.f32.xlu0 %v1481
  %v1483 = vpop.xlane.xlu0 %1482
  %v1484 = vsel %vm1012, %v1328, 0.0
  %1485 = vadd.xlane.f32.xlu0 %v1484
  %v1486 = vpop.xlane.xlu0 %1485
  %v1487 = vsel %vm1012, %v1330, 0.0
  %1488 = vadd.xlane.f32.xlu0 %v1487
  %v1489 = vpop.xlane.xlu0 %1488
  %v1490 = vsel %vm1012, %v1332, 0.0
  %1491 = vadd.xlane.f32.xlu0 %v1490
  %v1492 = vpop.xlane.xlu0 %1491
  %v1493 = vsel %vm1012, %v1334, 0.0
  %1494 = vadd.xlane.f32.xlu0 %v1493
  %v1495 = vpop.xlane.xlu0 %1494
  %v1496 = vsel %vm1012, %v1336, 0.0
  %1497 = vadd.xlane.f32.xlu0 %v1496
  %v1498 = vpop.xlane.xlu0 %1497
  %v1499 = vsel %vm1012, %v1338, 0.0
  %1500 = vadd.xlane.f32.xlu0 %v1499
  %v1501 = vpop.xlane.xlu0 %1500
  %v1502 = vsel %vm1012, %v1340, 0.0
  %1503 = vadd.xlane.f32.xlu0 %v1502
  %v1504 = vpop.xlane.xlu0 %1503
  %v1505 = vsel %vm1012, %v1342, 0.0
  %1506 = vadd.xlane.f32.xlu0 %v1505
  %v1507 = vpop.xlane.xlu0 %1506
  %v1508 = vsel %vm1012, %v1344, 0.0
  %1509 = vadd.xlane.f32.xlu0 %v1508
  %v1510 = vpop.xlane.xlu0 %1509
  %v1511 = vsel %vm1012, %v1346, 0.0
  %1512 = vadd.xlane.f32.xlu0 %v1511
  %v1513 = vpop.xlane.xlu0 %1512
  %v1514 = vsel %vm1012, %v1348, 0.0
  %1515 = vadd.xlane.f32.xlu0 %v1514
  %v1516 = vpop.xlane.xlu0 %1515
  %v1517 = vsel %vm1012, %v1350, 0.0
  %1518 = vadd.xlane.f32.xlu0 %v1517
  %v1519 = vpop.xlane.xlu0 %1518
  %v1520 = vsel %vm1012, %v1352, 0.0
  %1521 = vadd.xlane.f32.xlu0 %v1520
  %v1522 = vpop.xlane.xlu0 %1521
  %v1523 = vsel %vm1012, %v1354, 0.0
  %1524 = vadd.xlane.f32.xlu0 %v1523
  %v1525 = vpop.xlane.xlu0 %1524
  %v1526 = vsel %vm1012, %v1356, 0.0
  %1527 = vadd.xlane.f32.xlu0 %v1526
  %v1528 = vpop.xlane.xlu0 %1527
  %v1529 = vsel %vm1012, %v1358, 0.0
  %1530 = vadd.xlane.f32.xlu0 %v1529
  %v1531 = vpop.xlane.xlu0 %1530
  %v1532 = vsel %vm1012, %v1360, 0.0
  %1533 = vadd.xlane.f32.xlu0 %v1532
  %v1534 = vpop.xlane.xlu0 %1533
  %v1535 = vsel %vm1012, %v1362, 0.0
  %1536 = vadd.xlane.f32.xlu0 %v1535
  %v1537 = vpop.xlane.xlu0 %1536
  %v1538 = vsel %vm1012, %v1364, 0.0
  %1539 = vadd.xlane.f32.xlu0 %v1538
  %v1540 = vpop.xlane.xlu0 %1539
  %v1541 = vsel %vm1012, %v1366, 0.0
  %1542 = vadd.xlane.f32.xlu0 %v1541
  %v1543 = vpop.xlane.xlu0 %1542
  %v1544 = vsel %vm1012, %v1368, 0.0
  %1545 = vadd.xlane.f32.xlu0 %v1544
  %v1546 = vpop.xlane.xlu0 %1545
  %v1547 = vsel %vm1012, %v1370, 0.0
  %1548 = vadd.xlane.f32.xlu0 %v1547
  %v1549 = vpop.xlane.xlu0 %1548
  %v1550 = vsel %vm1012, %v1372, 0.0
  %1551 = vadd.xlane.f32.xlu0 %v1550
  %v1552 = vpop.xlane.xlu0 %1551
  %v1553 = vsel %vm1012, %v1374, 0.0
  %1554 = vadd.xlane.f32.xlu0 %v1553
  %v1555 = vpop.xlane.xlu0 %1554
  %v1556 = vsel %vm1012, %v1376, 0.0
  %1557 = vadd.xlane.f32.xlu0 %v1556
  %v1558 = vpop.xlane.xlu0 %1557
  %v1559 = vsel %vm1012, %v1378, 0.0
  %1560 = vadd.xlane.f32.xlu0 %v1559
  %v1561 = vpop.xlane.xlu0 %1560
  %v1562 = vsel %vm1012, %v1380, 0.0
  %1563 = vadd.xlane.f32.xlu0 %v1562
  %v1564 = vpop.xlane.xlu0 %1563
  %v1565 = vsel %vm1012, %v1382, 0.0
  %1566 = vadd.xlane.f32.xlu0 %v1565
  %v1567 = vpop.xlane.xlu0 %1566
  %v1568 = vsel %vm1012, %v1384, 0.0
  %1569 = vadd.xlane.f32.xlu0 %v1568
  %v1570 = vpop.xlane.xlu0 %1569
  %v1571 = vsel %vm1012, %v1386, 0.0
  %1572 = vadd.xlane.f32.xlu0 %v1571
  %v1573 = vpop.xlane.xlu0 %1572
  %v1574 = vsel %vm1012, %v1388, 0.0
  %1575 = vadd.xlane.f32.xlu0 %v1574
  %v1576 = vpop.xlane.xlu0 %1575
  %v1577 = vsel %vm1012, %v1390, 0.0
  %1578 = vadd.xlane.f32.xlu0 %v1577
  %v1579 = vpop.xlane.xlu0 %1578
  %v1580 = vsel %vm1012, %v1392, 0.0
  %1581 = vadd.xlane.f32.xlu0 %v1580
  %v1582 = vpop.xlane.xlu0 %1581
  %v1583 = vsel %vm1012, %v1394, 0.0
  %1584 = vadd.xlane.f32.xlu0 %v1583
  %v1585 = vpop.xlane.xlu0 %1584
  %v1586 = vsel %vm1012, %v1396, 0.0
  %1587 = vadd.xlane.f32.xlu0 %v1586
  %v1588 = vpop.xlane.xlu0 %1587
  %v1589 = vpack.c.bf16 %v1270, %v1270
  %v1590 = vpack.c.bf16 %v1272, %v1272
  %v1591 = vpack.c.bf16 %v1274, %v1274
  %v1592 = vpack.c.bf16 %v1276, %v1276
  %v1593 = vpack.c.bf16 %v1278, %v1278
  %v1594 = vpack.c.bf16 %v1280, %v1280
  %v1595 = vpack.c.bf16 %v1282, %v1282
  %v1596 = vpack.c.bf16 %v1284, %v1284
  %v1597 = vpack.c.bf16 %v1286, %v1286
  %v1598 = vpack.c.bf16 %v1288, %v1288
  %v1599 = vpack.c.bf16 %v1290, %v1290
  %v1600 = vpack.c.bf16 %v1292, %v1292
  %v1601 = vpack.c.bf16 %v1294, %v1294
  %v1602 = vpack.c.bf16 %v1296, %v1296
  %v1603 = vpack.c.bf16 %v1298, %v1298
  %v1604 = vpack.c.bf16 %v1300, %v1300
  %v1605 = vpack.c.bf16 %v1302, %v1302
  %v1606 = vpack.c.bf16 %v1304, %v1304
  %v1607 = vpack.c.bf16 %v1306, %v1306
  %v1608 = vpack.c.bf16 %v1308, %v1308
  %v1609 = vpack.c.bf16 %v1310, %v1310
  %v1610 = vpack.c.bf16 %v1312, %v1312
  %v1611 = vpack.c.bf16 %v1314, %v1314
  %v1612 = vpack.c.bf16 %v1316, %v1316
  %v1613 = vpack.c.bf16 %v1318, %v1318
  %v1614 = vpack.c.bf16 %v1320, %v1320
  %v1615 = vpack.c.bf16 %v1322, %v1322
  %v1616 = vpack.c.bf16 %v1324, %v1324
  %v1617 = vpack.c.bf16 %v1326, %v1326
  %v1618 = vpack.c.bf16 %v1328, %v1328
  %v1619 = vpack.c.bf16 %v1330, %v1330
  %v1620 = vpack.c.bf16 %v1332, %v1332
  %v1621 = vpack.c.bf16 %v1334, %v1334
  %v1622 = vpack.c.bf16 %v1336, %v1336
  %v1623 = vpack.c.bf16 %v1338, %v1338
  %v1624 = vpack.c.bf16 %v1340, %v1340
  %v1625 = vpack.c.bf16 %v1342, %v1342
  %v1626 = vpack.c.bf16 %v1344, %v1344
  %v1627 = vpack.c.bf16 %v1346, %v1346
  %v1628 = vpack.c.bf16 %v1348, %v1348
  %v1629 = vpack.c.bf16 %v1350, %v1350
  %v1630 = vpack.c.bf16 %v1352, %v1352
  %v1631 = vpack.c.bf16 %v1354, %v1354
  %v1632 = vpack.c.bf16 %v1356, %v1356
  %v1633 = vpack.c.bf16 %v1358, %v1358
  %v1634 = vpack.c.bf16 %v1360, %v1360
  %v1635 = vpack.c.bf16 %v1362, %v1362
  %v1636 = vpack.c.bf16 %v1364, %v1364
  %v1637 = vpack.c.bf16 %v1366, %v1366
  %v1638 = vpack.c.bf16 %v1368, %v1368
  %v1639 = vpack.c.bf16 %v1370, %v1370
  %v1640 = vpack.c.bf16 %v1372, %v1372
  %v1641 = vpack.c.bf16 %v1374, %v1374
  %v1642 = vpack.c.bf16 %v1376, %v1376
  %v1643 = vpack.c.bf16 %v1378, %v1378
  %v1644 = vpack.c.bf16 %v1380, %v1380
  %v1645 = vpack.c.bf16 %v1382, %v1382
  %v1646 = vpack.c.bf16 %v1384, %v1384
  %v1647 = vpack.c.bf16 %v1386, %v1386
  %v1648 = vpack.c.bf16 %v1388, %v1388
  %v1649 = vpack.c.bf16 %v1390, %v1390
  %v1650 = vpack.c.bf16 %v1392, %v1392
  %v1651 = vpack.c.bf16 %v1394, %v1394
  %v1652 = vpack.c.bf16 %v1396, %v1396
  %v1661 = vunpack.c.l.b16 %v1589
  %v1662 = vunpack.c.l.b16 %v1590
  %v1663 = vunpack.c.l.b16 %v1591
  %v1664 = vunpack.c.l.b16 %v1592
  %v1665 = vunpack.c.l.b16 %v1593
  %v1666 = vunpack.c.l.b16 %v1594
  %v1667 = vunpack.c.l.b16 %v1595
  %v1668 = vunpack.c.l.b16 %v1596
  %v1669 = vpack.c.b16 %v1662, %v1661
  %v1670 = vpack.c.b16 %v1664, %v1663
  %v1671 = vpack.c.b16 %v1666, %v1665
  %v1672 = vpack.c.b16 %v1668, %v1667
  %1673 = vrot.lane.b32.xlu0 %v379, 64
  %v1674 = vpop.permute.xlu0 %1673
  %1675 = vrot.lane.b32.xlu0 %v380, 64
  %v1676 = vpop.permute.xlu0 %1675
  %1677 = vrot.lane.b32.xlu0 %v381, 64
  %v1678 = vpop.permute.xlu0 %1677
  %1679 = vrot.lane.b32.xlu0 %v382, 64
  %v1680 = vpop.permute.xlu0 %1679
  %v1686 = vsel %vm1012, %v1669, 0
  %v1689 = vsel %vm1012, %v1670, 0
  %v1692 = vsel %vm1012, %v1671, 0
  %v1695 = vsel %vm1012, %v1672, 0
  %1697 = vmatpush.bf16.msra.mxu0 0
  %1698 = vmatpush.bf16.msra.mxu0 0
  %1699 = vmatpush.bf16.msra.mxu0 0
  %1700 = vmatpush.bf16.msra.mxu0 0
  %1701 = vmatpush.bf16.msra.mxu0 %v1680
  %1702 = vmatpush.bf16.msra.mxu0 %v1678
  %1703 = vmatpush.bf16.msra.mxu0 %v1676
  %1704 = vmatpush.bf16.msra.mxu0 %v1674
  %1705 = vmatmul.bf16.gmra.mxu0 %v1686
  %v1706 = vpop.f32.mrf.mxu0
  %v1707 = vadd.f32 0.0, %v1706
  %v1708 = vpop.f32.mrf.mxu0
  %v1709 = vadd.f32 0.0, %v1708
  %1710 = vmatmul.bf16.gmra.mxu0 %v1689
  %v1711 = vpop.f32.mrf.mxu0
  %v1712 = vadd.f32 0.0, %v1711
  %v1713 = vpop.f32.mrf.mxu0
  %v1714 = vadd.f32 0.0, %v1713
  %1715 = vmatmul.bf16.gmra.mxu0 %v1692
  %v1716 = vpop.f32.mrf.mxu0
  %v1717 = vadd.f32 0.0, %v1716
  %v1718 = vpop.f32.mrf.mxu0
  %v1719 = vadd.f32 0.0, %v1718
  %1720 = vmatmul.bf16.gmra.mxu0 %v1695
  %v1721 = vpop.f32.mrf.mxu0
  %v1722 = vadd.f32 0.0, %v1721
  %v1723 = vpop.f32.mrf.mxu0
  %v1724 = vadd.f32 0.0, %v1723
  %1725 = vdwg.mxu0
  %v1734 = vunpack.c.l.b16 %v1597
  %v1735 = vunpack.c.l.b16 %v1598
  %v1736 = vunpack.c.l.b16 %v1599
  %v1737 = vunpack.c.l.b16 %v1600
  %v1738 = vunpack.c.l.b16 %v1601
  %v1739 = vunpack.c.l.b16 %v1602
  %v1740 = vunpack.c.l.b16 %v1603
  %v1741 = vunpack.c.l.b16 %v1604
  %v1742 = vpack.c.b16 %v1735, %v1734
  %v1743 = vpack.c.b16 %v1737, %v1736
  %v1744 = vpack.c.b16 %v1739, %v1738
  %v1745 = vpack.c.b16 %v1741, %v1740
  %1746 = vrot.lane.b32.xlu0 %v461, 64
  %v1747 = vpop.permute.xlu0 %1746
  %1748 = vrot.lane.b32.xlu0 %v462, 64
  %v1749 = vpop.permute.xlu0 %1748
  %1750 = vrot.lane.b32.xlu0 %v463, 64
  %v1751 = vpop.permute.xlu0 %1750
  %1752 = vrot.lane.b32.xlu0 %v464, 64
  %v1753 = vpop.permute.xlu0 %1752
  %v1759 = vsel %vm1012, %v1742, 0
  %v1762 = vsel %vm1012, %v1743, 0
  %v1765 = vsel %vm1012, %v1744, 0
  %v1768 = vsel %vm1012, %v1745, 0
  %1770 = vmatpush.bf16.msra.mxu0 0
  %1771 = vmatpush.bf16.msra.mxu0 0
  %1772 = vmatpush.bf16.msra.mxu0 0
  %1773 = vmatpush.bf16.msra.mxu0 0
  %1774 = vmatpush.bf16.msra.mxu0 %v1753
  %1775 = vmatpush.bf16.msra.mxu0 %v1751
  %1776 = vmatpush.bf16.msra.mxu0 %v1749
  %1777 = vmatpush.bf16.msra.mxu0 %v1747
  %1778 = vmatmul.bf16.gmra.mxu0 %v1759
  %v1779 = vpop.f32.mrf.mxu0
  %v1780 = vadd.f32 0.0, %v1779
  %v1781 = vpop.f32.mrf.mxu0
  %v1782 = vadd.f32 0.0, %v1781
  %1783 = vmatmul.bf16.gmra.mxu0 %v1762
  %v1784 = vpop.f32.mrf.mxu0
  %v1785 = vadd.f32 0.0, %v1784
  %v1786 = vpop.f32.mrf.mxu0
  %v1787 = vadd.f32 0.0, %v1786
  %1788 = vmatmul.bf16.gmra.mxu0 %v1765
  %v1789 = vpop.f32.mrf.mxu0
  %v1790 = vadd.f32 0.0, %v1789
  %v1791 = vpop.f32.mrf.mxu0
  %v1792 = vadd.f32 0.0, %v1791
  %1793 = vmatmul.bf16.gmra.mxu0 %v1768
  %v1794 = vpop.f32.mrf.mxu0
  %v1795 = vadd.f32 0.0, %v1794
  %v1796 = vpop.f32.mrf.mxu0
  %v1797 = vadd.f32 0.0, %v1796
  %1798 = vdwg.mxu0
  %v1807 = vunpack.c.l.b16 %v1605
  %v1808 = vunpack.c.l.b16 %v1606
  %v1809 = vunpack.c.l.b16 %v1607
  %v1810 = vunpack.c.l.b16 %v1608
  %v1811 = vunpack.c.l.b16 %v1609
  %v1812 = vunpack.c.l.b16 %v1610
  %v1813 = vunpack.c.l.b16 %v1611
  %v1814 = vunpack.c.l.b16 %v1612
  %v1815 = vpack.c.b16 %v1808, %v1807
  %v1816 = vpack.c.b16 %v1810, %v1809
  %v1817 = vpack.c.b16 %v1812, %v1811
  %v1818 = vpack.c.b16 %v1814, %v1813
  %1819 = vrot.lane.b32.xlu0 %v542, 64
  %v1820 = vpop.permute.xlu0 %1819
  %1821 = vrot.lane.b32.xlu0 %v543, 64
  %v1822 = vpop.permute.xlu0 %1821
  %1823 = vrot.lane.b32.xlu0 %v544, 64
  %v1824 = vpop.permute.xlu0 %1823
  %1825 = vrot.lane.b32.xlu0 %v545, 64
  %v1826 = vpop.permute.xlu0 %1825
  %v1832 = vsel %vm1012, %v1815, 0
  %v1835 = vsel %vm1012, %v1816, 0
  %v1838 = vsel %vm1012, %v1817, 0
  %v1841 = vsel %vm1012, %v1818, 0
  %1843 = vmatpush.bf16.msra.mxu0 0
  %1844 = vmatpush.bf16.msra.mxu0 0
  %1845 = vmatpush.bf16.msra.mxu0 0
  %1846 = vmatpush.bf16.msra.mxu0 0
  %1847 = vmatpush.bf16.msra.mxu0 %v1826
  %1848 = vmatpush.bf16.msra.mxu0 %v1824
  %1849 = vmatpush.bf16.msra.mxu0 %v1822
  %1850 = vmatpush.bf16.msra.mxu0 %v1820
  %1851 = vmatmul.bf16.gmra.mxu0 %v1832
  %v1852 = vpop.f32.mrf.mxu0
  %v1853 = vadd.f32 0.0, %v1852
  %v1854 = vpop.f32.mrf.mxu0
  %v1855 = vadd.f32 0.0, %v1854
  %1856 = vmatmul.bf16.gmra.mxu0 %v1835
  %v1857 = vpop.f32.mrf.mxu0
  %v1858 = vadd.f32 0.0, %v1857
  %v1859 = vpop.f32.mrf.mxu0
  %v1860 = vadd.f32 0.0, %v1859
  %1861 = vmatmul.bf16.gmra.mxu0 %v1838
  %v1862 = vpop.f32.mrf.mxu0
  %v1863 = vadd.f32 0.0, %v1862
  %v1864 = vpop.f32.mrf.mxu0
  %v1865 = vadd.f32 0.0, %v1864
  %1866 = vmatmul.bf16.gmra.mxu0 %v1841
  %v1867 = vpop.f32.mrf.mxu0
  %v1868 = vadd.f32 0.0, %v1867
  %v1869 = vpop.f32.mrf.mxu0
  %v1870 = vadd.f32 0.0, %v1869
  %1871 = vdwg.mxu0
  %v1880 = vunpack.c.l.b16 %v1613
  %v1881 = vunpack.c.l.b16 %v1614
  %v1882 = vunpack.c.l.b16 %v1615
  %v1883 = vunpack.c.l.b16 %v1616
  %v1884 = vunpack.c.l.b16 %v1617
  %v1885 = vunpack.c.l.b16 %v1618
  %v1886 = vunpack.c.l.b16 %v1619
  %v1887 = vunpack.c.l.b16 %v1620
  %v1888 = vpack.c.b16 %v1881, %v1880
  %v1889 = vpack.c.b16 %v1883, %v1882
  %v1890 = vpack.c.b16 %v1885, %v1884
  %v1891 = vpack.c.b16 %v1887, %v1886
  %1892 = vrot.lane.b32.xlu0 %v623, 64
  %v1893 = vpop.permute.xlu0 %1892
  %1894 = vrot.lane.b32.xlu0 %v624, 64
  %v1895 = vpop.permute.xlu0 %1894
  %1896 = vrot.lane.b32.xlu0 %v625, 64
  %v1897 = vpop.permute.xlu0 %1896
  %1898 = vrot.lane.b32.xlu0 %v626, 64
  %v1899 = vpop.permute.xlu0 %1898
  %v1905 = vsel %vm1012, %v1888, 0
  %v1908 = vsel %vm1012, %v1889, 0
  %v1911 = vsel %vm1012, %v1890, 0
  %v1914 = vsel %vm1012, %v1891, 0
  %1916 = vmatpush.bf16.msra.mxu0 0
  %1917 = vmatpush.bf16.msra.mxu0 0
  %1918 = vmatpush.bf16.msra.mxu0 0
  %1919 = vmatpush.bf16.msra.mxu0 0
  %1920 = vmatpush.bf16.msra.mxu0 %v1899
  %1921 = vmatpush.bf16.msra.mxu0 %v1897
  %1922 = vmatpush.bf16.msra.mxu0 %v1895
  %1923 = vmatpush.bf16.msra.mxu0 %v1893
  %1924 = vmatmul.bf16.gmra.mxu0 %v1905
  %v1925 = vpop.f32.mrf.mxu0
  %v1926 = vadd.f32 0.0, %v1925
  %v1927 = vpop.f32.mrf.mxu0
  %v1928 = vadd.f32 0.0, %v1927
  %1929 = vmatmul.bf16.gmra.mxu0 %v1908
  %v1930 = vpop.f32.mrf.mxu0
  %v1931 = vadd.f32 0.0, %v1930
  %v1932 = vpop.f32.mrf.mxu0
  %v1933 = vadd.f32 0.0, %v1932
  %1934 = vmatmul.bf16.gmra.mxu0 %v1911
  %v1935 = vpop.f32.mrf.mxu0
  %v1936 = vadd.f32 0.0, %v1935
  %v1937 = vpop.f32.mrf.mxu0
  %v1938 = vadd.f32 0.0, %v1937
  %1939 = vmatmul.bf16.gmra.mxu0 %v1914
  %v1940 = vpop.f32.mrf.mxu0
  %v1941 = vadd.f32 0.0, %v1940
  %v1942 = vpop.f32.mrf.mxu0
  %v1943 = vadd.f32 0.0, %v1942
  %1944 = vdwg.mxu0
  %v1953 = vunpack.c.l.b16 %v1621
  %v1954 = vunpack.c.l.b16 %v1622
  %v1955 = vunpack.c.l.b16 %v1623
  %v1956 = vunpack.c.l.b16 %v1624
  %v1957 = vunpack.c.l.b16 %v1625
  %v1958 = vunpack.c.l.b16 %v1626
  %v1959 = vunpack.c.l.b16 %v1627
  %v1960 = vunpack.c.l.b16 %v1628
  %v1961 = vpack.c.b16 %v1954, %v1953
  %v1962 = vpack.c.b16 %v1956, %v1955
  %v1963 = vpack.c.b16 %v1958, %v1957
  %v1964 = vpack.c.b16 %v1960, %v1959
  %1965 = vrot.lane.b32.xlu0 %v704, 64
  %v1966 = vpop.permute.xlu0 %1965
  %1967 = vrot.lane.b32.xlu0 %v705, 64
  %v1968 = vpop.permute.xlu0 %1967
  %1969 = vrot.lane.b32.xlu0 %v706, 64
  %v1970 = vpop.permute.xlu0 %1969
  %1971 = vrot.lane.b32.xlu0 %v707, 64
  %v1972 = vpop.permute.xlu0 %1971
  %v1978 = vsel %vm1012, %v1961, 0
  %v1981 = vsel %vm1012, %v1962, 0
  %v1984 = vsel %vm1012, %v1963, 0
  %v1987 = vsel %vm1012, %v1964, 0
  %1989 = vmatpush.bf16.msra.mxu0 0
  %1990 = vmatpush.bf16.msra.mxu0 0
  %1991 = vmatpush.bf16.msra.mxu0 0
  %1992 = vmatpush.bf16.msra.mxu0 0
  %1993 = vmatpush.bf16.msra.mxu0 %v1972
  %1994 = vmatpush.bf16.msra.mxu0 %v1970
  %1995 = vmatpush.bf16.msra.mxu0 %v1968
  %1996 = vmatpush.bf16.msra.mxu0 %v1966
  %1997 = vmatmul.bf16.gmra.mxu0 %v1978
  %v1998 = vpop.f32.mrf.mxu0
  %v1999 = vadd.f32 0.0, %v1998
  %v2000 = vpop.f32.mrf.mxu0
  %v2001 = vadd.f32 0.0, %v2000
  %2002 = vmatmul.bf16.gmra.mxu0 %v1981
  %v2003 = vpop.f32.mrf.mxu0
  %v2004 = vadd.f32 0.0, %v2003
  %v2005 = vpop.f32.mrf.mxu0
  %v2006 = vadd.f32 0.0, %v2005
  %2007 = vmatmul.bf16.gmra.mxu0 %v1984
  %v2008 = vpop.f32.mrf.mxu0
  %v2009 = vadd.f32 0.0, %v2008
  %v2010 = vpop.f32.mrf.mxu0
  %v2011 = vadd.f32 0.0, %v2010
  %2012 = vmatmul.bf16.gmra.mxu0 %v1987
  %v2013 = vpop.f32.mrf.mxu0
  %v2014 = vadd.f32 0.0, %v2013
  %v2015 = vpop.f32.mrf.mxu0
  %v2016 = vadd.f32 0.0, %v2015
  %2017 = vdwg.mxu0
  %v2026 = vunpack.c.l.b16 %v1629
  %v2027 = vunpack.c.l.b16 %v1630
  %v2028 = vunpack.c.l.b16 %v1631
  %v2029 = vunpack.c.l.b16 %v1632
  %v2030 = vunpack.c.l.b16 %v1633
  %v2031 = vunpack.c.l.b16 %v1634
  %v2032 = vunpack.c.l.b16 %v1635
  %v2033 = vunpack.c.l.b16 %v1636
  %v2034 = vpack.c.b16 %v2027, %v2026
  %v2035 = vpack.c.b16 %v2029, %v2028
  %v2036 = vpack.c.b16 %v2031, %v2030
  %v2037 = vpack.c.b16 %v2033, %v2032
  %2038 = vrot.lane.b32.xlu0 %v785, 64
  %v2039 = vpop.permute.xlu0 %2038
  %2040 = vrot.lane.b32.xlu0 %v786, 64
  %v2041 = vpop.permute.xlu0 %2040
  %2042 = vrot.lane.b32.xlu0 %v787, 64
  %v2043 = vpop.permute.xlu0 %2042
  %2044 = vrot.lane.b32.xlu0 %v788, 64
  %v2045 = vpop.permute.xlu0 %2044
  %v2051 = vsel %vm1012, %v2034, 0
  %v2054 = vsel %vm1012, %v2035, 0
  %v2057 = vsel %vm1012, %v2036, 0
  %v2060 = vsel %vm1012, %v2037, 0
  %2062 = vmatpush.bf16.msra.mxu0 0
  %2063 = vmatpush.bf16.msra.mxu0 0
  %2064 = vmatpush.bf16.msra.mxu0 0
  %2065 = vmatpush.bf16.msra.mxu0 0
  %2066 = vmatpush.bf16.msra.mxu0 %v2045
  %2067 = vmatpush.bf16.msra.mxu0 %v2043
  %2068 = vmatpush.bf16.msra.mxu0 %v2041
  %2069 = vmatpush.bf16.msra.mxu0 %v2039
  %2070 = vmatmul.bf16.gmra.mxu0 %v2051
  %v2071 = vpop.f32.mrf.mxu0
  %v2072 = vadd.f32 0.0, %v2071
  %v2073 = vpop.f32.mrf.mxu0
  %v2074 = vadd.f32 0.0, %v2073
  %2075 = vmatmul.bf16.gmra.mxu0 %v2054
  %v2076 = vpop.f32.mrf.mxu0
  %v2077 = vadd.f32 0.0, %v2076
  %v2078 = vpop.f32.mrf.mxu0
  %v2079 = vadd.f32 0.0, %v2078
  %2080 = vmatmul.bf16.gmra.mxu0 %v2057
  %v2081 = vpop.f32.mrf.mxu0
  %v2082 = vadd.f32 0.0, %v2081
  %v2083 = vpop.f32.mrf.mxu0
  %v2084 = vadd.f32 0.0, %v2083
  %2085 = vmatmul.bf16.gmra.mxu0 %v2060
  %v2086 = vpop.f32.mrf.mxu0
  %v2087 = vadd.f32 0.0, %v2086
  %v2088 = vpop.f32.mrf.mxu0
  %v2089 = vadd.f32 0.0, %v2088
  %2090 = vdwg.mxu0
  %v2099 = vunpack.c.l.b16 %v1637
  %v2100 = vunpack.c.l.b16 %v1638
  %v2101 = vunpack.c.l.b16 %v1639
  %v2102 = vunpack.c.l.b16 %v1640
  %v2103 = vunpack.c.l.b16 %v1641
  %v2104 = vunpack.c.l.b16 %v1642
  %v2105 = vunpack.c.l.b16 %v1643
  %v2106 = vunpack.c.l.b16 %v1644
  %v2107 = vpack.c.b16 %v2100, %v2099
  %v2108 = vpack.c.b16 %v2102, %v2101
  %v2109 = vpack.c.b16 %v2104, %v2103
  %v2110 = vpack.c.b16 %v2106, %v2105
  %2111 = vrot.lane.b32.xlu0 %v866, 64
  %v2112 = vpop.permute.xlu0 %2111
  %2113 = vrot.lane.b32.xlu0 %v867, 64
  %v2114 = vpop.permute.xlu0 %2113
  %2115 = vrot.lane.b32.xlu0 %v868, 64
  %v2116 = vpop.permute.xlu0 %2115
  %2117 = vrot.lane.b32.xlu0 %v869, 64
  %v2118 = vpop.permute.xlu0 %2117
  %v2124 = vsel %vm1012, %v2107, 0
  %v2127 = vsel %vm1012, %v2108, 0
  %v2130 = vsel %vm1012, %v2109, 0
  %v2133 = vsel %vm1012, %v2110, 0
  %2135 = vmatpush.bf16.msra.mxu0 0
  %2136 = vmatpush.bf16.msra.mxu0 0
  %2137 = vmatpush.bf16.msra.mxu0 0
  %2138 = vmatpush.bf16.msra.mxu0 0
  %2139 = vmatpush.bf16.msra.mxu0 %v2118
  %2140 = vmatpush.bf16.msra.mxu0 %v2116
  %2141 = vmatpush.bf16.msra.mxu0 %v2114
  %2142 = vmatpush.bf16.msra.mxu0 %v2112
  %2143 = vmatmul.bf16.gmra.mxu0 %v2124
  %v2144 = vpop.f32.mrf.mxu0
  %v2145 = vadd.f32 0.0, %v2144
  %v2146 = vpop.f32.mrf.mxu0
  %v2147 = vadd.f32 0.0, %v2146
  %2148 = vmatmul.bf16.gmra.mxu0 %v2127
  %v2149 = vpop.f32.mrf.mxu0
  %v2150 = vadd.f32 0.0, %v2149
  %v2151 = vpop.f32.mrf.mxu0
  %v2152 = vadd.f32 0.0, %v2151
  %2153 = vmatmul.bf16.gmra.mxu0 %v2130
  %v2154 = vpop.f32.mrf.mxu0
  %v2155 = vadd.f32 0.0, %v2154
  %v2156 = vpop.f32.mrf.mxu0
  %v2157 = vadd.f32 0.0, %v2156
  %2158 = vmatmul.bf16.gmra.mxu0 %v2133
  %v2159 = vpop.f32.mrf.mxu0
  %v2160 = vadd.f32 0.0, %v2159
  %v2161 = vpop.f32.mrf.mxu0
  %v2162 = vadd.f32 0.0, %v2161
  %2163 = vdwg.mxu0
  %v2172 = vunpack.c.l.b16 %v1645
  %v2173 = vunpack.c.l.b16 %v1646
  %v2174 = vunpack.c.l.b16 %v1647
  %v2175 = vunpack.c.l.b16 %v1648
  %v2176 = vunpack.c.l.b16 %v1649
  %v2177 = vunpack.c.l.b16 %v1650
  %v2178 = vunpack.c.l.b16 %v1651
  %v2179 = vunpack.c.l.b16 %v1652
  %v2180 = vpack.c.b16 %v2173, %v2172
  %v2181 = vpack.c.b16 %v2175, %v2174
  %v2182 = vpack.c.b16 %v2177, %v2176
  %v2183 = vpack.c.b16 %v2179, %v2178
  %2184 = vrot.lane.b32.xlu0 %v947, 64
  %v2185 = vpop.permute.xlu0 %2184
  %2186 = vrot.lane.b32.xlu0 %v948, 64
  %v2187 = vpop.permute.xlu0 %2186
  %2188 = vrot.lane.b32.xlu0 %v949, 64
  %v2189 = vpop.permute.xlu0 %2188
  %2190 = vrot.lane.b32.xlu0 %v950, 64
  %v2191 = vpop.permute.xlu0 %2190
  %v2197 = vsel %vm1012, %v2180, 0
  %v2200 = vsel %vm1012, %v2181, 0
  %v2203 = vsel %vm1012, %v2182, 0
  %v2206 = vsel %vm1012, %v2183, 0
  %2208 = vmatpush.bf16.msra.mxu0 0
  %2209 = vmatpush.bf16.msra.mxu0 0
  %2210 = vmatpush.bf16.msra.mxu0 0
  %2211 = vmatpush.bf16.msra.mxu0 0
  %2212 = vmatpush.bf16.msra.mxu0 %v2191
  %2213 = vmatpush.bf16.msra.mxu0 %v2189
  %2214 = vmatpush.bf16.msra.mxu0 %v2187
  %2215 = vmatpush.bf16.msra.mxu0 %v2185
  %2216 = vmatmul.bf16.gmra.mxu0 %v2197
  %v2217 = vpop.f32.mrf.mxu0
  %v2218 = vadd.f32 0.0, %v2217
  %v2219 = vpop.f32.mrf.mxu0
  %v2220 = vadd.f32 0.0, %v2219
  %2221 = vmatmul.bf16.gmra.mxu0 %v2200
  %v2222 = vpop.f32.mrf.mxu0
  %v2223 = vadd.f32 0.0, %v2222
  %v2224 = vpop.f32.mrf.mxu0
  %v2225 = vadd.f32 0.0, %v2224
  %2226 = vmatmul.bf16.gmra.mxu0 %v2203
  %v2227 = vpop.f32.mrf.mxu0
  %v2228 = vadd.f32 0.0, %v2227
  %v2229 = vpop.f32.mrf.mxu0
  %v2230 = vadd.f32 0.0, %v2229
  %2231 = vmatmul.bf16.gmra.mxu0 %v2206
  %v2232 = vpop.f32.mrf.mxu0
  %v2233 = vadd.f32 0.0, %v2232
  %v2234 = vpop.f32.mrf.mxu0
  %v2235 = vadd.f32 0.0, %v2234
  %2236 = vdwg.mxu0
  %v2237 = vrcp.pop %v1399
  %v2238 = vmul.f32 %v1399, %v2237
  %v2239 = vsub.f32 1.0, %v2238
  %v2240 = vmul.f32 %v2237, %v2239
  %v2241 = vadd.f32 %v2237, %v2240
  %vm2242 = vweird.f32 %v1399
  %vm2243 = vweird.f32 %v2237
  %vm2244 = vmor %vm2242, %vm2243
  %v2245 = vsel %vm2244, %v2237, %v2241
  %v2246 = vand.u32 2147483647, %v1399
  %vm2247 = vcmp.eq.f32.partialorder %v2246, 8.507059e+37
  %v2248 = vand.u32 %v1399, 2147483648
  %v2249 = vor.u32 1.1754944e-38, %v2248
  %v2250 = vsel %vm2247, %v2249, %v2245
  %v2251 = vrcp.pop %v1402
  %v2252 = vmul.f32 %v1402, %v2251
  %v2253 = vsub.f32 1.0, %v2252
  %v2254 = vmul.f32 %v2251, %v2253
  %v2255 = vadd.f32 %v2251, %v2254
  %vm2256 = vweird.f32 %v1402
  %vm2257 = vweird.f32 %v2251
  %vm2258 = vmor %vm2256, %vm2257
  %v2259 = vsel %vm2258, %v2251, %v2255
  %v2260 = vand.u32 2147483647, %v1402
  %vm2261 = vcmp.eq.f32.partialorder %v2260, 8.507059e+37
  %v2262 = vand.u32 %v1402, 2147483648
  %v2263 = vor.u32 1.1754944e-38, %v2262
  %v2264 = vsel %vm2261, %v2263, %v2259
  %v2265 = vrcp.pop %v1405
  %v2266 = vmul.f32 %v1405, %v2265
  %v2267 = vsub.f32 1.0, %v2266
  %v2268 = vmul.f32 %v2265, %v2267
  %v2269 = vadd.f32 %v2265, %v2268
  %vm2270 = vweird.f32 %v1405
  %vm2271 = vweird.f32 %v2265
  %vm2272 = vmor %vm2270, %vm2271
  %v2273 = vsel %vm2272, %v2265, %v2269
  %v2274 = vand.u32 2147483647, %v1405
  %vm2275 = vcmp.eq.f32.partialorder %v2274, 8.507059e+37
  %v2276 = vand.u32 %v1405, 2147483648
  %v2277 = vor.u32 1.1754944e-38, %v2276
  %v2278 = vsel %vm2275, %v2277, %v2273
  %v2279 = vrcp.pop %v1408
  %v2280 = vmul.f32 %v1408, %v2279
  %v2281 = vsub.f32 1.0, %v2280
  %v2282 = vmul.f32 %v2279, %v2281
  %v2283 = vadd.f32 %v2279, %v2282
  %vm2284 = vweird.f32 %v1408
  %vm2285 = vweird.f32 %v2279
  %vm2286 = vmor %vm2284, %vm2285
  %v2287 = vsel %vm2286, %v2279, %v2283
  %v2288 = vand.u32 2147483647, %v1408
  %vm2289 = vcmp.eq.f32.partialorder %v2288, 8.507059e+37
  %v2290 = vand.u32 %v1408, 2147483648
  %v2291 = vor.u32 1.1754944e-38, %v2290
  %v2292 = vsel %vm2289, %v2291, %v2287
  %v2293 = vrcp.pop %v1411
  %v2294 = vmul.f32 %v1411, %v2293
  %v2295 = vsub.f32 1.0, %v2294
  %v2296 = vmul.f32 %v2293, %v2295
  %v2297 = vadd.f32 %v2293, %v2296
  %vm2298 = vweird.f32 %v1411
  %vm2299 = vweird.f32 %v2293
  %vm2300 = vmor %vm2298, %vm2299
  %v2301 = vsel %vm2300, %v2293, %v2297
  %v2302 = vand.u32 2147483647, %v1411
  %vm2303 = vcmp.eq.f32.partialorder %v2302, 8.507059e+37
  %v2304 = vand.u32 %v1411, 2147483648
  %v2305 = vor.u32 1.1754944e-38, %v2304
  %v2306 = vsel %vm2303, %v2305, %v2301
  %v2307 = vrcp.pop %v1414
  %v2308 = vmul.f32 %v1414, %v2307
  %v2309 = vsub.f32 1.0, %v2308
  %v2310 = vmul.f32 %v2307, %v2309
  %v2311 = vadd.f32 %v2307, %v2310
  %vm2312 = vweird.f32 %v1414
  %vm2313 = vweird.f32 %v2307
  %vm2314 = vmor %vm2312, %vm2313
  %v2315 = vsel %vm2314, %v2307, %v2311
  %v2316 = vand.u32 2147483647, %v1414
  %vm2317 = vcmp.eq.f32.partialorder %v2316, 8.507059e+37
  %v2318 = vand.u32 %v1414, 2147483648
  %v2319 = vor.u32 1.1754944e-38, %v2318
  %v2320 = vsel %vm2317, %v2319, %v2315
  %v2321 = vrcp.pop %v1417
  %v2322 = vmul.f32 %v1417, %v2321
  %v2323 = vsub.f32 1.0, %v2322
  %v2324 = vmul.f32 %v2321, %v2323
  %v2325 = vadd.f32 %v2321, %v2324
  %vm2326 = vweird.f32 %v1417
  %vm2327 = vweird.f32 %v2321
  %vm2328 = vmor %vm2326, %vm2327
  %v2329 = vsel %vm2328, %v2321, %v2325
  %v2330 = vand.u32 2147483647, %v1417
  %vm2331 = vcmp.eq.f32.partialorder %v2330, 8.507059e+37
  %v2332 = vand.u32 %v1417, 2147483648
  %v2333 = vor.u32 1.1754944e-38, %v2332
  %v2334 = vsel %vm2331, %v2333, %v2329
  %v2335 = vrcp.pop %v1420
  %v2336 = vmul.f32 %v1420, %v2335
  %v2337 = vsub.f32 1.0, %v2336
  %v2338 = vmul.f32 %v2335, %v2337
  %v2339 = vadd.f32 %v2335, %v2338
  %vm2340 = vweird.f32 %v1420
  %vm2341 = vweird.f32 %v2335
  %vm2342 = vmor %vm2340, %vm2341
  %v2343 = vsel %vm2342, %v2335, %v2339
  %v2344 = vand.u32 2147483647, %v1420
  %vm2345 = vcmp.eq.f32.partialorder %v2344, 8.507059e+37
  %v2346 = vand.u32 %v1420, 2147483648
  %v2347 = vor.u32 1.1754944e-38, %v2346
  %v2348 = vsel %vm2345, %v2347, %v2343
  %v2349 = vrcp.pop %v1423
  %v2350 = vmul.f32 %v1423, %v2349
  %v2351 = vsub.f32 1.0, %v2350
  %v2352 = vmul.f32 %v2349, %v2351
  %v2353 = vadd.f32 %v2349, %v2352
  %vm2354 = vweird.f32 %v1423
  %vm2355 = vweird.f32 %v2349
  %vm2356 = vmor %vm2354, %vm2355
  %v2357 = vsel %vm2356, %v2349, %v2353
  %v2358 = vand.u32 2147483647, %v1423
  %vm2359 = vcmp.eq.f32.partialorder %v2358, 8.507059e+37
  %v2360 = vand.u32 %v1423, 2147483648
  %v2361 = vor.u32 1.1754944e-38, %v2360
  %v2362 = vsel %vm2359, %v2361, %v2357
  %v2363 = vrcp.pop %v1426
  %v2364 = vmul.f32 %v1426, %v2363
  %v2365 = vsub.f32 1.0, %v2364
  %v2366 = vmul.f32 %v2363, %v2365
  %v2367 = vadd.f32 %v2363, %v2366
  %vm2368 = vweird.f32 %v1426
  %vm2369 = vweird.f32 %v2363
  %vm2370 = vmor %vm2368, %vm2369
  %v2371 = vsel %vm2370, %v2363, %v2367
  %v2372 = vand.u32 2147483647, %v1426
  %vm2373 = vcmp.eq.f32.partialorder %v2372, 8.507059e+37
  %v2374 = vand.u32 %v1426, 2147483648
  %v2375 = vor.u32 1.1754944e-38, %v2374
  %v2376 = vsel %vm2373, %v2375, %v2371
  %v2377 = vrcp.pop %v1429
  %v2378 = vmul.f32 %v1429, %v2377
  %v2379 = vsub.f32 1.0, %v2378
  %v2380 = vmul.f32 %v2377, %v2379
  %v2381 = vadd.f32 %v2377, %v2380
  %vm2382 = vweird.f32 %v1429
  %vm2383 = vweird.f32 %v2377
  %vm2384 = vmor %vm2382, %vm2383
  %v2385 = vsel %vm2384, %v2377, %v2381
  %v2386 = vand.u32 2147483647, %v1429
  %vm2387 = vcmp.eq.f32.partialorder %v2386, 8.507059e+37
  %v2388 = vand.u32 %v1429, 2147483648
  %v2389 = vor.u32 1.1754944e-38, %v2388
  %v2390 = vsel %vm2387, %v2389, %v2385
  %v2391 = vrcp.pop %v1432
  %v2392 = vmul.f32 %v1432, %v2391
  %v2393 = vsub.f32 1.0, %v2392
  %v2394 = vmul.f32 %v2391, %v2393
  %v2395 = vadd.f32 %v2391, %v2394
  %vm2396 = vweird.f32 %v1432
  %vm2397 = vweird.f32 %v2391
  %vm2398 = vmor %vm2396, %vm2397
  %v2399 = vsel %vm2398, %v2391, %v2395
  %v2400 = vand.u32 2147483647, %v1432
  %vm2401 = vcmp.eq.f32.partialorder %v2400, 8.507059e+37
  %v2402 = vand.u32 %v1432, 2147483648
  %v2403 = vor.u32 1.1754944e-38, %v2402
  %v2404 = vsel %vm2401, %v2403, %v2399
  %v2405 = vrcp.pop %v1435
  %v2406 = vmul.f32 %v1435, %v2405
  %v2407 = vsub.f32 1.0, %v2406
  %v2408 = vmul.f32 %v2405, %v2407
  %v2409 = vadd.f32 %v2405, %v2408
  %vm2410 = vweird.f32 %v1435
  %vm2411 = vweird.f32 %v2405
  %vm2412 = vmor %vm2410, %vm2411
  %v2413 = vsel %vm2412, %v2405, %v2409
  %v2414 = vand.u32 2147483647, %v1435
  %vm2415 = vcmp.eq.f32.partialorder %v2414, 8.507059e+37
  %v2416 = vand.u32 %v1435, 2147483648
  %v2417 = vor.u32 1.1754944e-38, %v2416
  %v2418 = vsel %vm2415, %v2417, %v2413
  %v2419 = vrcp.pop %v1438
  %v2420 = vmul.f32 %v1438, %v2419
  %v2421 = vsub.f32 1.0, %v2420
  %v2422 = vmul.f32 %v2419, %v2421
  %v2423 = vadd.f32 %v2419, %v2422
  %vm2424 = vweird.f32 %v1438
  %vm2425 = vweird.f32 %v2419
  %vm2426 = vmor %vm2424, %vm2425
  %v2427 = vsel %vm2426, %v2419, %v2423
  %v2428 = vand.u32 2147483647, %v1438
  %vm2429 = vcmp.eq.f32.partialorder %v2428, 8.507059e+37
  %v2430 = vand.u32 %v1438, 2147483648
  %v2431 = vor.u32 1.1754944e-38, %v2430
  %v2432 = vsel %vm2429, %v2431, %v2427
  %v2433 = vrcp.pop %v1441
  %v2434 = vmul.f32 %v1441, %v2433
  %v2435 = vsub.f32 1.0, %v2434
  %v2436 = vmul.f32 %v2433, %v2435
  %v2437 = vadd.f32 %v2433, %v2436
  %vm2438 = vweird.f32 %v1441
  %vm2439 = vweird.f32 %v2433
  %vm2440 = vmor %vm2438, %vm2439
  %v2441 = vsel %vm2440, %v2433, %v2437
  %v2442 = vand.u32 2147483647, %v1441
  %vm2443 = vcmp.eq.f32.partialorder %v2442, 8.507059e+37
  %v2444 = vand.u32 %v1441, 2147483648
  %v2445 = vor.u32 1.1754944e-38, %v2444
  %v2446 = vsel %vm2443, %v2445, %v2441
  %v2447 = vrcp.pop %v1444
  %v2448 = vmul.f32 %v1444, %v2447
  %v2449 = vsub.f32 1.0, %v2448
  %v2450 = vmul.f32 %v2447, %v2449
  %v2451 = vadd.f32 %v2447, %v2450
  %vm2452 = vweird.f32 %v1444
  %vm2453 = vweird.f32 %v2447
  %vm2454 = vmor %vm2452, %vm2453
  %v2455 = vsel %vm2454, %v2447, %v2451
  %v2456 = vand.u32 2147483647, %v1444
  %vm2457 = vcmp.eq.f32.partialorder %v2456, 8.507059e+37
  %v2458 = vand.u32 %v1444, 2147483648
  %v2459 = vor.u32 1.1754944e-38, %v2458
  %v2460 = vsel %vm2457, %v2459, %v2455
  %v2461 = vrcp.pop %v1447
  %v2462 = vmul.f32 %v1447, %v2461
  %v2463 = vsub.f32 1.0, %v2462
  %v2464 = vmul.f32 %v2461, %v2463
  %v2465 = vadd.f32 %v2461, %v2464
  %vm2466 = vweird.f32 %v1447
  %vm2467 = vweird.f32 %v2461
  %vm2468 = vmor %vm2466, %vm2467
  %v2469 = vsel %vm2468, %v2461, %v2465
  %v2470 = vand.u32 2147483647, %v1447
  %vm2471 = vcmp.eq.f32.partialorder %v2470, 8.507059e+37
  %v2472 = vand.u32 %v1447, 2147483648
  %v2473 = vor.u32 1.1754944e-38, %v2472
  %v2474 = vsel %vm2471, %v2473, %v2469
  %v2475 = vrcp.pop %v1450
  %v2476 = vmul.f32 %v1450, %v2475
  %v2477 = vsub.f32 1.0, %v2476
  %v2478 = vmul.f32 %v2475, %v2477
  %v2479 = vadd.f32 %v2475, %v2478
  %vm2480 = vweird.f32 %v1450
  %vm2481 = vweird.f32 %v2475
  %vm2482 = vmor %vm2480, %vm2481
  %v2483 = vsel %vm2482, %v2475, %v2479
  %v2484 = vand.u32 2147483647, %v1450
  %vm2485 = vcmp.eq.f32.partialorder %v2484, 8.507059e+37
  %v2486 = vand.u32 %v1450, 2147483648
  %v2487 = vor.u32 1.1754944e-38, %v2486
  %v2488 = vsel %vm2485, %v2487, %v2483
  %v2489 = vrcp.pop %v1453
  %v2490 = vmul.f32 %v1453, %v2489
  %v2491 = vsub.f32 1.0, %v2490
  %v2492 = vmul.f32 %v2489, %v2491
  %v2493 = vadd.f32 %v2489, %v2492
  %vm2494 = vweird.f32 %v1453
  %vm2495 = vweird.f32 %v2489
  %vm2496 = vmor %vm2494, %vm2495
  %v2497 = vsel %vm2496, %v2489, %v2493
  %v2498 = vand.u32 2147483647, %v1453
  %vm2499 = vcmp.eq.f32.partialorder %v2498, 8.507059e+37
  %v2500 = vand.u32 %v1453, 2147483648
  %v2501 = vor.u32 1.1754944e-38, %v2500
  %v2502 = vsel %vm2499, %v2501, %v2497
  %v2503 = vrcp.pop %v1456
  %v2504 = vmul.f32 %v1456, %v2503
  %v2505 = vsub.f32 1.0, %v2504
  %v2506 = vmul.f32 %v2503, %v2505
  %v2507 = vadd.f32 %v2503, %v2506
  %vm2508 = vweird.f32 %v1456
  %vm2509 = vweird.f32 %v2503
  %vm2510 = vmor %vm2508, %vm2509
  %v2511 = vsel %vm2510, %v2503, %v2507
  %v2512 = vand.u32 2147483647, %v1456
  %vm2513 = vcmp.eq.f32.partialorder %v2512, 8.507059e+37
  %v2514 = vand.u32 %v1456, 2147483648
  %v2515 = vor.u32 1.1754944e-38, %v2514
  %v2516 = vsel %vm2513, %v2515, %v2511
  %v2517 = vrcp.pop %v1459
  %v2518 = vmul.f32 %v1459, %v2517
  %v2519 = vsub.f32 1.0, %v2518
  %v2520 = vmul.f32 %v2517, %v2519
  %v2521 = vadd.f32 %v2517, %v2520
  %vm2522 = vweird.f32 %v1459
  %vm2523 = vweird.f32 %v2517
  %vm2524 = vmor %vm2522, %vm2523
  %v2525 = vsel %vm2524, %v2517, %v2521
  %v2526 = vand.u32 2147483647, %v1459
  %vm2527 = vcmp.eq.f32.partialorder %v2526, 8.507059e+37
  %v2528 = vand.u32 %v1459, 2147483648
  %v2529 = vor.u32 1.1754944e-38, %v2528
  %v2530 = vsel %vm2527, %v2529, %v2525
  %v2531 = vrcp.pop %v1462
  %v2532 = vmul.f32 %v1462, %v2531
  %v2533 = vsub.f32 1.0, %v2532
  %v2534 = vmul.f32 %v2531, %v2533
  %v2535 = vadd.f32 %v2531, %v2534
  %vm2536 = vweird.f32 %v1462
  %vm2537 = vweird.f32 %v2531
  %vm2538 = vmor %vm2536, %vm2537
  %v2539 = vsel %vm2538, %v2531, %v2535
  %v2540 = vand.u32 2147483647, %v1462
  %vm2541 = vcmp.eq.f32.partialorder %v2540, 8.507059e+37
  %v2542 = vand.u32 %v1462, 2147483648
  %v2543 = vor.u32 1.1754944e-38, %v2542
  %v2544 = vsel %vm2541, %v2543, %v2539
  %v2545 = vrcp.pop %v1465
  %v2546 = vmul.f32 %v1465, %v2545
  %v2547 = vsub.f32 1.0, %v2546
  %v2548 = vmul.f32 %v2545, %v2547
  %v2549 = vadd.f32 %v2545, %v2548
  %vm2550 = vweird.f32 %v1465
  %vm2551 = vweird.f32 %v2545
  %vm2552 = vmor %vm2550, %vm2551
  %v2553 = vsel %vm2552, %v2545, %v2549
  %v2554 = vand.u32 2147483647, %v1465
  %vm2555 = vcmp.eq.f32.partialorder %v2554, 8.507059e+37
  %v2556 = vand.u32 %v1465, 2147483648
  %v2557 = vor.u32 1.1754944e-38, %v2556
  %v2558 = vsel %vm2555, %v2557, %v2553
  %v2559 = vrcp.pop %v1468
  %v2560 = vmul.f32 %v1468, %v2559
  %v2561 = vsub.f32 1.0, %v2560
  %v2562 = vmul.f32 %v2559, %v2561
  %v2563 = vadd.f32 %v2559, %v2562
  %vm2564 = vweird.f32 %v1468
  %vm2565 = vweird.f32 %v2559
  %vm2566 = vmor %vm2564, %vm2565
  %v2567 = vsel %vm2566, %v2559, %v2563
  %v2568 = vand.u32 2147483647, %v1468
  %vm2569 = vcmp.eq.f32.partialorder %v2568, 8.507059e+37
  %v2570 = vand.u32 %v1468, 2147483648
  %v2571 = vor.u32 1.1754944e-38, %v2570
  %v2572 = vsel %vm2569, %v2571, %v2567
  %v2573 = vrcp.pop %v1471
  %v2574 = vmul.f32 %v1471, %v2573
  %v2575 = vsub.f32 1.0, %v2574
  %v2576 = vmul.f32 %v2573, %v2575
  %v2577 = vadd.f32 %v2573, %v2576
  %vm2578 = vweird.f32 %v1471
  %vm2579 = vweird.f32 %v2573
  %vm2580 = vmor %vm2578, %vm2579
  %v2581 = vsel %vm2580, %v2573, %v2577
  %v2582 = vand.u32 2147483647, %v1471
  %vm2583 = vcmp.eq.f32.partialorder %v2582, 8.507059e+37
  %v2584 = vand.u32 %v1471, 2147483648
  %v2585 = vor.u32 1.1754944e-38, %v2584
  %v2586 = vsel %vm2583, %v2585, %v2581
  %v2587 = vrcp.pop %v1474
  %v2588 = vmul.f32 %v1474, %v2587
  %v2589 = vsub.f32 1.0, %v2588
  %v2590 = vmul.f32 %v2587, %v2589
  %v2591 = vadd.f32 %v2587, %v2590
  %vm2592 = vweird.f32 %v1474
  %vm2593 = vweird.f32 %v2587
  %vm2594 = vmor %vm2592, %vm2593
  %v2595 = vsel %vm2594, %v2587, %v2591
  %v2596 = vand.u32 2147483647, %v1474
  %vm2597 = vcmp.eq.f32.partialorder %v2596, 8.507059e+37
  %v2598 = vand.u32 %v1474, 2147483648
  %v2599 = vor.u32 1.1754944e-38, %v2598
  %v2600 = vsel %vm2597, %v2599, %v2595
  %v2601 = vrcp.pop %v1477
  %v2602 = vmul.f32 %v1477, %v2601
  %v2603 = vsub.f32 1.0, %v2602
  %v2604 = vmul.f32 %v2601, %v2603
  %v2605 = vadd.f32 %v2601, %v2604
  %vm2606 = vweird.f32 %v1477
  %vm2607 = vweird.f32 %v2601
  %vm2608 = vmor %vm2606, %vm2607
  %v2609 = vsel %vm2608, %v2601, %v2605
  %v2610 = vand.u32 2147483647, %v1477
  %vm2611 = vcmp.eq.f32.partialorder %v2610, 8.507059e+37
  %v2612 = vand.u32 %v1477, 2147483648
  %v2613 = vor.u32 1.1754944e-38, %v2612
  %v2614 = vsel %vm2611, %v2613, %v2609
  %v2615 = vrcp.pop %v1480
  %v2616 = vmul.f32 %v1480, %v2615
  %v2617 = vsub.f32 1.0, %v2616
  %v2618 = vmul.f32 %v2615, %v2617
  %v2619 = vadd.f32 %v2615, %v2618
  %vm2620 = vweird.f32 %v1480
  %vm2621 = vweird.f32 %v2615
  %vm2622 = vmor %vm2620, %vm2621
  %v2623 = vsel %vm2622, %v2615, %v2619
  %v2624 = vand.u32 2147483647, %v1480
  %vm2625 = vcmp.eq.f32.partialorder %v2624, 8.507059e+37
  %v2626 = vand.u32 %v1480, 2147483648
  %v2627 = vor.u32 1.1754944e-38, %v2626
  %v2628 = vsel %vm2625, %v2627, %v2623
  %v2629 = vrcp.pop %v1483
  %v2630 = vmul.f32 %v1483, %v2629
  %v2631 = vsub.f32 1.0, %v2630
  %v2632 = vmul.f32 %v2629, %v2631
  %v2633 = vadd.f32 %v2629, %v2632
  %vm2634 = vweird.f32 %v1483
  %vm2635 = vweird.f32 %v2629
  %vm2636 = vmor %vm2634, %vm2635
  %v2637 = vsel %vm2636, %v2629, %v2633
  %v2638 = vand.u32 2147483647, %v1483
  %vm2639 = vcmp.eq.f32.partialorder %v2638, 8.507059e+37
  %v2640 = vand.u32 %v1483, 2147483648
  %v2641 = vor.u32 1.1754944e-38, %v2640
  %v2642 = vsel %vm2639, %v2641, %v2637
  %v2643 = vrcp.pop %v1486
  %v2644 = vmul.f32 %v1486, %v2643
  %v2645 = vsub.f32 1.0, %v2644
  %v2646 = vmul.f32 %v2643, %v2645
  %v2647 = vadd.f32 %v2643, %v2646
  %vm2648 = vweird.f32 %v1486
  %vm2649 = vweird.f32 %v2643
  %vm2650 = vmor %vm2648, %vm2649
  %v2651 = vsel %vm2650, %v2643, %v2647
  %v2652 = vand.u32 2147483647, %v1486
  %vm2653 = vcmp.eq.f32.partialorder %v2652, 8.507059e+37
  %v2654 = vand.u32 %v1486, 2147483648
  %v2655 = vor.u32 1.1754944e-38, %v2654
  %v2656 = vsel %vm2653, %v2655, %v2651
  %v2657 = vrcp.pop %v1489
  %v2658 = vmul.f32 %v1489, %v2657
  %v2659 = vsub.f32 1.0, %v2658
  %v2660 = vmul.f32 %v2657, %v2659
  %v2661 = vadd.f32 %v2657, %v2660
  %vm2662 = vweird.f32 %v1489
  %vm2663 = vweird.f32 %v2657
  %vm2664 = vmor %vm2662, %vm2663
  %v2665 = vsel %vm2664, %v2657, %v2661
  %v2666 = vand.u32 2147483647, %v1489
  %vm2667 = vcmp.eq.f32.partialorder %v2666, 8.507059e+37
  %v2668 = vand.u32 %v1489, 2147483648
  %v2669 = vor.u32 1.1754944e-38, %v2668
  %v2670 = vsel %vm2667, %v2669, %v2665
  %v2671 = vrcp.pop %v1492
  %v2672 = vmul.f32 %v1492, %v2671
  %v2673 = vsub.f32 1.0, %v2672
  %v2674 = vmul.f32 %v2671, %v2673
  %v2675 = vadd.f32 %v2671, %v2674
  %vm2676 = vweird.f32 %v1492
  %vm2677 = vweird.f32 %v2671
  %vm2678 = vmor %vm2676, %vm2677
  %v2679 = vsel %vm2678, %v2671, %v2675
  %v2680 = vand.u32 2147483647, %v1492
  %vm2681 = vcmp.eq.f32.partialorder %v2680, 8.507059e+37
  %v2682 = vand.u32 %v1492, 2147483648
  %v2683 = vor.u32 1.1754944e-38, %v2682
  %v2684 = vsel %vm2681, %v2683, %v2679
  %v2685 = vrcp.pop %v1495
  %v2686 = vmul.f32 %v1495, %v2685
  %v2687 = vsub.f32 1.0, %v2686
  %v2688 = vmul.f32 %v2685, %v2687
  %v2689 = vadd.f32 %v2685, %v2688
  %vm2690 = vweird.f32 %v1495
  %vm2691 = vweird.f32 %v2685
  %vm2692 = vmor %vm2690, %vm2691
  %v2693 = vsel %vm2692, %v2685, %v2689
  %v2694 = vand.u32 2147483647, %v1495
  %vm2695 = vcmp.eq.f32.partialorder %v2694, 8.507059e+37
  %v2696 = vand.u32 %v1495, 2147483648
  %v2697 = vor.u32 1.1754944e-38, %v2696
  %v2698 = vsel %vm2695, %v2697, %v2693
  %v2699 = vrcp.pop %v1498
  %v2700 = vmul.f32 %v1498, %v2699
  %v2701 = vsub.f32 1.0, %v2700
  %v2702 = vmul.f32 %v2699, %v2701
  %v2703 = vadd.f32 %v2699, %v2702
  %vm2704 = vweird.f32 %v1498
  %vm2705 = vweird.f32 %v2699
  %vm2706 = vmor %vm2704, %vm2705
  %v2707 = vsel %vm2706, %v2699, %v2703
  %v2708 = vand.u32 2147483647, %v1498
  %vm2709 = vcmp.eq.f32.partialorder %v2708, 8.507059e+37
  %v2710 = vand.u32 %v1498, 2147483648
  %v2711 = vor.u32 1.1754944e-38, %v2710
  %v2712 = vsel %vm2709, %v2711, %v2707
  %v2713 = vrcp.pop %v1501
  %v2714 = vmul.f32 %v1501, %v2713
  %v2715 = vsub.f32 1.0, %v2714
  %v2716 = vmul.f32 %v2713, %v2715
  %v2717 = vadd.f32 %v2713, %v2716
  %vm2718 = vweird.f32 %v1501
  %vm2719 = vweird.f32 %v2713
  %vm2720 = vmor %vm2718, %vm2719
  %v2721 = vsel %vm2720, %v2713, %v2717
  %v2722 = vand.u32 2147483647, %v1501
  %vm2723 = vcmp.eq.f32.partialorder %v2722, 8.507059e+37
  %v2724 = vand.u32 %v1501, 2147483648
  %v2725 = vor.u32 1.1754944e-38, %v2724
  %v2726 = vsel %vm2723, %v2725, %v2721
  %v2727 = vrcp.pop %v1504
  %v2728 = vmul.f32 %v1504, %v2727
  %v2729 = vsub.f32 1.0, %v2728
  %v2730 = vmul.f32 %v2727, %v2729
  %v2731 = vadd.f32 %v2727, %v2730
  %vm2732 = vweird.f32 %v1504
  %vm2733 = vweird.f32 %v2727
  %vm2734 = vmor %vm2732, %vm2733
  %v2735 = vsel %vm2734, %v2727, %v2731
  %v2736 = vand.u32 2147483647, %v1504
  %vm2737 = vcmp.eq.f32.partialorder %v2736, 8.507059e+37
  %v2738 = vand.u32 %v1504, 2147483648
  %v2739 = vor.u32 1.1754944e-38, %v2738
  %v2740 = vsel %vm2737, %v2739, %v2735
  %v2741 = vrcp.pop %v1507
  %v2742 = vmul.f32 %v1507, %v2741
  %v2743 = vsub.f32 1.0, %v2742
  %v2744 = vmul.f32 %v2741, %v2743
  %v2745 = vadd.f32 %v2741, %v2744
  %vm2746 = vweird.f32 %v1507
  %vm2747 = vweird.f32 %v2741
  %vm2748 = vmor %vm2746, %vm2747
  %v2749 = vsel %vm2748, %v2741, %v2745
  %v2750 = vand.u32 2147483647, %v1507
  %vm2751 = vcmp.eq.f32.partialorder %v2750, 8.507059e+37
  %v2752 = vand.u32 %v1507, 2147483648
  %v2753 = vor.u32 1.1754944e-38, %v2752
  %v2754 = vsel %vm2751, %v2753, %v2749
  %v2755 = vrcp.pop %v1510
  %v2756 = vmul.f32 %v1510, %v2755
  %v2757 = vsub.f32 1.0, %v2756
  %v2758 = vmul.f32 %v2755, %v2757
  %v2759 = vadd.f32 %v2755, %v2758
  %vm2760 = vweird.f32 %v1510
  %vm2761 = vweird.f32 %v2755
  %vm2762 = vmor %vm2760, %vm2761
  %v2763 = vsel %vm2762, %v2755, %v2759
  %v2764 = vand.u32 2147483647, %v1510
  %vm2765 = vcmp.eq.f32.partialorder %v2764, 8.507059e+37
  %v2766 = vand.u32 %v1510, 2147483648
  %v2767 = vor.u32 1.1754944e-38, %v2766
  %v2768 = vsel %vm2765, %v2767, %v2763
  %v2769 = vrcp.pop %v1513
  %v2770 = vmul.f32 %v1513, %v2769
  %v2771 = vsub.f32 1.0, %v2770
  %v2772 = vmul.f32 %v2769, %v2771
  %v2773 = vadd.f32 %v2769, %v2772
  %vm2774 = vweird.f32 %v1513
  %vm2775 = vweird.f32 %v2769
  %vm2776 = vmor %vm2774, %vm2775
  %v2777 = vsel %vm2776, %v2769, %v2773
  %v2778 = vand.u32 2147483647, %v1513
  %vm2779 = vcmp.eq.f32.partialorder %v2778, 8.507059e+37
  %v2780 = vand.u32 %v1513, 2147483648
  %v2781 = vor.u32 1.1754944e-38, %v2780
  %v2782 = vsel %vm2779, %v2781, %v2777
  %v2783 = vrcp.pop %v1516
  %v2784 = vmul.f32 %v1516, %v2783
  %v2785 = vsub.f32 1.0, %v2784
  %v2786 = vmul.f32 %v2783, %v2785
  %v2787 = vadd.f32 %v2783, %v2786
  %vm2788 = vweird.f32 %v1516
  %vm2789 = vweird.f32 %v2783
  %vm2790 = vmor %vm2788, %vm2789
  %v2791 = vsel %vm2790, %v2783, %v2787
  %v2792 = vand.u32 2147483647, %v1516
  %vm2793 = vcmp.eq.f32.partialorder %v2792, 8.507059e+37
  %v2794 = vand.u32 %v1516, 2147483648
  %v2795 = vor.u32 1.1754944e-38, %v2794
  %v2796 = vsel %vm2793, %v2795, %v2791
  %v2797 = vrcp.pop %v1519
  %v2798 = vmul.f32 %v1519, %v2797
  %v2799 = vsub.f32 1.0, %v2798
  %v2800 = vmul.f32 %v2797, %v2799
  %v2801 = vadd.f32 %v2797, %v2800
  %vm2802 = vweird.f32 %v1519
  %vm2803 = vweird.f32 %v2797
  %vm2804 = vmor %vm2802, %vm2803
  %v2805 = vsel %vm2804, %v2797, %v2801
  %v2806 = vand.u32 2147483647, %v1519
  %vm2807 = vcmp.eq.f32.partialorder %v2806, 8.507059e+37
  %v2808 = vand.u32 %v1519, 2147483648
  %v2809 = vor.u32 1.1754944e-38, %v2808
  %v2810 = vsel %vm2807, %v2809, %v2805
  %v2811 = vrcp.pop %v1522
  %v2812 = vmul.f32 %v1522, %v2811
  %v2813 = vsub.f32 1.0, %v2812
  %v2814 = vmul.f32 %v2811, %v2813
  %v2815 = vadd.f32 %v2811, %v2814
  %vm2816 = vweird.f32 %v1522
  %vm2817 = vweird.f32 %v2811
  %vm2818 = vmor %vm2816, %vm2817
  %v2819 = vsel %vm2818, %v2811, %v2815
  %v2820 = vand.u32 2147483647, %v1522
  %vm2821 = vcmp.eq.f32.partialorder %v2820, 8.507059e+37
  %v2822 = vand.u32 %v1522, 2147483648
  %v2823 = vor.u32 1.1754944e-38, %v2822
  %v2824 = vsel %vm2821, %v2823, %v2819
  %v2825 = vrcp.pop %v1525
  %v2826 = vmul.f32 %v1525, %v2825
  %v2827 = vsub.f32 1.0, %v2826
  %v2828 = vmul.f32 %v2825, %v2827
  %v2829 = vadd.f32 %v2825, %v2828
  %vm2830 = vweird.f32 %v1525
  %vm2831 = vweird.f32 %v2825
  %vm2832 = vmor %vm2830, %vm2831
  %v2833 = vsel %vm2832, %v2825, %v2829
  %v2834 = vand.u32 2147483647, %v1525
  %vm2835 = vcmp.eq.f32.partialorder %v2834, 8.507059e+37
  %v2836 = vand.u32 %v1525, 2147483648
  %v2837 = vor.u32 1.1754944e-38, %v2836
  %v2838 = vsel %vm2835, %v2837, %v2833
  %v2839 = vrcp.pop %v1528
  %v2840 = vmul.f32 %v1528, %v2839
  %v2841 = vsub.f32 1.0, %v2840
  %v2842 = vmul.f32 %v2839, %v2841
  %v2843 = vadd.f32 %v2839, %v2842
  %vm2844 = vweird.f32 %v1528
  %vm2845 = vweird.f32 %v2839
  %vm2846 = vmor %vm2844, %vm2845
  %v2847 = vsel %vm2846, %v2839, %v2843
  %v2848 = vand.u32 2147483647, %v1528
  %vm2849 = vcmp.eq.f32.partialorder %v2848, 8.507059e+37
  %v2850 = vand.u32 %v1528, 2147483648
  %v2851 = vor.u32 1.1754944e-38, %v2850
  %v2852 = vsel %vm2849, %v2851, %v2847
  %v2853 = vrcp.pop %v1531
  %v2854 = vmul.f32 %v1531, %v2853
  %v2855 = vsub.f32 1.0, %v2854
  %v2856 = vmul.f32 %v2853, %v2855
  %v2857 = vadd.f32 %v2853, %v2856
  %vm2858 = vweird.f32 %v1531
  %vm2859 = vweird.f32 %v2853
  %vm2860 = vmor %vm2858, %vm2859
  %v2861 = vsel %vm2860, %v2853, %v2857
  %v2862 = vand.u32 2147483647, %v1531
  %vm2863 = vcmp.eq.f32.partialorder %v2862, 8.507059e+37
  %v2864 = vand.u32 %v1531, 2147483648
  %v2865 = vor.u32 1.1754944e-38, %v2864
  %v2866 = vsel %vm2863, %v2865, %v2861
  %v2867 = vrcp.pop %v1534
  %v2868 = vmul.f32 %v1534, %v2867
  %v2869 = vsub.f32 1.0, %v2868
  %v2870 = vmul.f32 %v2867, %v2869
  %v2871 = vadd.f32 %v2867, %v2870
  %vm2872 = vweird.f32 %v1534
  %vm2873 = vweird.f32 %v2867
  %vm2874 = vmor %vm2872, %vm2873
  %v2875 = vsel %vm2874, %v2867, %v2871
  %v2876 = vand.u32 2147483647, %v1534
  %vm2877 = vcmp.eq.f32.partialorder %v2876, 8.507059e+37
  %v2878 = vand.u32 %v1534, 2147483648
  %v2879 = vor.u32 1.1754944e-38, %v2878
  %v2880 = vsel %vm2877, %v2879, %v2875
  %v2881 = vrcp.pop %v1537
  %v2882 = vmul.f32 %v1537, %v2881
  %v2883 = vsub.f32 1.0, %v2882
  %v2884 = vmul.f32 %v2881, %v2883
  %v2885 = vadd.f32 %v2881, %v2884
  %vm2886 = vweird.f32 %v1537
  %vm2887 = vweird.f32 %v2881
  %vm2888 = vmor %vm2886, %vm2887
  %v2889 = vsel %vm2888, %v2881, %v2885
  %v2890 = vand.u32 2147483647, %v1537
  %vm2891 = vcmp.eq.f32.partialorder %v2890, 8.507059e+37
  %v2892 = vand.u32 %v1537, 2147483648
  %v2893 = vor.u32 1.1754944e-38, %v2892
  %v2894 = vsel %vm2891, %v2893, %v2889
  %v2895 = vrcp.pop %v1540
  %v2896 = vmul.f32 %v1540, %v2895
  %v2897 = vsub.f32 1.0, %v2896
  %v2898 = vmul.f32 %v2895, %v2897
  %v2899 = vadd.f32 %v2895, %v2898
  %vm2900 = vweird.f32 %v1540
  %vm2901 = vweird.f32 %v2895
  %vm2902 = vmor %vm2900, %vm2901
  %v2903 = vsel %vm2902, %v2895, %v2899
  %v2904 = vand.u32 2147483647, %v1540
  %vm2905 = vcmp.eq.f32.partialorder %v2904, 8.507059e+37
  %v2906 = vand.u32 %v1540, 2147483648
  %v2907 = vor.u32 1.1754944e-38, %v2906
  %v2908 = vsel %vm2905, %v2907, %v2903
  %v2909 = vrcp.pop %v1543
  %v2910 = vmul.f32 %v1543, %v2909
  %v2911 = vsub.f32 1.0, %v2910
  %v2912 = vmul.f32 %v2909, %v2911
  %v2913 = vadd.f32 %v2909, %v2912
  %vm2914 = vweird.f32 %v1543
  %vm2915 = vweird.f32 %v2909
  %vm2916 = vmor %vm2914, %vm2915
  %v2917 = vsel %vm2916, %v2909, %v2913
  %v2918 = vand.u32 2147483647, %v1543
  %vm2919 = vcmp.eq.f32.partialorder %v2918, 8.507059e+37
  %v2920 = vand.u32 %v1543, 2147483648
  %v2921 = vor.u32 1.1754944e-38, %v2920
  %v2922 = vsel %vm2919, %v2921, %v2917
  %v2923 = vrcp.pop %v1546
  %v2924 = vmul.f32 %v1546, %v2923
  %v2925 = vsub.f32 1.0, %v2924
  %v2926 = vmul.f32 %v2923, %v2925
  %v2927 = vadd.f32 %v2923, %v2926
  %vm2928 = vweird.f32 %v1546
  %vm2929 = vweird.f32 %v2923
  %vm2930 = vmor %vm2928, %vm2929
  %v2931 = vsel %vm2930, %v2923, %v2927
  %v2932 = vand.u32 2147483647, %v1546
  %vm2933 = vcmp.eq.f32.partialorder %v2932, 8.507059e+37
  %v2934 = vand.u32 %v1546, 2147483648
  %v2935 = vor.u32 1.1754944e-38, %v2934
  %v2936 = vsel %vm2933, %v2935, %v2931
  %v2937 = vrcp.pop %v1549
  %v2938 = vmul.f32 %v1549, %v2937
  %v2939 = vsub.f32 1.0, %v2938
  %v2940 = vmul.f32 %v2937, %v2939
  %v2941 = vadd.f32 %v2937, %v2940
  %vm2942 = vweird.f32 %v1549
  %vm2943 = vweird.f32 %v2937
  %vm2944 = vmor %vm2942, %vm2943
  %v2945 = vsel %vm2944, %v2937, %v2941
  %v2946 = vand.u32 2147483647, %v1549
  %vm2947 = vcmp.eq.f32.partialorder %v2946, 8.507059e+37
  %v2948 = vand.u32 %v1549, 2147483648
  %v2949 = vor.u32 1.1754944e-38, %v2948
  %v2950 = vsel %vm2947, %v2949, %v2945
  %v2951 = vrcp.pop %v1552
  %v2952 = vmul.f32 %v1552, %v2951
  %v2953 = vsub.f32 1.0, %v2952
  %v2954 = vmul.f32 %v2951, %v2953
  %v2955 = vadd.f32 %v2951, %v2954
  %vm2956 = vweird.f32 %v1552
  %vm2957 = vweird.f32 %v2951
  %vm2958 = vmor %vm2956, %vm2957
  %v2959 = vsel %vm2958, %v2951, %v2955
  %v2960 = vand.u32 2147483647, %v1552
  %vm2961 = vcmp.eq.f32.partialorder %v2960, 8.507059e+37
  %v2962 = vand.u32 %v1552, 2147483648
  %v2963 = vor.u32 1.1754944e-38, %v2962
  %v2964 = vsel %vm2961, %v2963, %v2959
  %v2965 = vrcp.pop %v1555
  %v2966 = vmul.f32 %v1555, %v2965
  %v2967 = vsub.f32 1.0, %v2966
  %v2968 = vmul.f32 %v2965, %v2967
  %v2969 = vadd.f32 %v2965, %v2968
  %vm2970 = vweird.f32 %v1555
  %vm2971 = vweird.f32 %v2965
  %vm2972 = vmor %vm2970, %vm2971
  %v2973 = vsel %vm2972, %v2965, %v2969
  %v2974 = vand.u32 2147483647, %v1555
  %vm2975 = vcmp.eq.f32.partialorder %v2974, 8.507059e+37
  %v2976 = vand.u32 %v1555, 2147483648
  %v2977 = vor.u32 1.1754944e-38, %v2976
  %v2978 = vsel %vm2975, %v2977, %v2973
  %v2979 = vrcp.pop %v1558
  %v2980 = vmul.f32 %v1558, %v2979
  %v2981 = vsub.f32 1.0, %v2980
  %v2982 = vmul.f32 %v2979, %v2981
  %v2983 = vadd.f32 %v2979, %v2982
  %vm2984 = vweird.f32 %v1558
  %vm2985 = vweird.f32 %v2979
  %vm2986 = vmor %vm2984, %vm2985
  %v2987 = vsel %vm2986, %v2979, %v2983
  %v2988 = vand.u32 2147483647, %v1558
  %vm2989 = vcmp.eq.f32.partialorder %v2988, 8.507059e+37
  %v2990 = vand.u32 %v1558, 2147483648
  %v2991 = vor.u32 1.1754944e-38, %v2990
  %v2992 = vsel %vm2989, %v2991, %v2987
  %v2993 = vrcp.pop %v1561
  %v2994 = vmul.f32 %v1561, %v2993
  %v2995 = vsub.f32 1.0, %v2994
  %v2996 = vmul.f32 %v2993, %v2995
  %v2997 = vadd.f32 %v2993, %v2996
  %vm2998 = vweird.f32 %v1561
  %vm2999 = vweird.f32 %v2993
  %vm3000 = vmor %vm2998, %vm2999
  %v3001 = vsel %vm3000, %v2993, %v2997
  %v3002 = vand.u32 2147483647, %v1561
  %vm3003 = vcmp.eq.f32.partialorder %v3002, 8.507059e+37
  %v3004 = vand.u32 %v1561, 2147483648
  %v3005 = vor.u32 1.1754944e-38, %v3004
  %v3006 = vsel %vm3003, %v3005, %v3001
  %v3007 = vrcp.pop %v1564
  %v3008 = vmul.f32 %v1564, %v3007
  %v3009 = vsub.f32 1.0, %v3008
  %v3010 = vmul.f32 %v3007, %v3009
  %v3011 = vadd.f32 %v3007, %v3010
  %vm3012 = vweird.f32 %v1564
  %vm3013 = vweird.f32 %v3007
  %vm3014 = vmor %vm3012, %vm3013
  %v3015 = vsel %vm3014, %v3007, %v3011
  %v3016 = vand.u32 2147483647, %v1564
  %vm3017 = vcmp.eq.f32.partialorder %v3016, 8.507059e+37
  %v3018 = vand.u32 %v1564, 2147483648
  %v3019 = vor.u32 1.1754944e-38, %v3018
  %v3020 = vsel %vm3017, %v3019, %v3015
  %v3021 = vrcp.pop %v1567
  %v3022 = vmul.f32 %v1567, %v3021
  %v3023 = vsub.f32 1.0, %v3022
  %v3024 = vmul.f32 %v3021, %v3023
  %v3025 = vadd.f32 %v3021, %v3024
  %vm3026 = vweird.f32 %v1567
  %vm3027 = vweird.f32 %v3021
  %vm3028 = vmor %vm3026, %vm3027
  %v3029 = vsel %vm3028, %v3021, %v3025
  %v3030 = vand.u32 2147483647, %v1567
  %vm3031 = vcmp.eq.f32.partialorder %v3030, 8.507059e+37
  %v3032 = vand.u32 %v1567, 2147483648
  %v3033 = vor.u32 1.1754944e-38, %v3032
  %v3034 = vsel %vm3031, %v3033, %v3029
  %v3035 = vrcp.pop %v1570
  %v3036 = vmul.f32 %v1570, %v3035
  %v3037 = vsub.f32 1.0, %v3036
  %v3038 = vmul.f32 %v3035, %v3037
  %v3039 = vadd.f32 %v3035, %v3038
  %vm3040 = vweird.f32 %v1570
  %vm3041 = vweird.f32 %v3035
  %vm3042 = vmor %vm3040, %vm3041
  %v3043 = vsel %vm3042, %v3035, %v3039
  %v3044 = vand.u32 2147483647, %v1570
  %vm3045 = vcmp.eq.f32.partialorder %v3044, 8.507059e+37
  %v3046 = vand.u32 %v1570, 2147483648
  %v3047 = vor.u32 1.1754944e-38, %v3046
  %v3048 = vsel %vm3045, %v3047, %v3043
  %v3049 = vrcp.pop %v1573
  %v3050 = vmul.f32 %v1573, %v3049
  %v3051 = vsub.f32 1.0, %v3050
  %v3052 = vmul.f32 %v3049, %v3051
  %v3053 = vadd.f32 %v3049, %v3052
  %vm3054 = vweird.f32 %v1573
  %vm3055 = vweird.f32 %v3049
  %vm3056 = vmor %vm3054, %vm3055
  %v3057 = vsel %vm3056, %v3049, %v3053
  %v3058 = vand.u32 2147483647, %v1573
  %vm3059 = vcmp.eq.f32.partialorder %v3058, 8.507059e+37
  %v3060 = vand.u32 %v1573, 2147483648
  %v3061 = vor.u32 1.1754944e-38, %v3060
  %v3062 = vsel %vm3059, %v3061, %v3057
  %v3063 = vrcp.pop %v1576
  %v3064 = vmul.f32 %v1576, %v3063
  %v3065 = vsub.f32 1.0, %v3064
  %v3066 = vmul.f32 %v3063, %v3065
  %v3067 = vadd.f32 %v3063, %v3066
  %vm3068 = vweird.f32 %v1576
  %vm3069 = vweird.f32 %v3063
  %vm3070 = vmor %vm3068, %vm3069
  %v3071 = vsel %vm3070, %v3063, %v3067
  %v3072 = vand.u32 2147483647, %v1576
  %vm3073 = vcmp.eq.f32.partialorder %v3072, 8.507059e+37
  %v3074 = vand.u32 %v1576, 2147483648
  %v3075 = vor.u32 1.1754944e-38, %v3074
  %v3076 = vsel %vm3073, %v3075, %v3071
  %v3077 = vrcp.pop %v1579
  %v3078 = vmul.f32 %v1579, %v3077
  %v3079 = vsub.f32 1.0, %v3078
  %v3080 = vmul.f32 %v3077, %v3079
  %v3081 = vadd.f32 %v3077, %v3080
  %vm3082 = vweird.f32 %v1579
  %vm3083 = vweird.f32 %v3077
  %vm3084 = vmor %vm3082, %vm3083
  %v3085 = vsel %vm3084, %v3077, %v3081
  %v3086 = vand.u32 2147483647, %v1579
  %vm3087 = vcmp.eq.f32.partialorder %v3086, 8.507059e+37
  %v3088 = vand.u32 %v1579, 2147483648
  %v3089 = vor.u32 1.1754944e-38, %v3088
  %v3090 = vsel %vm3087, %v3089, %v3085
  %v3091 = vrcp.pop %v1582
  %v3092 = vmul.f32 %v1582, %v3091
  %v3093 = vsub.f32 1.0, %v3092
  %v3094 = vmul.f32 %v3091, %v3093
  %v3095 = vadd.f32 %v3091, %v3094
  %vm3096 = vweird.f32 %v1582
  %vm3097 = vweird.f32 %v3091
  %vm3098 = vmor %vm3096, %vm3097
  %v3099 = vsel %vm3098, %v3091, %v3095
  %v3100 = vand.u32 2147483647, %v1582
  %vm3101 = vcmp.eq.f32.partialorder %v3100, 8.507059e+37
  %v3102 = vand.u32 %v1582, 2147483648
  %v3103 = vor.u32 1.1754944e-38, %v3102
  %v3104 = vsel %vm3101, %v3103, %v3099
  %v3105 = vrcp.pop %v1585
  %v3106 = vmul.f32 %v1585, %v3105
  %v3107 = vsub.f32 1.0, %v3106
  %v3108 = vmul.f32 %v3105, %v3107
  %v3109 = vadd.f32 %v3105, %v3108
  %vm3110 = vweird.f32 %v1585
  %vm3111 = vweird.f32 %v3105
  %vm3112 = vmor %vm3110, %vm3111
  %v3113 = vsel %vm3112, %v3105, %v3109
  %v3114 = vand.u32 2147483647, %v1585
  %vm3115 = vcmp.eq.f32.partialorder %v3114, 8.507059e+37
  %v3116 = vand.u32 %v1585, 2147483648
  %v3117 = vor.u32 1.1754944e-38, %v3116
  %v3118 = vsel %vm3115, %v3117, %v3113
  %v3119 = vrcp.pop %v1588
  %v3120 = vmul.f32 %v1588, %v3119
  %v3121 = vsub.f32 1.0, %v3120
  %v3122 = vmul.f32 %v3119, %v3121
  %v3123 = vadd.f32 %v3119, %v3122
  %vm3124 = vweird.f32 %v1588
  %vm3125 = vweird.f32 %v3119
  %vm3126 = vmor %vm3124, %vm3125
  %v3127 = vsel %vm3126, %v3119, %v3123
  %v3128 = vand.u32 2147483647, %v1588
  %vm3129 = vcmp.eq.f32.partialorder %v3128, 8.507059e+37
  %v3130 = vand.u32 %v1588, 2147483648
  %v3131 = vor.u32 1.1754944e-38, %v3130
  %v3132 = vsel %vm3129, %v3131, %v3127
  %v3133 = vmul.f32 %v1707, %v2250
  %v3134 = vmul.f32 %v1709, %v2264
  %v3135 = vmul.f32 %v1712, %v2278
  %v3136 = vmul.f32 %v1714, %v2292
  %v3137 = vmul.f32 %v1717, %v2306
  %v3138 = vmul.f32 %v1719, %v2320
  %v3139 = vmul.f32 %v1722, %v2334
  %v3140 = vmul.f32 %v1724, %v2348
  %v3141 = vmul.f32 %v1780, %v2362
  %v3142 = vmul.f32 %v1782, %v2376
  %v3143 = vmul.f32 %v1785, %v2390
  %v3144 = vmul.f32 %v1787, %v2404
  %v3145 = vmul.f32 %v1790, %v2418
  %v3146 = vmul.f32 %v1792, %v2432
  %v3147 = vmul.f32 %v1795, %v2446
  %v3148 = vmul.f32 %v1797, %v2460
  %v3149 = vmul.f32 %v1853, %v2474
  %v3150 = vmul.f32 %v1855, %v2488
  %v3151 = vmul.f32 %v1858, %v2502
  %v3152 = vmul.f32 %v1860, %v2516
  %v3153 = vmul.f32 %v1863, %v2530
  %v3154 = vmul.f32 %v1865, %v2544
  %v3155 = vmul.f32 %v1868, %v2558
  %v3156 = vmul.f32 %v1870, %v2572
  %v3157 = vmul.f32 %v1926, %v2586
  %v3158 = vmul.f32 %v1928, %v2600
  %v3159 = vmul.f32 %v1931, %v2614
  %v3160 = vmul.f32 %v1933, %v2628
  %v3161 = vmul.f32 %v1936, %v2642
  %v3162 = vmul.f32 %v1938, %v2656
  %v3163 = vmul.f32 %v1941, %v2670
  %v3164 = vmul.f32 %v1943, %v2684
  %v3165 = vmul.f32 %v1999, %v2698
  %v3166 = vmul.f32 %v2001, %v2712
  %v3167 = vmul.f32 %v2004, %v2726
  %v3168 = vmul.f32 %v2006, %v2740
  %v3169 = vmul.f32 %v2009, %v2754
  %v3170 = vmul.f32 %v2011, %v2768
  %v3171 = vmul.f32 %v2014, %v2782
  %v3172 = vmul.f32 %v2016, %v2796
  %v3173 = vmul.f32 %v2072, %v2810
  %v3174 = vmul.f32 %v2074, %v2824
  %v3175 = vmul.f32 %v2077, %v2838
  %v3176 = vmul.f32 %v2079, %v2852
  %v3177 = vmul.f32 %v2082, %v2866
  %v3178 = vmul.f32 %v2084, %v2880
  %v3179 = vmul.f32 %v2087, %v2894
  %v3180 = vmul.f32 %v2089, %v2908
  %v3181 = vmul.f32 %v2145, %v2922
  %v3182 = vmul.f32 %v2147, %v2936
  %v3183 = vmul.f32 %v2150, %v2950
  %v3184 = vmul.f32 %v2152, %v2964
  %v3185 = vmul.f32 %v2155, %v2978
  %v3186 = vmul.f32 %v2157, %v2992
  %v3187 = vmul.f32 %v2160, %v3006
  %v3188 = vmul.f32 %v2162, %v3020
  %v3189 = vmul.f32 %v2218, %v3034
  %v3190 = vmul.f32 %v2220, %v3048
  %v3191 = vmul.f32 %v2223, %v3062
  %v3192 = vmul.f32 %v2225, %v3076
  %v3193 = vmul.f32 %v2228, %v3090
  %v3194 = vmul.f32 %v2230, %v3104
  %v3195 = vmul.f32 %v2233, %v3118
  %v3196 = vmul.f32 %v2235, %v3132
  %3205 = vrot.lane.b32.xlu0 %v3141, 8
  %v3206 = vpop.permute.xlu0 %3205
  %3207 = vrot.lane.b32.xlu0 %v3142, 8
  %v3208 = vpop.permute.xlu0 %3207
  %3209 = vrot.lane.b32.xlu0 %v3143, 8
  %v3210 = vpop.permute.xlu0 %3209
  %3211 = vrot.lane.b32.xlu0 %v3144, 8
  %v3212 = vpop.permute.xlu0 %3211
  %3213 = vrot.lane.b32.xlu0 %v3145, 8
  %v3214 = vpop.permute.xlu0 %3213
  %3215 = vrot.lane.b32.xlu0 %v3146, 8
  %v3216 = vpop.permute.xlu0 %3215
  %3217 = vrot.lane.b32.xlu0 %v3147, 8
  %v3218 = vpop.permute.xlu0 %3217
  %3219 = vrot.lane.b32.xlu0 %v3148, 8
  %v3220 = vpop.permute.xlu0 %3219
  %3237 = vrot.lane.b32.xlu0 %v3149, 16
  %v3238 = vpop.permute.xlu0 %3237
  %3239 = vrot.lane.b32.xlu0 %v3150, 16
  %v3240 = vpop.permute.xlu0 %3239
  %3241 = vrot.lane.b32.xlu0 %v3151, 16
  %v3242 = vpop.permute.xlu0 %3241
  %3243 = vrot.lane.b32.xlu0 %v3152, 16
  %v3244 = vpop.permute.xlu0 %3243
  %3245 = vrot.lane.b32.xlu0 %v3153, 16
  %v3246 = vpop.permute.xlu0 %3245
  %3247 = vrot.lane.b32.xlu0 %v3154, 16
  %v3248 = vpop.permute.xlu0 %3247
  %3249 = vrot.lane.b32.xlu0 %v3155, 16
  %v3250 = vpop.permute.xlu0 %3249
  %3251 = vrot.lane.b32.xlu0 %v3156, 16
  %v3252 = vpop.permute.xlu0 %3251
  %3269 = vrot.lane.b32.xlu0 %v3157, 24
  %v3270 = vpop.permute.xlu0 %3269
  %3271 = vrot.lane.b32.xlu0 %v3158, 24
  %v3272 = vpop.permute.xlu0 %3271
  %3273 = vrot.lane.b32.xlu0 %v3159, 24
  %v3274 = vpop.permute.xlu0 %3273
  %3275 = vrot.lane.b32.xlu0 %v3160, 24
  %v3276 = vpop.permute.xlu0 %3275
  %3277 = vrot.lane.b32.xlu0 %v3161, 24
  %v3278 = vpop.permute.xlu0 %3277
  %3279 = vrot.lane.b32.xlu0 %v3162, 24
  %v3280 = vpop.permute.xlu0 %3279
  %3281 = vrot.lane.b32.xlu0 %v3163, 24
  %v3282 = vpop.permute.xlu0 %3281
  %3283 = vrot.lane.b32.xlu0 %v3164, 24
  %v3284 = vpop.permute.xlu0 %3283
  %v3293 = vsel %vm391, %v3133, %v3206
  %v3294 = vsel %vm391, %v3134, %v3208
  %v3295 = vsel %vm391, %v3135, %v3210
  %v3296 = vsel %vm391, %v3136, %v3212
  %v3297 = vsel %vm391, %v3137, %v3214
  %v3298 = vsel %vm391, %v3138, %v3216
  %v3299 = vsel %vm391, %v3139, %v3218
  %v3300 = vsel %vm391, %v3140, %v3220
  %vm3301 = vcmask 130048
  %v3302 = vsel %vm3301, %v3293, %v3238
  %v3303 = vsel %vm3301, %v3294, %v3240
  %v3304 = vsel %vm3301, %v3295, %v3242
  %v3305 = vsel %vm3301, %v3296, %v3244
  %v3306 = vsel %vm3301, %v3297, %v3246
  %v3307 = vsel %vm3301, %v3298, %v3248
  %v3308 = vsel %vm3301, %v3299, %v3250
  %v3309 = vsel %vm3301, %v3300, %v3252
  %vm3310 = vcmask 195584
  %v3311 = vsel %vm3310, %v3302, %v3270
  %v3312 = vsel %vm3310, %v3303, %v3272
  %v3313 = vsel %vm3310, %v3304, %v3274
  %v3314 = vsel %vm3310, %v3305, %v3276
  %v3315 = vsel %vm3310, %v3306, %v3278
  %v3316 = vsel %vm3310, %v3307, %v3280
  %v3317 = vsel %vm3310, %v3308, %v3282
  %v3318 = vsel %vm3310, %v3309, %v3284
  %3327 = vrot.lane.b32.xlu0 %v3173, 8
  %v3328 = vpop.permute.xlu0 %3327
  %3329 = vrot.lane.b32.xlu0 %v3174, 8
  %v3330 = vpop.permute.xlu0 %3329
  %3331 = vrot.lane.b32.xlu0 %v3175, 8
  %v3332 = vpop.permute.xlu0 %3331
  %3333 = vrot.lane.b32.xlu0 %v3176, 8
  %v3334 = vpop.permute.xlu0 %3333
  %3335 = vrot.lane.b32.xlu0 %v3177, 8
  %v3336 = vpop.permute.xlu0 %3335
  %3337 = vrot.lane.b32.xlu0 %v3178, 8
  %v3338 = vpop.permute.xlu0 %3337
  %3339 = vrot.lane.b32.xlu0 %v3179, 8
  %v3340 = vpop.permute.xlu0 %3339
  %3341 = vrot.lane.b32.xlu0 %v3180, 8
  %v3342 = vpop.permute.xlu0 %3341
  %3359 = vrot.lane.b32.xlu0 %v3181, 16
  %v3360 = vpop.permute.xlu0 %3359
  %3361 = vrot.lane.b32.xlu0 %v3182, 16
  %v3362 = vpop.permute.xlu0 %3361
  %3363 = vrot.lane.b32.xlu0 %v3183, 16
  %v3364 = vpop.permute.xlu0 %3363
  %3365 = vrot.lane.b32.xlu0 %v3184, 16
  %v3366 = vpop.permute.xlu0 %3365
  %3367 = vrot.lane.b32.xlu0 %v3185, 16
  %v3368 = vpop.permute.xlu0 %3367
  %3369 = vrot.lane.b32.xlu0 %v3186, 16
  %v3370 = vpop.permute.xlu0 %3369
  %3371 = vrot.lane.b32.xlu0 %v3187, 16
  %v3372 = vpop.permute.xlu0 %3371
  %3373 = vrot.lane.b32.xlu0 %v3188, 16
  %v3374 = vpop.permute.xlu0 %3373
  %3391 = vrot.lane.b32.xlu0 %v3189, 24
  %v3392 = vpop.permute.xlu0 %3391
  %3393 = vrot.lane.b32.xlu0 %v3190, 24
  %v3394 = vpop.permute.xlu0 %3393
  %3395 = vrot.lane.b32.xlu0 %v3191, 24
  %v3396 = vpop.permute.xlu0 %3395
  %3397 = vrot.lane.b32.xlu0 %v3192, 24
  %v3398 = vpop.permute.xlu0 %3397
  %3399 = vrot.lane.b32.xlu0 %v3193, 24
  %v3400 = vpop.permute.xlu0 %3399
  %3401 = vrot.lane.b32.xlu0 %v3194, 24
  %v3402 = vpop.permute.xlu0 %3401
  %3403 = vrot.lane.b32.xlu0 %v3195, 24
  %v3404 = vpop.permute.xlu0 %3403
  %3405 = vrot.lane.b32.xlu0 %v3196, 24
  %v3406 = vpop.permute.xlu0 %3405
  %v3415 = vsel %vm391, %v3165, %v3328
  %v3416 = vsel %vm391, %v3166, %v3330
  %v3417 = vsel %vm391, %v3167, %v3332
  %v3418 = vsel %vm391, %v3168, %v3334
  %v3419 = vsel %vm391, %v3169, %v3336
  %v3420 = vsel %vm391, %v3170, %v3338
  %v3421 = vsel %vm391, %v3171, %v3340
  %v3422 = vsel %vm391, %v3172, %v3342
  %v3423 = vsel %vm3301, %v3415, %v3360
  %v3424 = vsel %vm3301, %v3416, %v3362
  %v3425 = vsel %vm3301, %v3417, %v3364
  %v3426 = vsel %vm3301, %v3418, %v3366
  %v3427 = vsel %vm3301, %v3419, %v3368
  %v3428 = vsel %vm3301, %v3420, %v3370
  %v3429 = vsel %vm3301, %v3421, %v3372
  %v3430 = vsel %vm3301, %v3422, %v3374
  %v3431 = vsel %vm3310, %v3423, %v3392
  %v3432 = vsel %vm3310, %v3424, %v3394
  %v3433 = vsel %vm3310, %v3425, %v3396
  %v3434 = vsel %vm3310, %v3426, %v3398
  %v3435 = vsel %vm3310, %v3427, %v3400
  %v3436 = vsel %vm3310, %v3428, %v3402
  %v3437 = vsel %vm3310, %v3429, %v3404
  %v3438 = vsel %vm3310, %v3430, %v3406
  %v3439 = vpack.c.bf16 %v3312, %v3311
  %v3440 = vpack.c.bf16 %v3314, %v3313
  %v3441 = vpack.c.bf16 %v3316, %v3315
  %v3442 = vpack.c.bf16 %v3318, %v3317
  %v3443 = vpack.c.bf16 %v3432, %v3431
  %v3444 = vpack.c.bf16 %v3434, %v3433
  %v3445 = vpack.c.bf16 %v3436, %v3435
  %v3446 = vpack.c.bf16 %v3438, %v3437
  %v3447 = vld [vmem:[%s3] sm:$0xf]
  %v3448 = vld [vmem:[%s3 + $0x4] sm:$0xf]
  %v3449 = vld [vmem:[%s3 + $0x8] sm:$0xf]
  %v3450 = vld [vmem:[%s3 + $0xc] sm:$0xf]
  %v3451 = vld [vmem:[%s4] sm:$0x1]
  %v3453 = vperm.slane %v3451, 0
  %v3459 = vunpack.c.l.b16 %v3447
  %v3460 = vunpack.c.l.b16 %v3448
  %v3461 = vunpack.c.l.b16 %v3449
  %v3462 = vunpack.c.l.b16 %v3450
  %v3463 = vpack.c.b16 %v3460, %v3459
  %v3464 = vpack.c.b16 %v3462, %v3461
  %v3468 = vsel %vm65, %v3439, 0
  %v3471 = vsel %vm65, %v3440, 0
  %v3474 = vsel %vm65, %v3441, 0
  %v3477 = vsel %vm65, %v3442, 0
  %v3480 = vsel %vm65, %v3443, 0
  %v3483 = vsel %vm65, %v3444, 0
  %v3486 = vsel %vm65, %v3445, 0
  %v3489 = vsel %vm65, %v3446, 0
  %3491 = vmatpush.bf16.msra.mxu0 0
  %3492 = vmatpush.bf16.msra.mxu0 0
  %3493 = vmatpush.bf16.msra.mxu0 0
  %3494 = vmatpush.bf16.msra.mxu0 0
  %3495 = vmatpush.bf16.msra.mxu0 0
  %3496 = vmatpush.bf16.msra.mxu0 0
  %3497 = vmatpush.bf16.msra.mxu0 %v3464
  %3498 = vmatpush.bf16.msra.mxu0 %v3463
  %3499 = vmatmul.bf16.gmra.mxu0 %v3468
  %v3500 = vpop.f32.mrf.mxu0
  %v3501 = vadd.f32 %v3453, %v3500
  %v3502 = vpop.f32.mrf.mxu0
  %v3503 = vadd.f32 %v3453, %v3502
  %3504 = vmatmul.bf16.gmra.mxu0 %v3471
  %v3505 = vpop.f32.mrf.mxu0
  %v3506 = vadd.f32 %v3453, %v3505
  %v3507 = vpop.f32.mrf.mxu0
  %v3508 = vadd.f32 %v3453, %v3507
  %3509 = vmatmul.bf16.gmra.mxu0 %v3474
  %v3510 = vpop.f32.mrf.mxu0
  %v3511 = vadd.f32 %v3453, %v3510
  %v3512 = vpop.f32.mrf.mxu0
  %v3513 = vadd.f32 %v3453, %v3512
  %3514 = vmatmul.bf16.gmra.mxu0 %v3477
  %v3515 = vpop.f32.mrf.mxu0
  %v3516 = vadd.f32 %v3453, %v3515
  %v3517 = vpop.f32.mrf.mxu0
  %v3518 = vadd.f32 %v3453, %v3517
  %3519 = vmatmul.bf16.gmra.mxu0 %v3480
  %v3520 = vpop.f32.mrf.mxu0
  %v3521 = vadd.f32 %v3453, %v3520
  %v3522 = vpop.f32.mrf.mxu0
  %v3523 = vadd.f32 %v3453, %v3522
  %3524 = vmatmul.bf16.gmra.mxu0 %v3483
  %v3525 = vpop.f32.mrf.mxu0
  %v3526 = vadd.f32 %v3453, %v3525
  %v3527 = vpop.f32.mrf.mxu0
  %v3528 = vadd.f32 %v3453, %v3527
  %3529 = vmatmul.bf16.gmra.mxu0 %v3486
  %v3530 = vpop.f32.mrf.mxu0
  %v3531 = vadd.f32 %v3453, %v3530
  %v3532 = vpop.f32.mrf.mxu0
  %v3533 = vadd.f32 %v3453, %v3532
  %3534 = vmatmul.bf16.gmra.mxu0 %v3489
  %v3535 = vpop.f32.mrf.mxu0
  %v3536 = vadd.f32 %v3453, %v3535
  %v3537 = vpop.f32.mrf.mxu0
  %v3538 = vadd.f32 %v3453, %v3537
  %3539 = vdwg.mxu0
  %3540 = vst.msk [vmem:[%s5] sm:$0xff] %vm65, %v3501
  %3541 = vst.msk [vmem:[%s5 + $0x8] sm:$0xff] %vm65, %v3503
  %3542 = vst.msk [vmem:[%s5 + $0x10] sm:$0xff] %vm65, %v3506
  %3543 = vst.msk [vmem:[%s5 + $0x18] sm:$0xff] %vm65, %v3508
  %3544 = vst.msk [vmem:[%s5 + $0x20] sm:$0xff] %vm65, %v3511
  %3545 = vst.msk [vmem:[%s5 + $0x28] sm:$0xff] %vm65, %v3513
  %3546 = vst.msk [vmem:[%s5 + $0x30] sm:$0xff] %vm65, %v3516
  %3547 = vst.msk [vmem:[%s5 + $0x38] sm:$0xff] %vm65, %v3518
  %3548 = vst.msk [vmem:[%s5 + $0x40] sm:$0xff] %vm65, %v3521
  %3549 = vst.msk [vmem:[%s5 + $0x48] sm:$0xff] %vm65, %v3523
  %3550 = vst.msk [vmem:[%s5 + $0x50] sm:$0xff] %vm65, %v3526
  %3551 = vst.msk [vmem:[%s5 + $0x58] sm:$0xff] %vm65, %v3528
  %3552 = vst.msk [vmem:[%s5 + $0x60] sm:$0xff] %vm65, %v3531
  %3553 = vst.msk [vmem:[%s5 + $0x68] sm:$0xff] %vm65, %v3533
  %3554 = vst.msk [vmem:[%s5 + $0x70] sm:$0xff] %vm65, %v3536
  %3555 = vst.msk [vmem:[%s5 + $0x78] sm:$0xff] %vm65, %v3538
  // Predicated region
  $region22: #{tpu_custom_call.1} parent=0 // pred_check
    _
  $region23: #{tpu_custom_call.1} parent=0 // pred_check_branch
    %3557 = sbr.rel (0) target = $region25
  $region24: #{tpu_custom_call.1} parent=0 // pred_region
    _
  $region25: #{tpu_custom_call.1} parent=0 // pred_fallthru
    _
  // Predicated region
  $region26: #{tpu_custom_call.1} parent=0 // pred_check
    _
  $region27: #{tpu_custom_call.1} parent=0 // pred_check_branch
    %3559 = sbr.rel (0) target = $region29
  $region28: #{tpu_custom_call.1} parent=0 // pred_region
    _
  $region29: #{tpu_custom_call.1} parent=0 // pred_fallthru
    _

</llo_original>
